<compile_context>
chip_gen: v5e
topology: v5e:2x2
jax: 0.10.0
libtpu: 0.0.40
codegen_flags: <defaults>
</compile_context>

<pallas_src>
import functools
import math

import jax
import jax.numpy as jnp
from jax.experimental import pallas as pl
from jax.experimental.pallas import tpu as pltpu


# --------------------------------------------------------------------------
# Preferred kernel: fused QKV + head-batched attention (no per-head loop,
# no lane-dim slicing).
# --------------------------------------------------------------------------
def _attention_kernel_batched(x_ref, wqkv_ref, bqkv_ref, wo_ref, bo_ref, o_ref,
                              *, n_heads):
    _, S, D = x_ref.shape
    d_k = D // n_heads
    scale = 1.0 / math.sqrt(d_k)

    x = x_ref[0].astype(jnp.bfloat16)                          # (S, D)

    # Fused projection in transposed form: (3D, S) = Wqkv(3D, D) . x^T.
    # d_model stays on the sublane axis -> the q/k/v split and the head split
    # below are tile-aligned sublane slices/reshapes (never lane-dim splits).
    # bf16 operands, fp32 accumulation.
    qkvT = jnp.einsum('od,sd->os', wqkv_ref[...], x,
                      preferred_element_type=jnp.float32) + bqkv_ref[...]
    qT = qkvT[0 * D:1 * D] * scale        # 1/sqrt(d_k) folded into q: O(S*D)
    kT = qkvT[1 * D:2 * D]
    vT = qkvT[2 * D:3 * D]

    # Head split: (D, S) -> (H, d_k, S); q/k transposed to (H, S, d_k).
    qh = jnp.transpose(qT.reshape(n_heads, d_k, S), (0, 2, 1)).astype(jnp.bfloat16)
    kh = jnp.transpose(kT.reshape(n_heads, d_k, S), (0, 2, 1)).astype(jnp.bfloat16)
    vh = vT.reshape(n_heads, d_k, S).astype(jnp.bfloat16)      # stays (H, d_k, S)

    # Single head-batched scores matmul; softmax kept in fp32.
    s = jnp.einsum('hqd,hkd->hqk', qh, kh, preferred_element_type=jnp.float32)
    s = s - jnp.max(s, axis=-1, keepdims=True)
    p = jnp.exp(s)
    p = p * pl.reciprocal(jnp.sum(p, axis=-1, keepdims=True), approx=True)
    # TODO(synk): scores_dropout is identity in eval mode; no RNG applied here.

    ctx = jnp.einsum('hqk,hdk->hqd', p.astype(jnp.bfloat16), vh,
                     preferred_element_type=jnp.float32)       # (H, S, d_k)
    ctxT = jnp.transpose(ctx, (0, 2, 1)).reshape(D, S)         # heads -> sublanes

    out = jnp.einsum('dq,od->qo', ctxT.astype(jnp.bfloat16), wo_ref[...],
                     preferred_element_type=jnp.float32) + bo_ref[...]
    o_ref[0] = out.astype(o_ref.dtype)                         # lane-dense (S, D)


# --------------------------------------------------------------------------
# Fallback kernel: fused QKV + per-head loop (known-good lowering), still
# bf16 operands / fp32 accumulation, folded scale, approx reciprocal.
# --------------------------------------------------------------------------
def _attention_kernel_headloop(x_ref, wqkv_ref, bqkv_ref, wo_ref, bo_ref, o_ref,
                               *, n_heads):
    _, S, D = x_ref.shape
    d_k = D // n_heads
    scale = 1.0 / math.sqrt(d_k)

    x = x_ref[0].astype(jnp.bfloat16)                          # (S, D)
    qkv = jnp.dot(x, wqkv_ref[...],
                  preferred_element_type=jnp.float32) + bqkv_ref[...]   # (S, 3D)
    q = qkv[:, 0 * D:1 * D] * scale
    k = qkv[:, 1 * D:2 * D]
    v = qkv[:, 2 * D:3 * D]

    outs = []
    for h in range(n_heads):
        sl = slice(h * d_k, (h + 1) * d_k)
        qh = q[:, sl].astype(jnp.bfloat16)
        kh = k[:, sl].astype(jnp.bfloat16)
        vh = v[:, sl].astype(jnp.bfloat16)
        s = jnp.dot(qh, kh.T, preferred_element_type=jnp.float32)
        s = s - jnp.max(s, axis=-1, keepdims=True)
        p = jnp.exp(s)
        p = p * pl.reciprocal(jnp.sum(p, axis=-1, keepdims=True), approx=True)
        # TODO(synk): scores_dropout is identity in eval mode.
        outs.append(jnp.dot(p.astype(jnp.bfloat16), vh,
                            preferred_element_type=jnp.float32))

    ctx = jnp.concatenate(outs, axis=-1).astype(jnp.bfloat16)
    out = jnp.dot(ctx, wo_ref[...], preferred_element_type=jnp.float32) + bo_ref[...]
    o_ref[0] = out.astype(o_ref.dtype)


# --------------------------------------------------------------------------
# Wrappers
# --------------------------------------------------------------------------
def _compiler_params(D, S):
    w_bytes = 4 * D * D * 2 + 4 * D * 4          # bf16 weights + fp32 biases
    a_bytes = S * D * 4                          # one activation block (fp32)
    vmem_limit = int(min(56 * 2**20, max(32 * 2**20, 4 * w_bytes + 64 * a_bytes)))
    return pltpu.CompilerParams(
        dimension_semantics=("parallel",),       # batch axis -> megacore on v7x
        vmem_limit_bytes=vmem_limit,
    )


def _weight_spec(shape, single_buffer):
    kwargs = {}
    if single_buffer:
        # Constant index_map across the grid -> double-buffering only wastes
        # VMEM; request a single buffer.
        kwargs["pipeline_mode"] = pl.Buffered(1)
    return pl.BlockSpec(shape, lambda b: (0,) * len(shape), **kwargs)


def _attention_call_batched(x, params, n_heads, single_buffer_weights):
    B, S, D = x.shape
    # Fused QKV weight stays in PyTorch (d_out, d_in) layout for the
    # transposed-projection formulation; cast to bf16 (MXU-native).
    wqkv = jnp.concatenate([params["wq"], params["wk"], params["wv"]],
                           axis=0).astype(jnp.bfloat16)                 # (3D, D)
    bqkv = jnp.concatenate([params["bq"], params["bk"], params["bv"]],
                           axis=0).reshape(3 * D, 1).astype(jnp.float32)
    wo = params["wo"].astype(jnp.bfloat16)                              # (D, D)
    bo = params["bo"].reshape(1, D).astype(jnp.float32)

    in_specs = [
        pl.BlockSpec((1, S, D), lambda b: (b, 0, 0)),                   # x
        _weight_spec((3 * D, D), single_buffer_weights),                # wqkv
        _weight_spec((3 * D, 1), single_buffer_weights),                # bqkv
        _weight_spec((D, D), single_buffer_weights),                    # wo
        _weight_spec((1, D), single_buffer_weights),                    # bo
    ]

    kernel = functools.partial(_attention_kernel_batched, n_heads=n_heads)
    fn = pl.pallas_call(
        kernel,
        out_shape=jax.ShapeDtypeStruct((B, S, D), x.dtype),
        grid_spec=pltpu.PrefetchScalarGridSpec(
            num_scalar_prefetch=0,
            grid=(B,),
            in_specs=in_specs,
            out_specs=pl.BlockSpec((1, S, D), lambda b: (b, 0, 0)),
        ),
        compiler_params=_compiler_params(D, S),
    )
    return fn(x, wqkv, bqkv, wo, bo)


def _attention_call_headloop(x, params, n_heads):
    B, S, D = x.shape
    # This path computes y = x @ W + b, so pre-transpose to (d_in, d_out).
    wqkv = jnp.concatenate([params["wq"], params["wk"], params["wv"]],
                           axis=0).T.astype(jnp.bfloat16)               # (D, 3D)
    bqkv = jnp.concatenate([params["bq"], params["bk"], params["bv"]],
                           axis=0).reshape(1, 3 * D).astype(jnp.float32)
    wo = params["wo"].T.astype(jnp.bfloat16)                            # (D, D)
    bo = params["bo"].reshape(1, D).astype(jnp.float32)

    in_specs = [
        pl.BlockSpec((1, S, D), lambda b: (b, 0, 0)),
        _weight_spec((D, 3 * D), False),
        _weight_spec((1, 3 * D), False),
        _weight_spec((D, D), False),
        _weight_spec((1, D), False),
    ]

    kernel = functools.partial(_attention_kernel_headloop, n_heads=n_heads)
    fn = pl.pallas_call(
        kernel,
        out_shape=jax.ShapeDtypeStruct((B, S, D), x.dtype),
        grid_spec=pltpu.PrefetchScalarGridSpec(
            num_scalar_prefetch=0,
            grid=(B,),
            in_specs=in_specs,
            out_specs=pl.BlockSpec((1, S, D), lambda b: (b, 0, 0)),
        ),
        compiler_params=_compiler_params(D, S),
    )
    return fn(x, wqkv, bqkv, wo, bo)


def attention(x, params, n_heads):
    """Multi-head self-attention forward.  x: (B, S, D) -> (B, S, D)."""
    B, S, D = x.shape
    assert D % n_heads == 0
    # NOTE: real ViT dims (D = 768/1024) are multiples of 128; keep D lane-dense
    # for full-rate vst/vld (demo below uses D = 128).
    attempts = (
        lambda: _attention_call_batched(x, params, n_heads, True),   # preferred
        lambda: _attention_call_batched(x, params, n_heads, False),  # no Buffered(1)
        lambda: _attention_call_headloop(x, params, n_heads),        # conservative
    )
    last_err = None
    for make in attempts:
        try:
            return make()
        except Exception as e:  # lowering-compat fallback only
            last_err = e
    raise last_err


# --------------------------------------------------------------------------
# Pure-JAX reference (matches the PyTorch module in eval mode).
# --------------------------------------------------------------------------
def attention_ref(x, params, n_heads):
    B, S, D = x.shape
    d_k = D // n_heads
    q = x @ params["wq"].T + params["bq"]
    k = x @ params["wk"].T + params["bk"]
    v = x @ params["wv"].T + params["bv"]

    def split(t):
        return t.reshape(B, S, n_heads, d_k).transpose(0, 2, 1, 3)

    q, k, v = split(q), split(k), split(v)
    s = jnp.einsum('bhqd,bhkd->bhqk', q, k) / math.sqrt(d_k)
    p = jax.nn.softmax(s, axis=-1)
    o = jnp.einsum('bhqk,bhkd->bhqd', p, v)
    o = o.transpose(0, 2, 1, 3).reshape(B, S, D)
    return o @ params["wo"].T + params["bo"]


def init_params(key, d_model):
    ks = jax.random.split(key, 4)
    std = 0.02
    return {
        # PyTorch nn.Linear layout: (d_out, d_in) weights, (d_out,) biases.
        "wq": jax.random.normal(ks[0], (d_model, d_model), jnp.float32) * std,
        "wk": jax.random.normal(ks[1], (d_model, d_model), jnp.float32) * std,
        "wv": jax.random.normal(ks[2], (d_model, d_model), jnp.float32) * std,
        "wo": jax.random.normal(ks[3], (d_model, d_model), jnp.float32) * std,
        "bq": jnp.zeros((d_model,), jnp.float32),
        "bk": jnp.zeros((d_model,), jnp.float32),
        "bv": jnp.zeros((d_model,), jnp.float32),
        "bo": jnp.zeros((d_model,), jnp.float32),
    }


if __name__ == "__main__":
    # Small, lane-aligned config: bz=2, seq (n_patches+1)=8, d_model=128, heads=4.
    bz, seq_len, d_model, n_heads = 2, 8, 128, 4

    key = jax.random.PRNGKey(0)
    kx, kp = jax.random.split(key)
    x = jax.random.normal(kx, (bz, seq_len, d_model), jnp.float32)
    params = init_params(kp, d_model)

    out = attention(x, params, n_heads)
    jax.block_until_ready(out)
    assert out.shape == (bz, seq_len, d_model)

    ref = attention_ref(x, params, n_heads)
    max_err = float(jnp.max(jnp.abs(out - ref)))
    assert max_err < 5e-2, f"kernel/reference mismatch: max abs err {max_err}"

    print("KERNEL_OK")
</pallas_src>

<mosaic_0001>
module attributes {stable_mosaic.version = 11 : i64} {
  func.func @_attention_kernel_batched(%arg0: i32, %arg1: memref<1x8x128xf32, #tpu.memory_space<vmem>>, %arg2: memref<384x128xbf16, #tpu.memory_space<vmem>>, %arg3: memref<384x1xf32, #tpu.memory_space<vmem>>, %arg4: memref<128x128xbf16, #tpu.memory_space<vmem>>, %arg5: memref<1x128xf32, #tpu.memory_space<vmem>>, %arg6: memref<1x8x128xf32, #tpu.memory_space<vmem>>) attributes {dimension_semantics = [#tpu.dimension_semantics<parallel>], iteration_bounds = array<i64: 2>, scalar_prefetch = 0 : i64, scratch_operands = 0 : i64, tpu.core_type = #tpu.core_type<tc>, window_params = [{transform_indices = @transform_0, window_bounds = array<i64: 1, 8, 128>}, {pipeline_mode = #tpu.pipeline_mode<synchronous>, transform_indices = @transform_1, window_bounds = array<i64: 384, 128>}, {pipeline_mode = #tpu.pipeline_mode<synchronous>, transform_indices = @transform_2, window_bounds = array<i64: 384, 1>}, {pipeline_mode = #tpu.pipeline_mode<synchronous>, transform_indices = @transform_3, window_bounds = array<i64: 128, 128>}, {pipeline_mode = #tpu.pipeline_mode<synchronous>, transform_indices = @transform_4, window_bounds = array<i64: 1, 128>}, {transform_indices = @transform_5, window_bounds = array<i64: 1, 8, 128>}]} {
    %c0 = arith.constant 0 : index
    %c0_0 = arith.constant 0 : index
    %c0_1 = arith.constant 0 : index
    %0 = vector.load %arg1[%c0, %c0_0, %c0_1] : memref<1x8x128xf32, #tpu.memory_space<vmem>>, vector<1x8x128xf32>
    %1 = vector.shape_cast %0 : vector<1x8x128xf32> to vector<8x128xf32>
    %2 = arith.truncf %1 : vector<8x128xf32> to vector<8x128xbf16>
    %c0_2 = arith.constant 0 : index
    %c0_3 = arith.constant 0 : index
    %3 = vector.load %arg2[%c0_2, %c0_3] : memref<384x128xbf16, #tpu.memory_space<vmem>>, vector<384x128xbf16>
    "tpu.trace_start"() <{level = 10 : i32, message = "od,sd->os"}> : () -> ()
    %cst = arith.constant dense<0.000000e+00> : vector<384x8xf32>
    %4 = tpu.matmul %3, %2, %cst {dimension_numbers = #tpu.dot_dimension_numbers<[1], [1], [0], [0], [0, 0, 1, 0], [], []>} : vector<384x128xbf16>, vector<8x128xbf16>, vector<384x8xf32> -> vector<384x8xf32>
    "tpu.trace_stop"() : () -> ()
    %c0_4 = arith.constant 0 : index
    %c0_5 = arith.constant 0 : index
    %5 = vector.load %arg3[%c0_4, %c0_5] : memref<384x1xf32, #tpu.memory_space<vmem>>, vector<384x1xf32>
    %6 = vector.broadcast %5 : vector<384x1xf32> to vector<384x8xf32>
    %7 = arith.addf %4, %6 : vector<384x8xf32>
    %8 = vector.extract_strided_slice %7 {offsets = [0, 0], sizes = [128, 8], strides = [1, 1]} : vector<384x8xf32> to vector<128x8xf32>
    %cst_6 = arith.constant 0.176776692 : f32
    %9 = vector.broadcast %cst_6 : f32 to vector<128x8xf32>
    %10 = arith.mulf %8, %9 : vector<128x8xf32>
    %11 = vector.extract_strided_slice %7 {offsets = [128, 0], sizes = [128, 8], strides = [1, 1]} : vector<384x8xf32> to vector<128x8xf32>
    %12 = vector.extract_strided_slice %7 {offsets = [256, 0], sizes = [128, 8], strides = [1, 1]} : vector<384x8xf32> to vector<128x8xf32>
    %13 = vector.shape_cast %10 : vector<128x8xf32> to vector<4x32x8xf32>
    %14 = tpu.transpose %13, [0, 2, 1] : vector<4x32x8xf32> -> vector<4x8x32xf32>
    %15 = arith.truncf %14 : vector<4x8x32xf32> to vector<4x8x32xbf16>
    %16 = vector.shape_cast %11 : vector<128x8xf32> to vector<4x32x8xf32>
    %17 = tpu.transpose %16, [0, 2, 1] : vector<4x32x8xf32> -> vector<4x8x32xf32>
    %18 = arith.truncf %17 : vector<4x8x32xf32> to vector<4x8x32xbf16>
    %19 = vector.shape_cast %12 : vector<128x8xf32> to vector<4x32x8xf32>
    %20 = arith.truncf %19 : vector<4x32x8xf32> to vector<4x32x8xbf16>
    "tpu.trace_start"() <{level = 10 : i32, message = "hqd,hkd->hqk"}> : () -> ()
    %cst_7 = arith.constant dense<0.000000e+00> : vector<4x8x8xf32>
    %21 = tpu.matmul %15, %18, %cst_7 {dimension_numbers = #tpu.dot_dimension_numbers<[2], [2], [1], [1], [0, 0, 0, 1, 1, 1], [0], [0]>} : vector<4x8x32xbf16>, vector<4x8x32xbf16>, vector<4x8x8xf32> -> vector<4x8x8xf32>
    "tpu.trace_stop"() : () -> ()
    %cst_8 = arith.constant dense<0xFF800000> : vector<4x8xf32>
    %22 = vector.multi_reduction <maximumf>, %21, %cst_8 [2] : vector<4x8x8xf32> to vector<4x8xf32>
    %23 = vector.shape_cast %22 : vector<4x8xf32> to vector<4x8x1xf32>
    %24 = vector.broadcast %23 : vector<4x8x1xf32> to vector<4x8x8xf32>
    %25 = arith.subf %21, %24 : vector<4x8x8xf32>
    %26 = math.exp %25 : vector<4x8x8xf32>
    %cst_9 = arith.constant dense<0.000000e+00> : vector<4x8xf32>
    %27 = vector.multi_reduction <add>, %26, %cst_9 [2] : vector<4x8x8xf32> to vector<4x8xf32>
    %28 = vector.shape_cast %27 : vector<4x8xf32> to vector<4x8x1xf32>
    %29 = tpu.reciprocal %28 {approx = true} : vector<4x8x1xf32> -> vector<4x8x1xf32>
    %30 = vector.broadcast %29 : vector<4x8x1xf32> to vector<4x8x8xf32>
    %31 = arith.mulf %26, %30 : vector<4x8x8xf32>
    %32 = arith.truncf %31 : vector<4x8x8xf32> to vector<4x8x8xbf16>
    "tpu.trace_start"() <{level = 10 : i32, message = "hqk,hdk->hqd"}> : () -> ()
    %cst_10 = arith.constant dense<0.000000e+00> : vector<4x8x32xf32>
    %33 = tpu.matmul %32, %20, %cst_10 {dimension_numbers = #tpu.dot_dimension_numbers<[2], [2], [1], [1], [0, 0, 0, 1, 1, 1], [0], [0]>} : vector<4x8x8xbf16>, vector<4x32x8xbf16>, vector<4x8x32xf32> -> vector<4x8x32xf32>
    "tpu.trace_stop"() : () -> ()
    %34 = tpu.transpose %33, [0, 2, 1] : vector<4x8x32xf32> -> vector<4x32x8xf32>
    %35 = vector.shape_cast %34 : vector<4x32x8xf32> to vector<128x8xf32>
    %36 = arith.truncf %35 : vector<128x8xf32> to vector<128x8xbf16>
    %c0_11 = arith.constant 0 : index
    %c0_12 = arith.constant 0 : index
    %37 = vector.load %arg4[%c0_11, %c0_12] : memref<128x128xbf16, #tpu.memory_space<vmem>>, vector<128x128xbf16>
    "tpu.trace_start"() <{level = 10 : i32, message = "dq,od->qo"}> : () -> ()
    %cst_13 = arith.constant dense<0.000000e+00> : vector<8x128xf32>
    %38 = tpu.matmul %36, %37, %cst_13 {dimension_numbers = #tpu.dot_dimension_numbers<[0], [1], [1], [0], [0, 1, 1, 0], [], []>} : vector<128x8xbf16>, vector<128x128xbf16>, vector<8x128xf32> -> vector<8x128xf32>
    "tpu.trace_stop"() : () -> ()
    %c0_14 = arith.constant 0 : index
    %c0_15 = arith.constant 0 : index
    %39 = vector.load %arg5[%c0_14, %c0_15] : memref<1x128xf32, #tpu.memory_space<vmem>>, vector<1x128xf32>
    %40 = vector.broadcast %39 : vector<1x128xf32> to vector<8x128xf32>
    %41 = arith.addf %38, %40 : vector<8x128xf32>
    %c0_16 = arith.constant 0 : index
    %c0_17 = arith.constant 0 : index
    %c0_18 = arith.constant 0 : index
    %42 = vector.load %arg6[%c0_16, %c0_17, %c0_18] : memref<1x8x128xf32, #tpu.memory_space<vmem>>, vector<1x8x128xf32>
    %43 = vector.shape_cast %42 : vector<1x8x128xf32> to vector<8x128xf32>
    %44 = vector.shape_cast %41 : vector<8x128xf32> to vector<1x8x128xf32>
    tpu.vector_store %arg6[%c0_16, %c0_17, %c0_18], %44 {strides = array<i32>} : memref<1x8x128xf32, #tpu.memory_space<vmem>>, vector<1x8x128xf32>,
    return
  }
  func.func @transform_0(%arg0: i32) -> (i32, i32, i32) {
    %c0_i32 = arith.constant 0 : i32
    %c0_i32_0 = arith.constant 0 : i32
    %c0_i32_1 = arith.constant 0 : i32
    return %arg0, %c0_i32, %c0_i32_0 : i32, i32, i32
  }
  func.func @transform_1(%arg0: i32) -> (i32, i32) {
    %c0_i32 = arith.constant 0 : i32
    %c0_i32_0 = arith.constant 0 : i32
    %c0_i32_1 = arith.constant 0 : i32
    return %c0_i32, %c0_i32_0 : i32, i32
  }
  func.func @transform_2(%arg0: i32) -> (i32, i32) {
    %c0_i32 = arith.constant 0 : i32
    %c0_i32_0 = arith.constant 0 : i32
    %c0_i32_1 = arith.constant 0 : i32
    return %c0_i32, %c0_i32_0 : i32, i32
  }
  func.func @transform_3(%arg0: i32) -> (i32, i32) {
    %c0_i32 = arith.constant 0 : i32
    %c0_i32_0 = arith.constant 0 : i32
    %c0_i32_1 = arith.constant 0 : i32
    return %c0_i32, %c0_i32_0 : i32, i32
  }
  func.func @transform_4(%arg0: i32) -> (i32, i32) {
    %c0_i32 = arith.constant 0 : i32
    %c0_i32_0 = arith.constant 0 : i32
    %c0_i32_1 = arith.constant 0 : i32
    return %c0_i32, %c0_i32_0 : i32, i32
  }
  func.func @transform_5(%arg0: i32) -> (i32, i32, i32) {
    %c0_i32 = arith.constant 0 : i32
    %c0_i32_0 = arith.constant 0 : i32
    %c0_i32_1 = arith.constant 0 : i32
    return %arg0, %c0_i32, %c0_i32_0 : i32, i32, i32
  }
}

module attributes {stable_mosaic.version = 11 : i64} {
  func.func @_attention_kernel_batched(%arg0: i32, %arg1: memref<1x8x128xf32, #tpu.memory_space<vmem>>, %arg2: memref<384x128xbf16, #tpu.memory_space<vmem>>, %arg3: memref<384x1xf32, #tpu.memory_space<vmem>>, %arg4: memref<128x128xbf16, #tpu.memory_space<vmem>>, %arg5: memref<1x128xf32, #tpu.memory_space<vmem>>, %arg6: memref<1x8x128xf32, #tpu.memory_space<vmem>>) attributes {dimension_semantics = [#tpu.dimension_semantics<parallel>], iteration_bounds = array<i64: 2>, scalar_prefetch = 0 : i64, scratch_operands = 0 : i64, tpu.core_type = #tpu.core_type<tc>, window_params = [{transform_indices = @transform_0, window_bounds = array<i64: 1, 8, 128>}, {pipeline_mode = #tpu.pipeline_mode<synchronous>, transform_indices = @transform_1, window_bounds = array<i64: 384, 128>}, {pipeline_mode = #tpu.pipeline_mode<synchronous>, transform_indices = @transform_2, window_bounds = array<i64: 384, 1>}, {pipeline_mode = #tpu.pipeline_mode<synchronous>, transform_indices = @transform_3, window_bounds = array<i64: 128, 128>}, {pipeline_mode = #tpu.pipeline_mode<synchronous>, transform_indices = @transform_4, window_bounds = array<i64: 1, 128>}, {transform_indices = @transform_5, window_bounds = array<i64: 1, 8, 128>}]} {
    %c0 = arith.constant 0 : index
    %c0_0 = arith.constant 0 : index
    %c0_1 = arith.constant 0 : index
    %0 = vector.load %arg1[%c0, %c0_0, %c0_1] : memref<1x8x128xf32, #tpu.memory_space<vmem>>, vector<1x8x128xf32>
    %1 = vector.shape_cast %0 : vector<1x8x128xf32> to vector<8x128xf32>
    %2 = arith.truncf %1 : vector<8x128xf32> to vector<8x128xbf16>
    %c0_2 = arith.constant 0 : index
    %c0_3 = arith.constant 0 : index
    %3 = vector.load %arg2[%c0_2, %c0_3] : memref<384x128xbf16, #tpu.memory_space<vmem>>, vector<384x128xbf16>
    "tpu.trace_start"() <{level = 10 : i32, message = "od,sd->os"}> : () -> ()
    %cst = arith.constant dense<0.000000e+00> : vector<384x8xf32>
    %4 = tpu.matmul %3, %2, %cst {dimension_numbers = #tpu.dot_dimension_numbers<[1], [1], [0], [0], [0, 0, 1, 0], [], []>} : vector<384x128xbf16>, vector<8x128xbf16>, vector<384x8xf32> -> vector<384x8xf32>
    "tpu.trace_stop"() : () -> ()
    %c0_4 = arith.constant 0 : index
    %c0_5 = arith.constant 0 : index
    %5 = vector.load %arg3[%c0_4, %c0_5] : memref<384x1xf32, #tpu.memory_space<vmem>>, vector<384x1xf32>
    %6 = vector.broadcast %5 : vector<384x1xf32> to vector<384x8xf32>
    %7 = arith.addf %4, %6 : vector<384x8xf32>
    %8 = vector.extract_strided_slice %7 {offsets = [0, 0], sizes = [128, 8], strides = [1, 1]} : vector<384x8xf32> to vector<128x8xf32>
    %cst_6 = arith.constant 0.176776692 : f32
    %9 = vector.broadcast %cst_6 : f32 to vector<128x8xf32>
    %10 = arith.mulf %8, %9 : vector<128x8xf32>
    %11 = vector.extract_strided_slice %7 {offsets = [128, 0], sizes = [128, 8], strides = [1, 1]} : vector<384x8xf32> to vector<128x8xf32>
    %12 = vector.extract_strided_slice %7 {offsets = [256, 0], sizes = [128, 8], strides = [1, 1]} : vector<384x8xf32> to vector<128x8xf32>
    %13 = vector.shape_cast %10 : vector<128x8xf32> to vector<4x32x8xf32>
    %14 = tpu.transpose %13, [0, 2, 1] : vector<4x32x8xf32> -> vector<4x8x32xf32>
    %15 = arith.truncf %14 : vector<4x8x32xf32> to vector<4x8x32xbf16>
    %16 = vector.shape_cast %11 : vector<128x8xf32> to vector<4x32x8xf32>
    %17 = tpu.transpose %16, [0, 2, 1] : vector<4x32x8xf32> -> vector<4x8x32xf32>
    %18 = arith.truncf %17 : vector<4x8x32xf32> to vector<4x8x32xbf16>
    %19 = vector.shape_cast %12 : vector<128x8xf32> to vector<4x32x8xf32>
    %20 = arith.truncf %19 : vector<4x32x8xf32> to vector<4x32x8xbf16>
    "tpu.trace_start"() <{level = 10 : i32, message = "hqd,hkd->hqk"}> : () -> ()
    %cst_7 = arith.constant dense<0.000000e+00> : vector<4x8x8xf32>
    %21 = tpu.matmul %15, %18, %cst_7 {dimension_numbers = #tpu.dot_dimension_numbers<[2], [2], [1], [1], [0, 0, 0, 1, 1, 1], [0], [0]>} : vector<4x8x32xbf16>, vector<4x8x32xbf16>, vector<4x8x8xf32> -> vector<4x8x8xf32>
    "tpu.trace_stop"() : () -> ()
    %cst_8 = arith.constant dense<0xFF800000> : vector<4x8xf32>
    %22 = vector.multi_reduction <maximumf>, %21, %cst_8 [2] : vector<4x8x8xf32> to vector<4x8xf32>
    %23 = vector.shape_cast %22 : vector<4x8xf32> to vector<4x8x1xf32>
    %24 = vector.broadcast %23 : vector<4x8x1xf32> to vector<4x8x8xf32>
    %25 = arith.subf %21, %24 : vector<4x8x8xf32>
    %26 = math.exp %25 : vector<4x8x8xf32>
    %cst_9 = arith.constant dense<0.000000e+00> : vector<4x8xf32>
    %27 = vector.multi_reduction <add>, %26, %cst_9 [2] : vector<4x8x8xf32> to vector<4x8xf32>
    %28 = vector.shape_cast %27 : vector<4x8xf32> to vector<4x8x1xf32>
    %29 = tpu.reciprocal %28 {approx = true} : vector<4x8x1xf32> -> vector<4x8x1xf32>
    %30 = vector.broadcast %29 : vector<4x8x1xf32> to vector<4x8x8xf32>
    %31 = arith.mulf %26, %30 : vector<4x8x8xf32>
    %32 = arith.truncf %31 : vector<4x8x8xf32> to vector<4x8x8xbf16>
    "tpu.trace_start"() <{level = 10 : i32, message = "hqk,hdk->hqd"}> : () -> ()
    %cst_10 = arith.constant dense<0.000000e+00> : vector<4x8x32xf32>
    %33 = tpu.matmul %32, %20, %cst_10 {dimension_numbers = #tpu.dot_dimension_numbers<[2], [2], [1], [1], [0, 0, 0, 1, 1, 1], [0], [0]>} : vector<4x8x8xbf16>, vector<4x32x8xbf16>, vector<4x8x32xf32> -> vector<4x8x32xf32>
    "tpu.trace_stop"() : () -> ()
    %34 = tpu.transpose %33, [0, 2, 1] : vector<4x8x32xf32> -> vector<4x32x8xf32>
    %35 = vector.shape_cast %34 : vector<4x32x8xf32> to vector<128x8xf32>
    %36 = arith.truncf %35 : vector<128x8xf32> to vector<128x8xbf16>
    %c0_11 = arith.constant 0 : index
    %c0_12 = arith.constant 0 : index
    %37 = vector.load %arg4[%c0_11, %c0_12] : memref<128x128xbf16, #tpu.memory_space<vmem>>, vector<128x128xbf16>
    "tpu.trace_start"() <{level = 10 : i32, message = "dq,od->qo"}> : () -> ()
    %cst_13 = arith.constant dense<0.000000e+00> : vector<8x128xf32>
    %38 = tpu.matmul %36, %37, %cst_13 {dimension_numbers = #tpu.dot_dimension_numbers<[0], [1], [1], [0], [0, 1, 1, 0], [], []>} : vector<128x8xbf16>, vector<128x128xbf16>, vector<8x128xf32> -> vector<8x128xf32>
    "tpu.trace_stop"() : () -> ()
    %c0_14 = arith.constant 0 : index
    %c0_15 = arith.constant 0 : index
    %39 = vector.load %arg5[%c0_14, %c0_15] : memref<1x128xf32, #tpu.memory_space<vmem>>, vector<1x128xf32>
    %40 = vector.broadcast %39 : vector<1x128xf32> to vector<8x128xf32>
    %41 = arith.addf %38, %40 : vector<8x128xf32>
    %c0_16 = arith.constant 0 : index
    %c0_17 = arith.constant 0 : index
    %c0_18 = arith.constant 0 : index
    %42 = vector.load %arg6[%c0_16, %c0_17, %c0_18] : memref<1x8x128xf32, #tpu.memory_space<vmem>>, vector<1x8x128xf32>
    %43 = vector.shape_cast %42 : vector<1x8x128xf32> to vector<8x128xf32>
    %44 = vector.shape_cast %41 : vector<8x128xf32> to vector<1x8x128xf32>
    tpu.vector_store %arg6[%c0_16, %c0_17, %c0_18], %44 {strides = array<i32>} : memref<1x8x128xf32, #tpu.memory_space<vmem>>, vector<1x8x128xf32>,
    return
  }
  func.func @transform_0(%arg0: i32) -> (i32, i32, i32) {
    %c0_i32 = arith.constant 0 : i32
    %c0_i32_0 = arith.constant 0 : i32
    %c0_i32_1 = arith.constant 0 : i32
    return %arg0, %c0_i32, %c0_i32_0 : i32, i32, i32
  }
  func.func @transform_1(%arg0: i32) -> (i32, i32) {
    %c0_i32 = arith.constant 0 : i32
    %c0_i32_0 = arith.constant 0 : i32
    %c0_i32_1 = arith.constant 0 : i32
    return %c0_i32, %c0_i32_0 : i32, i32
  }
  func.func @transform_2(%arg0: i32) -> (i32, i32) {
    %c0_i32 = arith.constant 0 : i32
    %c0_i32_0 = arith.constant 0 : i32
    %c0_i32_1 = arith.constant 0 : i32
    return %c0_i32, %c0_i32_0 : i32, i32
  }
  func.func @transform_3(%arg0: i32) -> (i32, i32) {
    %c0_i32 = arith.constant 0 : i32
    %c0_i32_0 = arith.constant 0 : i32
    %c0_i32_1 = arith.constant 0 : i32
    return %c0_i32, %c0_i32_0 : i32, i32
  }
  func.func @transform_4(%arg0: i32) -> (i32, i32) {
    %c0_i32 = arith.constant 0 : i32
    %c0_i32_0 = arith.constant 0 : i32
    %c0_i32_1 = arith.constant 0 : i32
    return %c0_i32, %c0_i32_0 : i32, i32
  }
  func.func @transform_5(%arg0: i32) -> (i32, i32, i32) {
    %c0_i32 = arith.constant 0 : i32
    %c0_i32_0 = arith.constant 0 : i32
    %c0_i32_1 = arith.constant 0 : i32
    return %arg0, %c0_i32, %c0_i32_0 : i32, i32, i32
  }
}

module attributes {stable_mosaic.version = 11 : i64} {
  func.func @_attention_kernel_headloop(%arg0: i32, %arg1: memref<1x8x128xf32, #tpu.memory_space<vmem>>, %arg2: memref<128x384xbf16, #tpu.memory_space<vmem>>, %arg3: memref<1x384xf32, #tpu.memory_space<vmem>>, %arg4: memref<128x128xbf16, #tpu.memory_space<vmem>>, %arg5: memref<1x128xf32, #tpu.memory_space<vmem>>, %arg6: memref<1x8x128xf32, #tpu.memory_space<vmem>>) attributes {dimension_semantics = [#tpu.dimension_semantics<parallel>], iteration_bounds = array<i64: 2>, scalar_prefetch = 0 : i64, scratch_operands = 0 : i64, tpu.core_type = #tpu.core_type<tc>, window_params = [{transform_indices = @transform_0, window_bounds = array<i64: 1, 8, 128>}, {pipeline_mode = #tpu.pipeline_mode<synchronous>, transform_indices = @transform_1, window_bounds = array<i64: 128, 384>}, {pipeline_mode = #tpu.pipeline_mode<synchronous>, transform_indices = @transform_2, window_bounds = array<i64: 1, 384>}, {pipeline_mode = #tpu.pipeline_mode<synchronous>, transform_indices = @transform_3, window_bounds = array<i64: 128, 128>}, {pipeline_mode = #tpu.pipeline_mode<synchronous>, transform_indices = @transform_4, window_bounds = array<i64: 1, 128>}, {transform_indices = @transform_5, window_bounds = array<i64: 1, 8, 128>}]} {
    %c0 = arith.constant 0 : index
    %c0_0 = arith.constant 0 : index
    %c0_1 = arith.constant 0 : index
    %0 = vector.load %arg1[%c0, %c0_0, %c0_1] : memref<1x8x128xf32, #tpu.memory_space<vmem>>, vector<1x8x128xf32>
    %1 = vector.shape_cast %0 : vector<1x8x128xf32> to vector<8x128xf32>
    %2 = arith.truncf %1 : vector<8x128xf32> to vector<8x128xbf16>
    %c0_2 = arith.constant 0 : index
    %c0_3 = arith.constant 0 : index
    %3 = vector.load %arg2[%c0_2, %c0_3] : memref<128x384xbf16, #tpu.memory_space<vmem>>, vector<128x384xbf16>
    %cst = arith.constant dense<0.000000e+00> : vector<8x384xf32>
    %4 = tpu.matmul %2, %3, %cst {dimension_numbers = #tpu.dot_dimension_numbers<[1], [0], [0], [1], [0, 0, 1, 1], [], []>} : vector<8x128xbf16>, vector<128x384xbf16>, vector<8x384xf32> -> vector<8x384xf32>
    %c0_4 = arith.constant 0 : index
    %c0_5 = arith.constant 0 : index
    %5 = vector.load %arg3[%c0_4, %c0_5] : memref<1x384xf32, #tpu.memory_space<vmem>>, vector<1x384xf32>
    %6 = vector.broadcast %5 : vector<1x384xf32> to vector<8x384xf32>
    %7 = arith.addf %4, %6 : vector<8x384xf32>
    %8 = vector.extract_strided_slice %7 {offsets = [0, 0], sizes = [8, 128], strides = [1, 1]} : vector<8x384xf32> to vector<8x128xf32>
    %cst_6 = arith.constant 0.176776692 : f32
    %9 = vector.broadcast %cst_6 : f32 to vector<8x128xf32>
    %10 = arith.mulf %8, %9 : vector<8x128xf32>
    %11 = vector.extract_strided_slice %7 {offsets = [0, 128], sizes = [8, 128], strides = [1, 1]} : vector<8x384xf32> to vector<8x128xf32>
    %12 = vector.extract_strided_slice %7 {offsets = [0, 256], sizes = [8, 128], strides = [1, 1]} : vector<8x384xf32> to vector<8x128xf32>
    %13 = vector.extract_strided_slice %10 {offsets = [0, 0], sizes = [8, 32], strides = [1, 1]} : vector<8x128xf32> to vector<8x32xf32>
    %14 = arith.truncf %13 : vector<8x32xf32> to vector<8x32xbf16>
    %15 = vector.extract_strided_slice %11 {offsets = [0, 0], sizes = [8, 32], strides = [1, 1]} : vector<8x128xf32> to vector<8x32xf32>
    %16 = arith.truncf %15 : vector<8x32xf32> to vector<8x32xbf16>
    %17 = vector.extract_strided_slice %12 {offsets = [0, 0], sizes = [8, 32], strides = [1, 1]} : vector<8x128xf32> to vector<8x32xf32>
    %18 = arith.truncf %17 : vector<8x32xf32> to vector<8x32xbf16>
    %19 = tpu.transpose %16, [1, 0] : vector<8x32xbf16> -> vector<32x8xbf16>
    %cst_7 = arith.constant dense<0.000000e+00> : vector<8x8xf32>
    %20 = tpu.matmul %14, %19, %cst_7 {dimension_numbers = #tpu.dot_dimension_numbers<[1], [0], [0], [1], [0, 0, 1, 1], [], []>} : vector<8x32xbf16>, vector<32x8xbf16>, vector<8x8xf32> -> vector<8x8xf32>
    %cst_8 = arith.constant dense<0xFF800000> : vector<8xf32>
    %21 = vector.multi_reduction <maximumf>, %20, %cst_8 [1] : vector<8x8xf32> to vector<8xf32>
    %22 = vector.shape_cast %21 : vector<8xf32> to vector<8x1xf32>
    %23 = vector.broadcast %22 : vector<8x1xf32> to vector<8x8xf32>
    %24 = arith.subf %20, %23 : vector<8x8xf32>
    %25 = math.exp %24 : vector<8x8xf32>
    %cst_9 = arith.constant dense<0.000000e+00> : vector<8xf32>
    %26 = vector.multi_reduction <add>, %25, %cst_9 [1] : vector<8x8xf32> to vector<8xf32>
    %27 = vector.shape_cast %26 : vector<8xf32> to vector<8x1xf32>
    %28 = tpu.reciprocal %27 {approx = true} : vector<8x1xf32> -> vector<8x1xf32>
    %29 = vector.broadcast %28 : vector<8x1xf32> to vector<8x8xf32>
    %30 = arith.mulf %25, %29 : vector<8x8xf32>
    %31 = arith.truncf %30 : vector<8x8xf32> to vector<8x8xbf16>
    %cst_10 = arith.constant dense<0.000000e+00> : vector<8x32xf32>
    %32 = tpu.matmul %31, %18, %cst_10 {dimension_numbers = #tpu.dot_dimension_numbers<[1], [0], [0], [1], [0, 0, 1, 1], [], []>} : vector<8x8xbf16>, vector<8x32xbf16>, vector<8x32xf32> -> vector<8x32xf32>
    %33 = vector.extract_strided_slice %10 {offsets = [0, 32], sizes = [8, 32], strides = [1, 1]} : vector<8x128xf32> to vector<8x32xf32>
    %34 = arith.truncf %33 : vector<8x32xf32> to vector<8x32xbf16>
    %35 = vector.extract_strided_slice %11 {offsets = [0, 32], sizes = [8, 32], strides = [1, 1]} : vector<8x128xf32> to vector<8x32xf32>
    %36 = arith.truncf %35 : vector<8x32xf32> to vector<8x32xbf16>
    %37 = vector.extract_strided_slice %12 {offsets = [0, 32], sizes = [8, 32], strides = [1, 1]} : vector<8x128xf32> to vector<8x32xf32>
    %38 = arith.truncf %37 : vector<8x32xf32> to vector<8x32xbf16>
    %39 = tpu.transpose %36, [1, 0] : vector<8x32xbf16> -> vector<32x8xbf16>
    %cst_11 = arith.constant dense<0.000000e+00> : vector<8x8xf32>
    %40 = tpu.matmul %34, %39, %cst_11 {dimension_numbers = #tpu.dot_dimension_numbers<[1], [0], [0], [1], [0, 0, 1, 1], [], []>} : vector<8x32xbf16>, vector<32x8xbf16>, vector<8x8xf32> -> vector<8x8xf32>
    %cst_12 = arith.constant dense<0xFF800000> : vector<8xf32>
    %41 = vector.multi_reduction <maximumf>, %40, %cst_12 [1] : vector<8x8xf32> to vector<8xf32>
    %42 = vector.shape_cast %41 : vector<8xf32> to vector<8x1xf32>
    %43 = vector.broadcast %42 : vector<8x1xf32> to vector<8x8xf32>
    %44 = arith.subf %40, %43 : vector<8x8xf32>
    %45 = math.exp %44 : vector<8x8xf32>
    %cst_13 = arith.constant dense<0.000000e+00> : vector<8xf32>
    %46 = vector.multi_reduction <add>, %45, %cst_13 [1] : vector<8x8xf32> to vector<8xf32>
    %47 = vector.shape_cast %46 : vector<8xf32> to vector<8x1xf32>
    %48 = tpu.reciprocal %47 {approx = true} : vector<8x1xf32> -> vector<8x1xf32>
    %49 = vector.broadcast %48 : vector<8x1xf32> to vector<8x8xf32>
    %50 = arith.mulf %45, %49 : vector<8x8xf32>
    %51 = arith.truncf %50 : vector<8x8xf32> to vector<8x8xbf16>
    %cst_14 = arith.constant dense<0.000000e+00> : vector<8x32xf32>
    %52 = tpu.matmul %51, %38, %cst_14 {dimension_numbers = #tpu.dot_dimension_numbers<[1], [0], [0], [1], [0, 0, 1, 1], [], []>} : vector<8x8xbf16>, vector<8x32xbf16>, vector<8x32xf32> -> vector<8x32xf32>
    %53 = vector.extract_strided_slice %10 {offsets = [0, 64], sizes = [8, 32], strides = [1, 1]} : vector<8x128xf32> to vector<8x32xf32>
    %54 = arith.truncf %53 : vector<8x32xf32> to vector<8x32xbf16>
    %55 = vector.extract_strided_slice %11 {offsets = [0, 64], sizes = [8, 32], strides = [1, 1]} : vector<8x128xf32> to vector<8x32xf32>
    %56 = arith.truncf %55 : vector<8x32xf32> to vector<8x32xbf16>
    %57 = vector.extract_strided_slice %12 {offsets = [0, 64], sizes = [8, 32], strides = [1, 1]} : vector<8x128xf32> to vector<8x32xf32>
    %58 = arith.truncf %57 : vector<8x32xf32> to vector<8x32xbf16>
    %59 = tpu.transpose %56, [1, 0] : vector<8x32xbf16> -> vector<32x8xbf16>
    %cst_15 = arith.constant dense<0.000000e+00> : vector<8x8xf32>
    %60 = tpu.matmul %54, %59, %cst_15 {dimension_numbers = #tpu.dot_dimension_numbers<[1], [0], [0], [1], [0, 0, 1, 1], [], []>} : vector<8x32xbf16>, vector<32x8xbf16>, vector<8x8xf32> -> vector<8x8xf32>
    %cst_16 = arith.constant dense<0xFF800000> : vector<8xf32>
    %61 = vector.multi_reduction <maximumf>, %60, %cst_16 [1] : vector<8x8xf32> to vector<8xf32>
    %62 = vector.shape_cast %61 : vector<8xf32> to vector<8x1xf32>
    %63 = vector.broadcast %62 : vector<8x1xf32> to vector<8x8xf32>
    %64 = arith.subf %60, %63 : vector<8x8xf32>
    %65 = math.exp %64 : vector<8x8xf32>
    %cst_17 = arith.constant dense<0.000000e+00> : vector<8xf32>
    %66 = vector.multi_reduction <add>, %65, %cst_17 [1] : vector<8x8xf32> to vector<8xf32>
    %67 = vector.shape_cast %66 : vector<8xf32> to vector<8x1xf32>
    %68 = tpu.reciprocal %67 {approx = true} : vector<8x1xf32> -> vector<8x1xf32>
    %69 = vector.broadcast %68 : vector<8x1xf32> to vector<8x8xf32>
    %70 = arith.mulf %65, %69 : vector<8x8xf32>
    %71 = arith.truncf %70 : vector<8x8xf32> to vector<8x8xbf16>
    %cst_18 = arith.constant dense<0.000000e+00> : vector<8x32xf32>
    %72 = tpu.matmul %71, %58, %cst_18 {dimension_numbers = #tpu.dot_dimension_numbers<[1], [0], [0], [1], [0, 0, 1, 1], [], []>} : vector<8x8xbf16>, vector<8x32xbf16>, vector<8x32xf32> -> vector<8x32xf32>
    %73 = vector.extract_strided_slice %10 {offsets = [0, 96], sizes = [8, 32], strides = [1, 1]} : vector<8x128xf32> to vector<8x32xf32>
    %74 = arith.truncf %73 : vector<8x32xf32> to vector<8x32xbf16>
    %75 = vector.extract_strided_slice %11 {offsets = [0, 96], sizes = [8, 32], strides = [1, 1]} : vector<8x128xf32> to vector<8x32xf32>
    %76 = arith.truncf %75 : vector<8x32xf32> to vector<8x32xbf16>
    %77 = vector.extract_strided_slice %12 {offsets = [0, 96], sizes = [8, 32], strides = [1, 1]} : vector<8x128xf32> to vector<8x32xf32>
    %78 = arith.truncf %77 : vector<8x32xf32> to vector<8x32xbf16>
    %79 = tpu.transpose %76, [1, 0] : vector<8x32xbf16> -> vector<32x8xbf16>
    %cst_19 = arith.constant dense<0.000000e+00> : vector<8x8xf32>
    %80 = tpu.matmul %74, %79, %cst_19 {dimension_numbers = #tpu.dot_dimension_numbers<[1], [0], [0], [1], [0, 0, 1, 1], [], []>} : vector<8x32xbf16>, vector<32x8xbf16>, vector<8x8xf32> -> vector<8x8xf32>
    %cst_20 = arith.constant dense<0xFF800000> : vector<8xf32>
    %81 = vector.multi_reduction <maximumf>, %80, %cst_20 [1] : vector<8x8xf32> to vector<8xf32>
    %82 = vector.shape_cast %81 : vector<8xf32> to vector<8x1xf32>
    %83 = vector.broadcast %82 : vector<8x1xf32> to vector<8x8xf32>
    %84 = arith.subf %80, %83 : vector<8x8xf32>
    %85 = math.exp %84 : vector<8x8xf32>
    %cst_21 = arith.constant dense<0.000000e+00> : vector<8xf32>
    %86 = vector.multi_reduction <add>, %85, %cst_21 [1] : vector<8x8xf32> to vector<8xf32>
    %87 = vector.shape_cast %86 : vector<8xf32> to vector<8x1xf32>
    %88 = tpu.reciprocal %87 {approx = true} : vector<8x1xf32> -> vector<8x1xf32>
    %89 = vector.broadcast %88 : vector<8x1xf32> to vector<8x8xf32>
    %90 = arith.mulf %85, %89 : vector<8x8xf32>
    %91 = arith.truncf %90 : vector<8x8xf32> to vector<8x8xbf16>
    %cst_22 = arith.constant dense<0.000000e+00> : vector<8x32xf32>
    %92 = tpu.matmul %91, %78, %cst_22 {dimension_numbers = #tpu.dot_dimension_numbers<[1], [0], [0], [1], [0, 0, 1, 1], [], []>} : vector<8x8xbf16>, vector<8x32xbf16>, vector<8x32xf32> -> vector<8x32xf32>
    %93 = tpu.concatenate %32, %52, %72, %92 in 1 : vector<8x32xf32>, vector<8x32xf32>, vector<8x32xf32>, vector<8x32xf32> -> vector<8x128xf32>
    %94 = arith.truncf %93 : vector<8x128xf32> to vector<8x128xbf16>
    %c0_23 = arith.constant 0 : index
    %c0_24 = arith.constant 0 : index
    %95 = vector.load %arg4[%c0_23, %c0_24] : memref<128x128xbf16, #tpu.memory_space<vmem>>, vector<128x128xbf16>
    %cst_25 = arith.constant dense<0.000000e+00> : vector<8x128xf32>
    %96 = tpu.matmul %94, %95, %cst_25 {dimension_numbers = #tpu.dot_dimension_numbers<[1], [0], [0], [1], [0, 0, 1, 1], [], []>} : vector<8x128xbf16>, vector<128x128xbf16>, vector<8x128xf32> -> vector<8x128xf32>
    %c0_26 = arith.constant 0 : index
    %c0_27 = arith.constant 0 : index
    %97 = vector.load %arg5[%c0_26, %c0_27] : memref<1x128xf32, #tpu.memory_space<vmem>>, vector<1x128xf32>
    %98 = vector.broadcast %97 : vector<1x128xf32> to vector<8x128xf32>
    %99 = arith.addf %96, %98 : vector<8x128xf32>
    %c0_28 = arith.constant 0 : index
    %c0_29 = arith.constant 0 : index
    %c0_30 = arith.constant 0 : index
    %100 = vector.load %arg6[%c0_28, %c0_29, %c0_30] : memref<1x8x128xf32, #tpu.memory_space<vmem>>, vector<1x8x128xf32>
    %101 = vector.shape_cast %100 : vector<1x8x128xf32> to vector<8x128xf32>
    %102 = vector.shape_cast %99 : vector<8x128xf32> to vector<1x8x128xf32>
    tpu.vector_store %arg6[%c0_28, %c0_29, %c0_30], %102 {strides = array<i32>} : memref<1x8x128xf32, #tpu.memory_space<vmem>>, vector<1x8x128xf32>,
    return
  }
  func.func @transform_0(%arg0: i32) -> (i32, i32, i32) {
    %c0_i32 = arith.constant 0 : i32
    %c0_i32_0 = arith.constant 0 : i32
    %c0_i32_1 = arith.constant 0 : i32
    return %arg0, %c0_i32, %c0_i32_0 : i32, i32, i32
  }
  func.func @transform_1(%arg0: i32) -> (i32, i32) {
    %c0_i32 = arith.constant 0 : i32
    %c0_i32_0 = arith.constant 0 : i32
    %c0_i32_1 = arith.constant 0 : i32
    return %c0_i32, %c0_i32_0 : i32, i32
  }
  func.func @transform_2(%arg0: i32) -> (i32, i32) {
    %c0_i32 = arith.constant 0 : i32
    %c0_i32_0 = arith.constant 0 : i32
    %c0_i32_1 = arith.constant 0 : i32
    return %c0_i32, %c0_i32_0 : i32, i32
  }
  func.func @transform_3(%arg0: i32) -> (i32, i32) {
    %c0_i32 = arith.constant 0 : i32
    %c0_i32_0 = arith.constant 0 : i32
    %c0_i32_1 = arith.constant 0 : i32
    return %c0_i32, %c0_i32_0 : i32, i32
  }
  func.func @transform_4(%arg0: i32) -> (i32, i32) {
    %c0_i32 = arith.constant 0 : i32
    %c0_i32_0 = arith.constant 0 : i32
    %c0_i32_1 = arith.constant 0 : i32
    return %c0_i32, %c0_i32_0 : i32, i32
  }
  func.func @transform_5(%arg0: i32) -> (i32, i32, i32) {
    %c0_i32 = arith.constant 0 : i32
    %c0_i32_0 = arith.constant 0 : i32
    %c0_i32_1 = arith.constant 0 : i32
    return %arg0, %c0_i32, %c0_i32_0 : i32, i32, i32
  }
}

</mosaic_0001>

<llo_original>
// kernel: tpu_custom_call.1
$region0: #{tpu_custom_call.1}
  #allocation0 [shape = 'u32[]', space=smem, size = 0x4, offset = 0x4, fixed_abs, tag = 'smem constant byte address 0x4 - core index']
  #allocation1 [shape = 'u32[72,128]{1,0:T(1,128)}', space=vmem, size = 0x9000, scoped, tag = 'internal scratch']
  %s0 = inlined_call_operand.vmem [shape: f32[2,8,128], index: 0, kind: input, shape index: {}]
  %s1 = inlined_call_operand.vmem [shape: bf16[384,128], index: 1, kind: input, shape index: {}]
  %s2 = inlined_call_operand.vmem [shape: f32[384,1], index: 2, kind: input, shape index: {}]
  %s3 = inlined_call_operand.vmem [shape: bf16[128,128], index: 3, kind: input, shape index: {}]
  %s4 = inlined_call_operand.vmem [shape: f32[1,128], index: 4, kind: input, shape index: {}]
  %s5 = inlined_call_operand.hbm [shape: f32[2,8,128], index: 5, kind: output, shape index: {}]
  %s6 = sld [smem:[#allocation0]]
  $region53: #{tpu_custom_call.1} parent=0
    _
  %s8 = ssub.s32 1, %s6
  %s9 = scalar_select 0, %s8, %s6
  $region1: #{tpu_custom_call.1} parent=0
    #allocation2 [shape = 'u8[8192]{0}', space=vmem, size = 0x2000, scoped, tag = 'output window, operand 0']
    #allocation3 [shape = 's32[2]{0}', space=sflag, size = 0x8, scoped, tag = 'scoped memory for tpu_custom_call.1']
    %10 = vsyncpa [#allocation3], 0
    %s11 = scalar_lea.sflag [#allocation3], 1
    %12 = vsyncpa %s11, 0
    loop: start=0, step=1, limit=4
    $region2: #{tpu_custom_call.1} parent=1 // loop_pre_header
      _
    $region3: #{tpu_custom_call.1} parent=1 // loop_header
      %s14 = sphi 0, %s18
      %p15 = scmp.ge.s32.totalorder %s14, 4
      %s24 = sphi 0, %s26
      %s27 = sphi 0, %s24
      %s28 = sphi 0, %s27
      %s44 = sphi 0, %s28
      %s48 = sphi 0, %s48
      %s50 = sphi 0, %s48
      %s51 = sphi 0, %s50
      %s65 = sphi 0, %s51
      %s69 = sphi 0, %s69
      %s71 = sphi 0, %s69
      %s72 = sphi 0, %s71
      %s86 = sphi 0, %s72
      %s90 = sphi 0, %s90
      %s92 = sphi 0, %s90
      %s93 = sphi 0, %s92
      %s107 = sphi 0, %s93
      %s111 = sphi 0, %s111
      %s113 = sphi 0, %s111
      %s114 = sphi 0, %s113
      %s128 = sphi 0, %s114
      %s134 = sphi 0, %s136
      %s137 = sphi 0, %s134
      %s138 = sphi 0, %s137
      %s154 = sphi 0, %s138
    $region4: #{tpu_custom_call.1} parent=1 // loop_header_branch
      %17 = sbr.rel (%p15) target = $region8
    $region5: #{tpu_custom_call.1} parent=1 // loop_body
      %s19 = ssub.s32 %s14, 1
      %s20 = ssub.s32 %s14, 2
      %s21 = sadd.s32 %s14, 1
      %s22 = ssub.s32 %s14, %s21
      %p23 = scmp.eq.s32.totalorder %s22, 0
      %s25 = sadd.s32 %s24, 1
      %s26 = scalar_select %p23, %s24, %s25
      %p29 = pneg %p23
      %p30 = scmp.eq.s32.totalorder %s14, 1
      %p31 = por %p29, %p30
      %p32 = scmp.ne.s32.totalorder %s24, %s27
      %p33 = scmp.eq.s32.totalorder %s14, 0
      %p34 = por %p32, %p33
      %p35 = scmp.ne.s32.totalorder %s24, %s27
      %p36 = scmp.eq.s32.totalorder %s19, 1
      %p37 = por %p35, %p36
      %p38 = scmp.ne.s32.totalorder %s27, %s28
      %p39 = scmp.eq.s32.totalorder %s19, 0
      %p40 = por %p38, %p39
      %p41 = scmp.ne.s32.totalorder %s27, %s28
      %p42 = scmp.eq.s32.totalorder %s20, 1
      %p43 = por %p41, %p42
      %p45 = scmp.ne.s32.totalorder %s28, %s44
      %p46 = scmp.eq.s32.totalorder %s20, 0
      %p47 = por %p45, %p46
      %s49 = sadd.s32 %s48, 1
      %p52 = scmp.eq.s32.totalorder %s14, 1
      %p53 = scmp.ne.s32.totalorder %s48, %s50
      %p54 = scmp.eq.s32.totalorder %s14, 0
      %p55 = por %p53, %p54
      %p56 = scmp.ne.s32.totalorder %s48, %s50
      %p57 = scmp.eq.s32.totalorder %s19, 1
      %p58 = por %p56, %p57
      %p59 = scmp.ne.s32.totalorder %s50, %s51
      %p60 = scmp.eq.s32.totalorder %s19, 0
      %p61 = por %p59, %p60
      %p62 = scmp.ne.s32.totalorder %s50, %s51
      %p63 = scmp.eq.s32.totalorder %s20, 1
      %p64 = por %p62, %p63
      %p66 = scmp.ne.s32.totalorder %s51, %s65
      %p67 = scmp.eq.s32.totalorder %s20, 0
      %p68 = por %p66, %p67
      %s70 = sadd.s32 %s69, 1
      %p73 = scmp.eq.s32.totalorder %s14, 1
      %p74 = scmp.ne.s32.totalorder %s69, %s71
      %p75 = scmp.eq.s32.totalorder %s14, 0
      %p76 = por %p74, %p75
      %p77 = scmp.ne.s32.totalorder %s69, %s71
      %p78 = scmp.eq.s32.totalorder %s19, 1
      %p79 = por %p77, %p78
      %p80 = scmp.ne.s32.totalorder %s71, %s72
      %p81 = scmp.eq.s32.totalorder %s19, 0
      %p82 = por %p80, %p81
      %p83 = scmp.ne.s32.totalorder %s71, %s72
      %p84 = scmp.eq.s32.totalorder %s20, 1
      %p85 = por %p83, %p84
      %p87 = scmp.ne.s32.totalorder %s72, %s86
      %p88 = scmp.eq.s32.totalorder %s20, 0
      %p89 = por %p87, %p88
      %s91 = sadd.s32 %s90, 1
      %p94 = scmp.eq.s32.totalorder %s14, 1
      %p95 = scmp.ne.s32.totalorder %s90, %s92
      %p96 = scmp.eq.s32.totalorder %s14, 0
      %p97 = por %p95, %p96
      %p98 = scmp.ne.s32.totalorder %s90, %s92
      %p99 = scmp.eq.s32.totalorder %s19, 1
      %p100 = por %p98, %p99
      %p101 = scmp.ne.s32.totalorder %s92, %s93
      %p102 = scmp.eq.s32.totalorder %s19, 0
      %p103 = por %p101, %p102
      %p104 = scmp.ne.s32.totalorder %s92, %s93
      %p105 = scmp.eq.s32.totalorder %s20, 1
      %p106 = por %p104, %p105
      %p108 = scmp.ne.s32.totalorder %s93, %s107
      %p109 = scmp.eq.s32.totalorder %s20, 0
      %p110 = por %p108, %p109
      %s112 = sadd.s32 %s111, 1
      %p115 = scmp.eq.s32.totalorder %s14, 1
      %p116 = scmp.ne.s32.totalorder %s111, %s113
      %p117 = scmp.eq.s32.totalorder %s14, 0
      %p118 = por %p116, %p117
      %p119 = scmp.ne.s32.totalorder %s111, %s113
      %p120 = scmp.eq.s32.totalorder %s19, 1
      %p121 = por %p119, %p120
      %p122 = scmp.ne.s32.totalorder %s113, %s114
      %p123 = scmp.eq.s32.totalorder %s19, 0
      %p124 = por %p122, %p123
      %p125 = scmp.ne.s32.totalorder %s113, %s114
      %p126 = scmp.eq.s32.totalorder %s20, 1
      %p127 = por %p125, %p126
      %p129 = scmp.ne.s32.totalorder %s114, %s128
      %p130 = scmp.eq.s32.totalorder %s20, 0
      %p131 = por %p129, %p130
      %s132 = ssub.s32 %s14, %s21
      %p133 = scmp.eq.s32.totalorder %s132, 0
      %s135 = sadd.s32 %s134, 1
      %s136 = scalar_select %p133, %s134, %s135
      %p139 = pneg %p133
      %p140 = scmp.eq.s32.totalorder %s14, 1
      %p141 = por %p139, %p140
      %p142 = scmp.ne.s32.totalorder %s134, %s137
      %p143 = scmp.eq.s32.totalorder %s14, 0
      %p144 = por %p142, %p143
      %p145 = scmp.ne.s32.totalorder %s134, %s137
      %p146 = scmp.eq.s32.totalorder %s19, 1
      %p147 = por %p145, %p146
      %p148 = scmp.ne.s32.totalorder %s137, %s138
      %p149 = scmp.eq.s32.totalorder %s19, 0
      %p150 = por %p148, %p149
      %p151 = scmp.ne.s32.totalorder %s137, %s138
      %p152 = scmp.eq.s32.totalorder %s20, 1
      %p153 = por %p151, %p152
      %p155 = scmp.ne.s32.totalorder %s138, %s154
      %p156 = scmp.eq.s32.totalorder %s20, 0
      %p157 = por %p155, %p156
      %p158 = scmp.le.s32.totalorder 1, %s14
      %p159 = scmp.lt.s32.totalorder %s14, 3
      %p160 = pnand %p158, %p159
      %p161 = pneg %p160
      // Predicated region
      $region9: #{tpu_custom_call.1} parent=5 // pred_check
        _
      $region10: #{tpu_custom_call.1} parent=5 // pred_check_branch
        %163 = sbr.rel (%p160) target = $region12
      $region11: #{tpu_custom_call.1} parent=5 // pred_region
        %s164 = ssub.s32 %s14, 1
        // Predicated region
        $region13: #{tpu_custom_call.1} parent=11 // pred_check
          %p165 = pneg %p61
        $region14: #{tpu_custom_call.1} parent=11 // pred_check_branch
          %167 = sbr.rel (%p165) target = $region16
        $region15: #{tpu_custom_call.1} parent=11 // pred_region
          _
        $region16: #{tpu_custom_call.1} parent=11 // pred_fallthru
          _
        // Predicated region
        $region17: #{tpu_custom_call.1} parent=11 // pred_check
          %p168 = pneg %p82
        $region18: #{tpu_custom_call.1} parent=11 // pred_check_branch
          %170 = sbr.rel (%p168) target = $region20
        $region19: #{tpu_custom_call.1} parent=11 // pred_region
          _
        $region20: #{tpu_custom_call.1} parent=11 // pred_fallthru
          _
        // Predicated region
        $region21: #{tpu_custom_call.1} parent=11 // pred_check
          %p171 = pneg %p103
        $region22: #{tpu_custom_call.1} parent=11 // pred_check_branch
          %173 = sbr.rel (%p171) target = $region24
        $region23: #{tpu_custom_call.1} parent=11 // pred_region
          _
        $region24: #{tpu_custom_call.1} parent=11 // pred_fallthru
          _
        // Predicated region
        $region25: #{tpu_custom_call.1} parent=11 // pred_check
          %p174 = pneg %p124
        $region26: #{tpu_custom_call.1} parent=11 // pred_check_branch
          %176 = sbr.rel (%p174) target = $region28
        $region27: #{tpu_custom_call.1} parent=11 // pred_region
          _
        $region28: #{tpu_custom_call.1} parent=11 // pred_fallthru
          _
      $region12: #{tpu_custom_call.1} parent=5 // pred_fallthru
        _
      %p177 = scmp.lt.s32.totalorder %s14, 2
      // Predicated region
      $region29: #{tpu_custom_call.1} parent=5 // pred_check
        %p178 = pneg %p177
      $region30: #{tpu_custom_call.1} parent=5 // pred_check_branch
        %180 = sbr.rel (%p178) target = $region32
      $region31: #{tpu_custom_call.1} parent=5 // pred_region
        // Predicated region
        $region33: #{tpu_custom_call.1} parent=31 // pred_check
          %p181 = pneg %p34
        $region34: #{tpu_custom_call.1} parent=31 // pred_check_branch
          %183 = sbr.rel (%p181) target = $region36
        $region35: #{tpu_custom_call.1} parent=31 // pred_region
          %p184 = scmp.lt.s32.totalorder %s14, 1
          %s185 = scalar_select %p184, %s14, 1
          %s186 = smul.addr %s185, 8
          %s187 = scalar_lea.vmem %s0, %s186
        $region36: #{tpu_custom_call.1} parent=31 // pred_fallthru
          _
      $region32: #{tpu_custom_call.1} parent=5 // pred_fallthru
        _
      %p188 = scmp.le.s32.totalorder 1, %s14
      %p189 = scmp.lt.s32.totalorder %s14, 3
      %p190 = pnand %p188, %p189
      %p191 = pneg %p190
      // Predicated region
      $region37: #{tpu_custom_call.1} parent=5 // pred_check
        _
      $region38: #{tpu_custom_call.1} parent=5 // pred_check_branch
        %193 = sbr.rel (%p190) target = $region40
      $region39: #{tpu_custom_call.1} parent=5 // pred_region
        %s194 = ssub.s32 %s14, 1
        %p195 = scmp.lt.s32.totalorder %s19, 1
        %s196 = scalar_select %p195, %s19, 1
        %s197 = smul.addr %s196, 8
        %s198 = scalar_lea.vmem %s0, %s197
        %p199 = pneg %p40
        %p200 = pneg %p37
        %p201 = pneg %p61
        %p202 = pneg %p58
        %p203 = pneg %p82
        %p204 = pneg %p79
        %p205 = pneg %p103
        %p206 = pneg %p100
        %p207 = pneg %p124
        %p208 = pneg %p121
        %p209 = pneg %p150
        %p210 = pneg %p147
        %s211 = sand.u32 %s137, 1
        %s212 = scalar_lea.sflag [#allocation3], %s211
        %s213 = sand.u32 %s137, 1
        %s214 = smul.addr %s213, 8
        %s215 = scalar_lea.vmem [#allocation2], %s214
        %p216 = scmp.lt.s32.totalorder %s19, 1
        %s217 = scalar_select %p216, %s19, 1
        %s218 = smul.addr %s217, 8
        %s219 = scalar_lea.vmem %s0, %s218
        %v221 = vld [vmem:[%s219] sm:$0xff]
        %v222 = vpack.c.bf16 %v221, %v221
        %v223 = vld [vmem:[%s1] sm:$0xf]
        %v224 = vld [vmem:[%s1 + $0x4] sm:$0xf]
        %v225 = vld [vmem:[%s1 + $0x8] sm:$0xf]
        %v226 = vld [vmem:[%s1 + $0xc] sm:$0xf]
        %v227 = vld [vmem:[%s1 + $0x10] sm:$0xf]
        %v228 = vld [vmem:[%s1 + $0x14] sm:$0xf]
        %v229 = vld [vmem:[%s1 + $0x18] sm:$0xf]
        %v230 = vld [vmem:[%s1 + $0x1c] sm:$0xf]
        %v231 = vld [vmem:[%s1 + $0x20] sm:$0xf]
        %v232 = vld [vmem:[%s1 + $0x24] sm:$0xf]
        %v233 = vld [vmem:[%s1 + $0x28] sm:$0xf]
        %v234 = vld [vmem:[%s1 + $0x2c] sm:$0xf]
        %v235 = vld [vmem:[%s1 + $0x30] sm:$0xf]
        %v236 = vld [vmem:[%s1 + $0x34] sm:$0xf]
        %v237 = vld [vmem:[%s1 + $0x38] sm:$0xf]
        %v238 = vld [vmem:[%s1 + $0x3c] sm:$0xf]
        %v239 = vld [vmem:[%s1 + $0x40] sm:$0xf]
        %v240 = vld [vmem:[%s1 + $0x44] sm:$0xf]
        %v241 = vld [vmem:[%s1 + $0x48] sm:$0xf]
        %v242 = vld [vmem:[%s1 + $0x4c] sm:$0xf]
        %v243 = vld [vmem:[%s1 + $0x50] sm:$0xf]
        %v244 = vld [vmem:[%s1 + $0x54] sm:$0xf]
        %v245 = vld [vmem:[%s1 + $0x58] sm:$0xf]
        %v246 = vld [vmem:[%s1 + $0x5c] sm:$0xf]
        %v247 = vld [vmem:[%s1 + $0x60] sm:$0xf]
        %v248 = vld [vmem:[%s1 + $0x64] sm:$0xf]
        %v249 = vld [vmem:[%s1 + $0x68] sm:$0xf]
        %v250 = vld [vmem:[%s1 + $0x6c] sm:$0xf]
        %v251 = vld [vmem:[%s1 + $0x70] sm:$0xf]
        %v252 = vld [vmem:[%s1 + $0x74] sm:$0xf]
        %v253 = vld [vmem:[%s1 + $0x78] sm:$0xf]
        %v254 = vld [vmem:[%s1 + $0x7c] sm:$0xf]
        %v255 = vld [vmem:[%s1 + $0x80] sm:$0xf]
        %v256 = vld [vmem:[%s1 + $0x84] sm:$0xf]
        %v257 = vld [vmem:[%s1 + $0x88] sm:$0xf]
        %v258 = vld [vmem:[%s1 + $0x8c] sm:$0xf]
        %v259 = vld [vmem:[%s1 + $0x90] sm:$0xf]
        %v260 = vld [vmem:[%s1 + $0x94] sm:$0xf]
        %v261 = vld [vmem:[%s1 + $0x98] sm:$0xf]
        %v262 = vld [vmem:[%s1 + $0x9c] sm:$0xf]
        %v263 = vld [vmem:[%s1 + $0xa0] sm:$0xf]
        %v264 = vld [vmem:[%s1 + $0xa4] sm:$0xf]
        %v265 = vld [vmem:[%s1 + $0xa8] sm:$0xf]
        %v266 = vld [vmem:[%s1 + $0xac] sm:$0xf]
        %v267 = vld [vmem:[%s1 + $0xb0] sm:$0xf]
        %v268 = vld [vmem:[%s1 + $0xb4] sm:$0xf]
        %v269 = vld [vmem:[%s1 + $0xb8] sm:$0xf]
        %v270 = vld [vmem:[%s1 + $0xbc] sm:$0xf]
        %v271 = vld [vmem:[%s2] sm:$0xff]
        %v272 = vld [vmem:[%s2 + $0x8] sm:$0xff]
        %v273 = vld [vmem:[%s2 + $0x10] sm:$0xff]
        %v274 = vld [vmem:[%s2 + $0x18] sm:$0xff]
        %v275 = vld [vmem:[%s2 + $0x20] sm:$0xff]
        %v276 = vld [vmem:[%s2 + $0x28] sm:$0xff]
        %v277 = vld [vmem:[%s2 + $0x30] sm:$0xff]
        %v278 = vld [vmem:[%s2 + $0x38] sm:$0xff]
        %v279 = vld [vmem:[%s2 + $0x40] sm:$0xff]
        %v280 = vld [vmem:[%s2 + $0x48] sm:$0xff]
        %v281 = vld [vmem:[%s2 + $0x50] sm:$0xff]
        %v282 = vld [vmem:[%s2 + $0x58] sm:$0xff]
        %v283 = vld [vmem:[%s2 + $0x60] sm:$0xff]
        %v284 = vld [vmem:[%s2 + $0x68] sm:$0xff]
        %v285 = vld [vmem:[%s2 + $0x70] sm:$0xff]
        %v286 = vld [vmem:[%s2 + $0x78] sm:$0xff]
        %v287 = vld [vmem:[%s2 + $0x80] sm:$0xff]
        %v288 = vld [vmem:[%s2 + $0x88] sm:$0xff]
        %v289 = vld [vmem:[%s2 + $0x90] sm:$0xff]
        %v290 = vld [vmem:[%s2 + $0x98] sm:$0xff]
        %v291 = vld [vmem:[%s2 + $0xa0] sm:$0xff]
        %v292 = vld [vmem:[%s2 + $0xa8] sm:$0xff]
        %v293 = vld [vmem:[%s2 + $0xb0] sm:$0xff]
        %v294 = vld [vmem:[%s2 + $0xb8] sm:$0xff]
        %v295 = vld [vmem:[%s2 + $0xc0] sm:$0xff]
        %v296 = vld [vmem:[%s2 + $0xc8] sm:$0xff]
        %v297 = vld [vmem:[%s2 + $0xd0] sm:$0xff]
        %v298 = vld [vmem:[%s2 + $0xd8] sm:$0xff]
        %v299 = vld [vmem:[%s2 + $0xe0] sm:$0xff]
        %v300 = vld [vmem:[%s2 + $0xe8] sm:$0xff]
        %v301 = vld [vmem:[%s2 + $0xf0] sm:$0xff]
        %v302 = vld [vmem:[%s2 + $0xf8] sm:$0xff]
        %v303 = vld [vmem:[%s2 + $0x100] sm:$0xff]
        %v304 = vld [vmem:[%s2 + $0x108] sm:$0xff]
        %v305 = vld [vmem:[%s2 + $0x110] sm:$0xff]
        %v306 = vld [vmem:[%s2 + $0x118] sm:$0xff]
        %v307 = vld [vmem:[%s2 + $0x120] sm:$0xff]
        %v308 = vld [vmem:[%s2 + $0x128] sm:$0xff]
        %v309 = vld [vmem:[%s2 + $0x130] sm:$0xff]
        %v310 = vld [vmem:[%s2 + $0x138] sm:$0xff]
        %v311 = vld [vmem:[%s2 + $0x140] sm:$0xff]
        %v312 = vld [vmem:[%s2 + $0x148] sm:$0xff]
        %v313 = vld [vmem:[%s2 + $0x150] sm:$0xff]
        %v314 = vld [vmem:[%s2 + $0x158] sm:$0xff]
        %v315 = vld [vmem:[%s2 + $0x160] sm:$0xff]
        %v316 = vld [vmem:[%s2 + $0x168] sm:$0xff]
        %v317 = vld [vmem:[%s2 + $0x170] sm:$0xff]
        %v318 = vld [vmem:[%s2 + $0x178] sm:$0xff]
        %320 = vset.pattern.permute.xlu0 0
        %321 = vperm.xlu0 %320, %v271
        %v322 = vpop.permute.xlu0 %321
        %325 = vset.pattern.permute.xlu0 0
        %326 = vperm.xlu0 %325, %v272
        %v327 = vpop.permute.xlu0 %326
        %330 = vset.pattern.permute.xlu0 0
        %331 = vperm.xlu0 %330, %v273
        %v332 = vpop.permute.xlu0 %331
        %335 = vset.pattern.permute.xlu0 0
        %336 = vperm.xlu0 %335, %v274
        %v337 = vpop.permute.xlu0 %336
        %340 = vset.pattern.permute.xlu0 0
        %341 = vperm.xlu0 %340, %v275
        %v342 = vpop.permute.xlu0 %341
        %345 = vset.pattern.permute.xlu0 0
        %346 = vperm.xlu0 %345, %v276
        %v347 = vpop.permute.xlu0 %346
        %350 = vset.pattern.permute.xlu0 0
        %351 = vperm.xlu0 %350, %v277
        %v352 = vpop.permute.xlu0 %351
        %355 = vset.pattern.permute.xlu0 0
        %356 = vperm.xlu0 %355, %v278
        %v357 = vpop.permute.xlu0 %356
        %360 = vset.pattern.permute.xlu0 0
        %361 = vperm.xlu0 %360, %v279
        %v362 = vpop.permute.xlu0 %361
        %365 = vset.pattern.permute.xlu0 0
        %366 = vperm.xlu0 %365, %v280
        %v367 = vpop.permute.xlu0 %366
        %370 = vset.pattern.permute.xlu0 0
        %371 = vperm.xlu0 %370, %v281
        %v372 = vpop.permute.xlu0 %371
        %375 = vset.pattern.permute.xlu0 0
        %376 = vperm.xlu0 %375, %v282
        %v377 = vpop.permute.xlu0 %376
        %380 = vset.pattern.permute.xlu0 0
        %381 = vperm.xlu0 %380, %v283
        %v382 = vpop.permute.xlu0 %381
        %385 = vset.pattern.permute.xlu0 0
        %386 = vperm.xlu0 %385, %v284
        %v387 = vpop.permute.xlu0 %386
        %390 = vset.pattern.permute.xlu0 0
        %391 = vperm.xlu0 %390, %v285
        %v392 = vpop.permute.xlu0 %391
        %395 = vset.pattern.permute.xlu0 0
        %396 = vperm.xlu0 %395, %v286
        %v397 = vpop.permute.xlu0 %396
        %400 = vset.pattern.permute.xlu0 0
        %401 = vperm.xlu0 %400, %v287
        %v402 = vpop.permute.xlu0 %401
        %405 = vset.pattern.permute.xlu0 0
        %406 = vperm.xlu0 %405, %v288
        %v407 = vpop.permute.xlu0 %406
        %410 = vset.pattern.permute.xlu0 0
        %411 = vperm.xlu0 %410, %v289
        %v412 = vpop.permute.xlu0 %411
        %415 = vset.pattern.permute.xlu0 0
        %416 = vperm.xlu0 %415, %v290
        %v417 = vpop.permute.xlu0 %416
        %420 = vset.pattern.permute.xlu0 0
        %421 = vperm.xlu0 %420, %v291
        %v422 = vpop.permute.xlu0 %421
        %425 = vset.pattern.permute.xlu0 0
        %426 = vperm.xlu0 %425, %v292
        %v427 = vpop.permute.xlu0 %426
        %430 = vset.pattern.permute.xlu0 0
        %431 = vperm.xlu0 %430, %v293
        %v432 = vpop.permute.xlu0 %431
        %435 = vset.pattern.permute.xlu0 0
        %436 = vperm.xlu0 %435, %v294
        %v437 = vpop.permute.xlu0 %436
        %440 = vset.pattern.permute.xlu0 0
        %441 = vperm.xlu0 %440, %v295
        %v442 = vpop.permute.xlu0 %441
        %445 = vset.pattern.permute.xlu0 0
        %446 = vperm.xlu0 %445, %v296
        %v447 = vpop.permute.xlu0 %446
        %450 = vset.pattern.permute.xlu0 0
        %451 = vperm.xlu0 %450, %v297
        %v452 = vpop.permute.xlu0 %451
        %455 = vset.pattern.permute.xlu0 0
        %456 = vperm.xlu0 %455, %v298
        %v457 = vpop.permute.xlu0 %456
        %460 = vset.pattern.permute.xlu0 0
        %461 = vperm.xlu0 %460, %v299
        %v462 = vpop.permute.xlu0 %461
        %465 = vset.pattern.permute.xlu0 0
        %466 = vperm.xlu0 %465, %v300
        %v467 = vpop.permute.xlu0 %466
        %470 = vset.pattern.permute.xlu0 0
        %471 = vperm.xlu0 %470, %v301
        %v472 = vpop.permute.xlu0 %471
        %475 = vset.pattern.permute.xlu0 0
        %476 = vperm.xlu0 %475, %v302
        %v477 = vpop.permute.xlu0 %476
        %480 = vset.pattern.permute.xlu0 0
        %481 = vperm.xlu0 %480, %v303
        %v482 = vpop.permute.xlu0 %481
        %485 = vset.pattern.permute.xlu0 0
        %486 = vperm.xlu0 %485, %v304
        %v487 = vpop.permute.xlu0 %486
        %490 = vset.pattern.permute.xlu0 0
        %491 = vperm.xlu0 %490, %v305
        %v492 = vpop.permute.xlu0 %491
        %495 = vset.pattern.permute.xlu0 0
        %496 = vperm.xlu0 %495, %v306
        %v497 = vpop.permute.xlu0 %496
        %500 = vset.pattern.permute.xlu0 0
        %501 = vperm.xlu0 %500, %v307
        %v502 = vpop.permute.xlu0 %501
        %505 = vset.pattern.permute.xlu0 0
        %506 = vperm.xlu0 %505, %v308
        %v507 = vpop.permute.xlu0 %506
        %510 = vset.pattern.permute.xlu0 0
        %511 = vperm.xlu0 %510, %v309
        %v512 = vpop.permute.xlu0 %511
        %515 = vset.pattern.permute.xlu0 0
        %516 = vperm.xlu0 %515, %v310
        %v517 = vpop.permute.xlu0 %516
        %520 = vset.pattern.permute.xlu0 0
        %521 = vperm.xlu0 %520, %v311
        %v522 = vpop.permute.xlu0 %521
        %525 = vset.pattern.permute.xlu0 0
        %526 = vperm.xlu0 %525, %v312
        %v527 = vpop.permute.xlu0 %526
        %530 = vset.pattern.permute.xlu0 0
        %531 = vperm.xlu0 %530, %v313
        %v532 = vpop.permute.xlu0 %531
        %535 = vset.pattern.permute.xlu0 0
        %536 = vperm.xlu0 %535, %v314
        %v537 = vpop.permute.xlu0 %536
        %540 = vset.pattern.permute.xlu0 0
        %541 = vperm.xlu0 %540, %v315
        %v542 = vpop.permute.xlu0 %541
        %545 = vset.pattern.permute.xlu0 0
        %546 = vperm.xlu0 %545, %v316
        %v547 = vpop.permute.xlu0 %546
        %550 = vset.pattern.permute.xlu0 0
        %551 = vperm.xlu0 %550, %v317
        %v552 = vpop.permute.xlu0 %551
        %555 = vset.pattern.permute.xlu0 0
        %556 = vperm.xlu0 %555, %v318
        %v557 = vpop.permute.xlu0 %556
        %v607 = vunpack.c.l.b16 %v223
        %v608 = vunpack.c.l.b16 %v224
        %v609 = vunpack.c.l.b16 %v225
        %v610 = vunpack.c.l.b16 %v226
        %v611 = vunpack.c.l.b16 %v227
        %v612 = vunpack.c.l.b16 %v228
        %v613 = vunpack.c.l.b16 %v229
        %v614 = vunpack.c.l.b16 %v230
        %v615 = vunpack.c.l.b16 %v231
        %v616 = vunpack.c.l.b16 %v232
        %v617 = vunpack.c.l.b16 %v233
        %v618 = vunpack.c.l.b16 %v234
        %v619 = vunpack.c.l.b16 %v235
        %v620 = vunpack.c.l.b16 %v236
        %v621 = vunpack.c.l.b16 %v237
        %v622 = vunpack.c.l.b16 %v238
        %v623 = vunpack.c.l.b16 %v239
        %v624 = vunpack.c.l.b16 %v240
        %v625 = vunpack.c.l.b16 %v241
        %v626 = vunpack.c.l.b16 %v242
        %v627 = vunpack.c.l.b16 %v243
        %v628 = vunpack.c.l.b16 %v244
        %v629 = vunpack.c.l.b16 %v245
        %v630 = vunpack.c.l.b16 %v246
        %v631 = vunpack.c.l.b16 %v247
        %v632 = vunpack.c.l.b16 %v248
        %v633 = vunpack.c.l.b16 %v249
        %v634 = vunpack.c.l.b16 %v250
        %v635 = vunpack.c.l.b16 %v251
        %v636 = vunpack.c.l.b16 %v252
        %v637 = vunpack.c.l.b16 %v253
        %v638 = vunpack.c.l.b16 %v254
        %v639 = vunpack.c.l.b16 %v255
        %v640 = vunpack.c.l.b16 %v256
        %v641 = vunpack.c.l.b16 %v257
        %v642 = vunpack.c.l.b16 %v258
        %v643 = vunpack.c.l.b16 %v259
        %v644 = vunpack.c.l.b16 %v260
        %v645 = vunpack.c.l.b16 %v261
        %v646 = vunpack.c.l.b16 %v262
        %v647 = vunpack.c.l.b16 %v263
        %v648 = vunpack.c.l.b16 %v264
        %v649 = vunpack.c.l.b16 %v265
        %v650 = vunpack.c.l.b16 %v266
        %v651 = vunpack.c.l.b16 %v267
        %v652 = vunpack.c.l.b16 %v268
        %v653 = vunpack.c.l.b16 %v269
        %v654 = vunpack.c.l.b16 %v270
        %v655 = vpack.c.b16 %v608, %v607
        %v656 = vpack.c.b16 %v610, %v609
        %v657 = vpack.c.b16 %v612, %v611
        %v658 = vpack.c.b16 %v614, %v613
        %v659 = vpack.c.b16 %v616, %v615
        %v660 = vpack.c.b16 %v618, %v617
        %v661 = vpack.c.b16 %v620, %v619
        %v662 = vpack.c.b16 %v622, %v621
        %v663 = vpack.c.b16 %v624, %v623
        %v664 = vpack.c.b16 %v626, %v625
        %v665 = vpack.c.b16 %v628, %v627
        %v666 = vpack.c.b16 %v630, %v629
        %v667 = vpack.c.b16 %v632, %v631
        %v668 = vpack.c.b16 %v634, %v633
        %v669 = vpack.c.b16 %v636, %v635
        %v670 = vpack.c.b16 %v638, %v637
        %v671 = vpack.c.b16 %v640, %v639
        %v672 = vpack.c.b16 %v642, %v641
        %v673 = vpack.c.b16 %v644, %v643
        %v674 = vpack.c.b16 %v646, %v645
        %v675 = vpack.c.b16 %v648, %v647
        %v676 = vpack.c.b16 %v650, %v649
        %v677 = vpack.c.b16 %v652, %v651
        %v678 = vpack.c.b16 %v654, %v653
        %703 = vmatpush.bf16.xpose.msra.mxu0 0
        %704 = vmatpush.bf16.xpose.msra.mxu0 0
        %705 = vmatpush.bf16.xpose.msra.mxu0 0
        %706 = vmatpush.bf16.xpose.msra.mxu0 0
        %707 = vmatpush.bf16.xpose.msra.mxu0 0
        %708 = vmatpush.bf16.xpose.msra.mxu0 0
        %709 = vmatpush.bf16.xpose.msra.mxu0 0
        %710 = vmatpush.bf16.xpose.msra.mxu0 %v222
        %711 = vmatmul.bf16.gmra.mxu0 %v655
        %v712 = vpop.f32.mrf.mxu0
        %v713 = vadd.f32 %v322, %v712
        %v714 = vpop.f32.mrf.mxu0
        %v715 = vadd.f32 %v327, %v714
        %716 = vmatmul.bf16.gmra.mxu0 %v656
        %v717 = vpop.f32.mrf.mxu0
        %v718 = vadd.f32 %v332, %v717
        %v719 = vpop.f32.mrf.mxu0
        %v720 = vadd.f32 %v337, %v719
        %721 = vmatmul.bf16.gmra.mxu0 %v657
        %v722 = vpop.f32.mrf.mxu0
        %v723 = vadd.f32 %v342, %v722
        %v724 = vpop.f32.mrf.mxu0
        %v725 = vadd.f32 %v347, %v724
        %726 = vmatmul.bf16.gmra.mxu0 %v658
        %v727 = vpop.f32.mrf.mxu0
        %v728 = vadd.f32 %v352, %v727
        %v729 = vpop.f32.mrf.mxu0
        %v730 = vadd.f32 %v357, %v729
        %731 = vmatmul.bf16.gmra.mxu0 %v659
        %v732 = vpop.f32.mrf.mxu0
        %v733 = vadd.f32 %v362, %v732
        %v734 = vpop.f32.mrf.mxu0
        %v735 = vadd.f32 %v367, %v734
        %736 = vmatmul.bf16.gmra.mxu0 %v660
        %v737 = vpop.f32.mrf.mxu0
        %v738 = vadd.f32 %v372, %v737
        %v739 = vpop.f32.mrf.mxu0
        %v740 = vadd.f32 %v377, %v739
        %741 = vmatmul.bf16.gmra.mxu0 %v661
        %v742 = vpop.f32.mrf.mxu0
        %v743 = vadd.f32 %v382, %v742
        %v744 = vpop.f32.mrf.mxu0
        %v745 = vadd.f32 %v387, %v744
        %746 = vmatmul.bf16.gmra.mxu0 %v662
        %v747 = vpop.f32.mrf.mxu0
        %v748 = vadd.f32 %v392, %v747
        %v749 = vpop.f32.mrf.mxu0
        %v750 = vadd.f32 %v397, %v749
        %751 = vmatmul.bf16.gmra.mxu0 %v663
        %v752 = vpop.f32.mrf.mxu0
        %v753 = vadd.f32 %v402, %v752
        %v754 = vpop.f32.mrf.mxu0
        %v755 = vadd.f32 %v407, %v754
        %756 = vmatmul.bf16.gmra.mxu0 %v664
        %v757 = vpop.f32.mrf.mxu0
        %v758 = vadd.f32 %v412, %v757
        %v759 = vpop.f32.mrf.mxu0
        %v760 = vadd.f32 %v417, %v759
        %761 = vmatmul.bf16.gmra.mxu0 %v665
        %v762 = vpop.f32.mrf.mxu0
        %v763 = vadd.f32 %v422, %v762
        %v764 = vpop.f32.mrf.mxu0
        %v765 = vadd.f32 %v427, %v764
        %766 = vmatmul.bf16.gmra.mxu0 %v666
        %v767 = vpop.f32.mrf.mxu0
        %v768 = vadd.f32 %v432, %v767
        %v769 = vpop.f32.mrf.mxu0
        %v770 = vadd.f32 %v437, %v769
        %771 = vmatmul.bf16.gmra.mxu0 %v667
        %v772 = vpop.f32.mrf.mxu0
        %v773 = vadd.f32 %v442, %v772
        %v774 = vpop.f32.mrf.mxu0
        %v775 = vadd.f32 %v447, %v774
        %776 = vmatmul.bf16.gmra.mxu0 %v668
        %v777 = vpop.f32.mrf.mxu0
        %v778 = vadd.f32 %v452, %v777
        %v779 = vpop.f32.mrf.mxu0
        %v780 = vadd.f32 %v457, %v779
        %781 = vmatmul.bf16.gmra.mxu0 %v669
        %v782 = vpop.f32.mrf.mxu0
        %v783 = vadd.f32 %v462, %v782
        %v784 = vpop.f32.mrf.mxu0
        %v785 = vadd.f32 %v467, %v784
        %786 = vmatmul.bf16.gmra.mxu0 %v670
        %v787 = vpop.f32.mrf.mxu0
        %v788 = vadd.f32 %v472, %v787
        %v789 = vpop.f32.mrf.mxu0
        %v790 = vadd.f32 %v477, %v789
        %791 = vmatmul.bf16.gmra.mxu0 %v671
        %v792 = vpop.f32.mrf.mxu0
        %v793 = vadd.f32 %v482, %v792
        %v794 = vpop.f32.mrf.mxu0
        %v795 = vadd.f32 %v487, %v794
        %796 = vmatmul.bf16.gmra.mxu0 %v672
        %v797 = vpop.f32.mrf.mxu0
        %v798 = vadd.f32 %v492, %v797
        %v799 = vpop.f32.mrf.mxu0
        %v800 = vadd.f32 %v497, %v799
        %801 = vmatmul.bf16.gmra.mxu0 %v673
        %v802 = vpop.f32.mrf.mxu0
        %v803 = vadd.f32 %v502, %v802
        %v804 = vpop.f32.mrf.mxu0
        %v805 = vadd.f32 %v507, %v804
        %806 = vmatmul.bf16.gmra.mxu0 %v674
        %v807 = vpop.f32.mrf.mxu0
        %v808 = vadd.f32 %v512, %v807
        %v809 = vpop.f32.mrf.mxu0
        %v810 = vadd.f32 %v517, %v809
        %811 = vmatmul.bf16.gmra.mxu0 %v675
        %v812 = vpop.f32.mrf.mxu0
        %v813 = vadd.f32 %v522, %v812
        %v814 = vpop.f32.mrf.mxu0
        %v815 = vadd.f32 %v527, %v814
        %816 = vmatmul.bf16.gmra.mxu0 %v676
        %v817 = vpop.f32.mrf.mxu0
        %v818 = vadd.f32 %v532, %v817
        %v819 = vpop.f32.mrf.mxu0
        %v820 = vadd.f32 %v537, %v819
        %821 = vmatmul.bf16.gmra.mxu0 %v677
        %v822 = vpop.f32.mrf.mxu0
        %v823 = vadd.f32 %v542, %v822
        %v824 = vpop.f32.mrf.mxu0
        %v825 = vadd.f32 %v547, %v824
        %826 = vmatmul.bf16.gmra.mxu0 %v678
        %v827 = vpop.f32.mrf.mxu0
        %v828 = vadd.f32 %v552, %v827
        %v829 = vpop.f32.mrf.mxu0
        %v830 = vadd.f32 %v557, %v829
        %831 = vdwg.mxu0
        %v832 = vmul.f32 %v713, 0.17677669
        %v833 = vmul.f32 %v715, 0.17677669
        %v834 = vmul.f32 %v718, 0.17677669
        %v835 = vmul.f32 %v720, 0.17677669
        %v836 = vmul.f32 %v723, 0.17677669
        %v837 = vmul.f32 %v725, 0.17677669
        %v838 = vmul.f32 %v728, 0.17677669
        %v839 = vmul.f32 %v730, 0.17677669
        %v840 = vmul.f32 %v733, 0.17677669
        %v841 = vmul.f32 %v735, 0.17677669
        %v842 = vmul.f32 %v738, 0.17677669
        %v843 = vmul.f32 %v740, 0.17677669
        %v844 = vmul.f32 %v743, 0.17677669
        %v845 = vmul.f32 %v745, 0.17677669
        %v846 = vmul.f32 %v748, 0.17677669
        %v847 = vmul.f32 %v750, 0.17677669
        %848 = vxpose.xlu0.b32.start [1/16] %v832, 128
        %849 = vxpose.xlu0.b32.cont [2/16] %v833, 128
        %850 = vxpose.xlu0.b32.cont [3/16] %v834, 128
        %851 = vxpose.xlu0.b32.cont [4/16] %v835, 128
        %852 = vxpose.xlu0.b32.cont [5/16] 0.0, 128
        %853 = vxpose.xlu0.b32.cont [6/16] 0.0, 128
        %854 = vxpose.xlu0.b32.cont [7/16] 0.0, 128
        %855 = vxpose.xlu0.b32.cont [8/16] 0.0, 128
        %856 = vxpose.xlu0.b32.cont [9/16] 0.0, 128
        %857 = vxpose.xlu0.b32.cont [10/16] 0.0, 128
        %858 = vxpose.xlu0.b32.cont [11/16] 0.0, 128
        %859 = vxpose.xlu0.b32.cont [12/16] 0.0, 128
        %860 = vxpose.xlu0.b32.cont [13/16] 0.0, 128
        %861 = vxpose.xlu0.b32.cont [14/16] 0.0, 128
        %862 = vxpose.xlu0.b32.cont [15/16] 0.0, 128
        %863 = vxpose.xlu0.b32.end [16/16] 0.0, 128
        %v864 = vpop.trf.xlu0
        %v865 = vpop.trf.xlu0
        %v866 = vpop.trf.xlu0
        %v867 = vpop.trf.xlu0
        %v868 = vpop.trf.xlu0
        %v869 = vpop.trf.xlu0
        %v870 = vpop.trf.xlu0
        %v871 = vpop.trf.xlu0
        %v872 = vpop.trf.xlu0
        %v873 = vpop.trf.xlu0
        %v874 = vpop.trf.xlu0
        %v875 = vpop.trf.xlu0
        %v876 = vpop.trf.xlu0
        %v877 = vpop.trf.xlu0
        %v878 = vpop.trf.xlu0
        %v879 = vpop.trf.xlu0
        %880 = vxpose.xlu0.b32.start [1/16] %v836, 128
        %881 = vxpose.xlu0.b32.cont [2/16] %v837, 128
        %882 = vxpose.xlu0.b32.cont [3/16] %v838, 128
        %883 = vxpose.xlu0.b32.cont [4/16] %v839, 128
        %884 = vxpose.xlu0.b32.cont [5/16] 0.0, 128
        %885 = vxpose.xlu0.b32.cont [6/16] 0.0, 128
        %886 = vxpose.xlu0.b32.cont [7/16] 0.0, 128
        %887 = vxpose.xlu0.b32.cont [8/16] 0.0, 128
        %888 = vxpose.xlu0.b32.cont [9/16] 0.0, 128
        %889 = vxpose.xlu0.b32.cont [10/16] 0.0, 128
        %890 = vxpose.xlu0.b32.cont [11/16] 0.0, 128
        %891 = vxpose.xlu0.b32.cont [12/16] 0.0, 128
        %892 = vxpose.xlu0.b32.cont [13/16] 0.0, 128
        %893 = vxpose.xlu0.b32.cont [14/16] 0.0, 128
        %894 = vxpose.xlu0.b32.cont [15/16] 0.0, 128
        %895 = vxpose.xlu0.b32.end [16/16] 0.0, 128
        %v896 = vpop.trf.xlu0
        %v897 = vpop.trf.xlu0
        %v898 = vpop.trf.xlu0
        %v899 = vpop.trf.xlu0
        %v900 = vpop.trf.xlu0
        %v901 = vpop.trf.xlu0
        %v902 = vpop.trf.xlu0
        %v903 = vpop.trf.xlu0
        %v904 = vpop.trf.xlu0
        %v905 = vpop.trf.xlu0
        %v906 = vpop.trf.xlu0
        %v907 = vpop.trf.xlu0
        %v908 = vpop.trf.xlu0
        %v909 = vpop.trf.xlu0
        %v910 = vpop.trf.xlu0
        %v911 = vpop.trf.xlu0
        %912 = vxpose.xlu0.b32.start [1/16] %v840, 128
        %913 = vxpose.xlu0.b32.cont [2/16] %v841, 128
        %914 = vxpose.xlu0.b32.cont [3/16] %v842, 128
        %915 = vxpose.xlu0.b32.cont [4/16] %v843, 128
        %916 = vxpose.xlu0.b32.cont [5/16] 0.0, 128
        %917 = vxpose.xlu0.b32.cont [6/16] 0.0, 128
        %918 = vxpose.xlu0.b32.cont [7/16] 0.0, 128
        %919 = vxpose.xlu0.b32.cont [8/16] 0.0, 128
        %920 = vxpose.xlu0.b32.cont [9/16] 0.0, 128
        %921 = vxpose.xlu0.b32.cont [10/16] 0.0, 128
        %922 = vxpose.xlu0.b32.cont [11/16] 0.0, 128
        %923 = vxpose.xlu0.b32.cont [12/16] 0.0, 128
        %924 = vxpose.xlu0.b32.cont [13/16] 0.0, 128
        %925 = vxpose.xlu0.b32.cont [14/16] 0.0, 128
        %926 = vxpose.xlu0.b32.cont [15/16] 0.0, 128
        %927 = vxpose.xlu0.b32.end [16/16] 0.0, 128
        %v928 = vpop.trf.xlu0
        %v929 = vpop.trf.xlu0
        %v930 = vpop.trf.xlu0
        %v931 = vpop.trf.xlu0
        %v932 = vpop.trf.xlu0
        %v933 = vpop.trf.xlu0
        %v934 = vpop.trf.xlu0
        %v935 = vpop.trf.xlu0
        %v936 = vpop.trf.xlu0
        %v937 = vpop.trf.xlu0
        %v938 = vpop.trf.xlu0
        %v939 = vpop.trf.xlu0
        %v940 = vpop.trf.xlu0
        %v941 = vpop.trf.xlu0
        %v942 = vpop.trf.xlu0
        %v943 = vpop.trf.xlu0
        %944 = vxpose.xlu0.b32.start [1/16] %v844, 128
        %945 = vxpose.xlu0.b32.cont [2/16] %v845, 128
        %946 = vxpose.xlu0.b32.cont [3/16] %v846, 128
        %947 = vxpose.xlu0.b32.cont [4/16] %v847, 128
        %948 = vxpose.xlu0.b32.cont [5/16] 0.0, 128
        %949 = vxpose.xlu0.b32.cont [6/16] 0.0, 128
        %950 = vxpose.xlu0.b32.cont [7/16] 0.0, 128
        %951 = vxpose.xlu0.b32.cont [8/16] 0.0, 128
        %952 = vxpose.xlu0.b32.cont [9/16] 0.0, 128
        %953 = vxpose.xlu0.b32.cont [10/16] 0.0, 128
        %954 = vxpose.xlu0.b32.cont [11/16] 0.0, 128
        %955 = vxpose.xlu0.b32.cont [12/16] 0.0, 128
        %956 = vxpose.xlu0.b32.cont [13/16] 0.0, 128
        %957 = vxpose.xlu0.b32.cont [14/16] 0.0, 128
        %958 = vxpose.xlu0.b32.cont [15/16] 0.0, 128
        %959 = vxpose.xlu0.b32.end [16/16] 0.0, 128
        %v960 = vpop.trf.xlu0
        %v961 = vpop.trf.xlu0
        %v962 = vpop.trf.xlu0
        %v963 = vpop.trf.xlu0
        %v964 = vpop.trf.xlu0
        %v965 = vpop.trf.xlu0
        %v966 = vpop.trf.xlu0
        %v967 = vpop.trf.xlu0
        %v968 = vpop.trf.xlu0
        %v969 = vpop.trf.xlu0
        %v970 = vpop.trf.xlu0
        %v971 = vpop.trf.xlu0
        %v972 = vpop.trf.xlu0
        %v973 = vpop.trf.xlu0
        %v974 = vpop.trf.xlu0
        %v975 = vpop.trf.xlu0
        %v976 = vpack.c.bf16 %v864, %v864
        %v977 = vpack.c.bf16 %v896, %v896
        %v978 = vpack.c.bf16 %v928, %v928
        %v979 = vpack.c.bf16 %v960, %v960
        %980 = vxpose.xlu0.b32.start [1/16] %v753, 128
        %981 = vxpose.xlu0.b32.cont [2/16] %v755, 128
        %982 = vxpose.xlu0.b32.cont [3/16] %v758, 128
        %983 = vxpose.xlu0.b32.cont [4/16] %v760, 128
        %984 = vxpose.xlu0.b32.cont [5/16] 0.0, 128
        %985 = vxpose.xlu0.b32.cont [6/16] 0.0, 128
        %986 = vxpose.xlu0.b32.cont [7/16] 0.0, 128
        %987 = vxpose.xlu0.b32.cont [8/16] 0.0, 128
        %988 = vxpose.xlu0.b32.cont [9/16] 0.0, 128
        %989 = vxpose.xlu0.b32.cont [10/16] 0.0, 128
        %990 = vxpose.xlu0.b32.cont [11/16] 0.0, 128
        %991 = vxpose.xlu0.b32.cont [12/16] 0.0, 128
        %992 = vxpose.xlu0.b32.cont [13/16] 0.0, 128
        %993 = vxpose.xlu0.b32.cont [14/16] 0.0, 128
        %994 = vxpose.xlu0.b32.cont [15/16] 0.0, 128
        %995 = vxpose.xlu0.b32.end [16/16] 0.0, 128
        %v996 = vpop.trf.xlu0
        %v997 = vpop.trf.xlu0
        %v998 = vpop.trf.xlu0
        %v999 = vpop.trf.xlu0
        %v1000 = vpop.trf.xlu0
        %v1001 = vpop.trf.xlu0
        %v1002 = vpop.trf.xlu0
        %v1003 = vpop.trf.xlu0
        %v1004 = vpop.trf.xlu0
        %v1005 = vpop.trf.xlu0
        %v1006 = vpop.trf.xlu0
        %v1007 = vpop.trf.xlu0
        %v1008 = vpop.trf.xlu0
        %v1009 = vpop.trf.xlu0
        %v1010 = vpop.trf.xlu0
        %v1011 = vpop.trf.xlu0
        %1012 = vxpose.xlu0.b32.start [1/16] %v763, 128
        %1013 = vxpose.xlu0.b32.cont [2/16] %v765, 128
        %1014 = vxpose.xlu0.b32.cont [3/16] %v768, 128
        %1015 = vxpose.xlu0.b32.cont [4/16] %v770, 128
        %1016 = vxpose.xlu0.b32.cont [5/16] 0.0, 128
        %1017 = vxpose.xlu0.b32.cont [6/16] 0.0, 128
        %1018 = vxpose.xlu0.b32.cont [7/16] 0.0, 128
        %1019 = vxpose.xlu0.b32.cont [8/16] 0.0, 128
        %1020 = vxpose.xlu0.b32.cont [9/16] 0.0, 128
        %1021 = vxpose.xlu0.b32.cont [10/16] 0.0, 128
        %1022 = vxpose.xlu0.b32.cont [11/16] 0.0, 128
        %1023 = vxpose.xlu0.b32.cont [12/16] 0.0, 128
        %1024 = vxpose.xlu0.b32.cont [13/16] 0.0, 128
        %1025 = vxpose.xlu0.b32.cont [14/16] 0.0, 128
        %1026 = vxpose.xlu0.b32.cont [15/16] 0.0, 128
        %1027 = vxpose.xlu0.b32.end [16/16] 0.0, 128
        %v1028 = vpop.trf.xlu0
        %v1029 = vpop.trf.xlu0
        %v1030 = vpop.trf.xlu0
        %v1031 = vpop.trf.xlu0
        %v1032 = vpop.trf.xlu0
        %v1033 = vpop.trf.xlu0
        %v1034 = vpop.trf.xlu0
        %v1035 = vpop.trf.xlu0
        %v1036 = vpop.trf.xlu0
        %v1037 = vpop.trf.xlu0
        %v1038 = vpop.trf.xlu0
        %v1039 = vpop.trf.xlu0
        %v1040 = vpop.trf.xlu0
        %v1041 = vpop.trf.xlu0
        %v1042 = vpop.trf.xlu0
        %v1043 = vpop.trf.xlu0
        %1044 = vxpose.xlu0.b32.start [1/16] %v773, 128
        %1045 = vxpose.xlu0.b32.cont [2/16] %v775, 128
        %1046 = vxpose.xlu0.b32.cont [3/16] %v778, 128
        %1047 = vxpose.xlu0.b32.cont [4/16] %v780, 128
        %1048 = vxpose.xlu0.b32.cont [5/16] 0.0, 128
        %1049 = vxpose.xlu0.b32.cont [6/16] 0.0, 128
        %1050 = vxpose.xlu0.b32.cont [7/16] 0.0, 128
        %1051 = vxpose.xlu0.b32.cont [8/16] 0.0, 128
        %1052 = vxpose.xlu0.b32.cont [9/16] 0.0, 128
        %1053 = vxpose.xlu0.b32.cont [10/16] 0.0, 128
        %1054 = vxpose.xlu0.b32.cont [11/16] 0.0, 128
        %1055 = vxpose.xlu0.b32.cont [12/16] 0.0, 128
        %1056 = vxpose.xlu0.b32.cont [13/16] 0.0, 128
        %1057 = vxpose.xlu0.b32.cont [14/16] 0.0, 128
        %1058 = vxpose.xlu0.b32.cont [15/16] 0.0, 128
        %1059 = vxpose.xlu0.b32.end [16/16] 0.0, 128
        %v1060 = vpop.trf.xlu0
        %v1061 = vpop.trf.xlu0
        %v1062 = vpop.trf.xlu0
        %v1063 = vpop.trf.xlu0
        %v1064 = vpop.trf.xlu0
        %v1065 = vpop.trf.xlu0
        %v1066 = vpop.trf.xlu0
        %v1067 = vpop.trf.xlu0
        %v1068 = vpop.trf.xlu0
        %v1069 = vpop.trf.xlu0
        %v1070 = vpop.trf.xlu0
        %v1071 = vpop.trf.xlu0
        %v1072 = vpop.trf.xlu0
        %v1073 = vpop.trf.xlu0
        %v1074 = vpop.trf.xlu0
        %v1075 = vpop.trf.xlu0
        %1076 = vxpose.xlu0.b32.start [1/16] %v783, 128
        %1077 = vxpose.xlu0.b32.cont [2/16] %v785, 128
        %1078 = vxpose.xlu0.b32.cont [3/16] %v788, 128
        %1079 = vxpose.xlu0.b32.cont [4/16] %v790, 128
        %1080 = vxpose.xlu0.b32.cont [5/16] 0.0, 128
        %1081 = vxpose.xlu0.b32.cont [6/16] 0.0, 128
        %1082 = vxpose.xlu0.b32.cont [7/16] 0.0, 128
        %1083 = vxpose.xlu0.b32.cont [8/16] 0.0, 128
        %1084 = vxpose.xlu0.b32.cont [9/16] 0.0, 128
        %1085 = vxpose.xlu0.b32.cont [10/16] 0.0, 128
        %1086 = vxpose.xlu0.b32.cont [11/16] 0.0, 128
        %1087 = vxpose.xlu0.b32.cont [12/16] 0.0, 128
        %1088 = vxpose.xlu0.b32.cont [13/16] 0.0, 128
        %1089 = vxpose.xlu0.b32.cont [14/16] 0.0, 128
        %1090 = vxpose.xlu0.b32.cont [15/16] 0.0, 128
        %1091 = vxpose.xlu0.b32.end [16/16] 0.0, 128
        %v1092 = vpop.trf.xlu0
        %v1093 = vpop.trf.xlu0
        %v1094 = vpop.trf.xlu0
        %v1095 = vpop.trf.xlu0
        %v1096 = vpop.trf.xlu0
        %v1097 = vpop.trf.xlu0
        %v1098 = vpop.trf.xlu0
        %v1099 = vpop.trf.xlu0
        %v1100 = vpop.trf.xlu0
        %v1101 = vpop.trf.xlu0
        %v1102 = vpop.trf.xlu0
        %v1103 = vpop.trf.xlu0
        %v1104 = vpop.trf.xlu0
        %v1105 = vpop.trf.xlu0
        %v1106 = vpop.trf.xlu0
        %v1107 = vpop.trf.xlu0
        %v1108 = vpack.c.bf16 %v996, %v996
        %v1109 = vpack.c.bf16 %v1028, %v1028
        %v1110 = vpack.c.bf16 %v1060, %v1060
        %v1111 = vpack.c.bf16 %v1092, %v1092
        %v1112 = vpack.c.bf16 %v793, %v793
        %v1113 = vpack.c.bf16 %v795, %v795
        %v1114 = vpack.c.bf16 %v798, %v798
        %v1115 = vpack.c.bf16 %v800, %v800
        %v1116 = vpack.c.bf16 %v803, %v803
        %v1117 = vpack.c.bf16 %v805, %v805
        %v1118 = vpack.c.bf16 %v808, %v808
        %v1119 = vpack.c.bf16 %v810, %v810
        %v1120 = vpack.c.bf16 %v813, %v813
        %v1121 = vpack.c.bf16 %v815, %v815
        %v1122 = vpack.c.bf16 %v818, %v818
        %v1123 = vpack.c.bf16 %v820, %v820
        %v1124 = vpack.c.bf16 %v823, %v823
        %v1125 = vpack.c.bf16 %v825, %v825
        %v1126 = vpack.c.bf16 %v828, %v828
        %v1127 = vpack.c.bf16 %v830, %v830
        %vm1128 = vcmask 261120
        %v1130 = vsel %vm1128, %v976, 0
        %v1133 = vsel %vm1128, %v1108, 0
        %1135 = vmatpush.bf16.xpose.msra.mxu0 0
        %1136 = vmatpush.bf16.xpose.msra.mxu0 0
        %1137 = vmatpush.bf16.xpose.msra.mxu0 0
        %1138 = vmatpush.bf16.xpose.msra.mxu0 0
        %1139 = vmatpush.bf16.xpose.msra.mxu0 0
        %1140 = vmatpush.bf16.xpose.msra.mxu0 0
        %1141 = vmatpush.bf16.xpose.msra.mxu0 0
        %1142 = vmatpush.bf16.xpose.msra.mxu0 %v1133
        %1143 = vmatmul.bf16.gmra.mxu0 %v1130
        %v1144 = vpop.f32.mrf.mxu0
        %v1145 = vadd.f32 0.0, %v1144
        %v1146 = vpop.f32.mrf.mxu0
        %1147 = vdwg.mxu0
        %v1149 = vsel %vm1128, %v977, 0
        %v1152 = vsel %vm1128, %v1109, 0
        %1154 = vmatpush.bf16.xpose.msra.mxu0 0
        %1155 = vmatpush.bf16.xpose.msra.mxu0 0
        %1156 = vmatpush.bf16.xpose.msra.mxu0 0
        %1157 = vmatpush.bf16.xpose.msra.mxu0 0
        %1158 = vmatpush.bf16.xpose.msra.mxu0 0
        %1159 = vmatpush.bf16.xpose.msra.mxu0 0
        %1160 = vmatpush.bf16.xpose.msra.mxu0 0
        %1161 = vmatpush.bf16.xpose.msra.mxu0 %v1152
        %1162 = vmatmul.bf16.gmra.mxu0 %v1149
        %v1163 = vpop.f32.mrf.mxu0
        %v1164 = vadd.f32 0.0, %v1163
        %v1165 = vpop.f32.mrf.mxu0
        %1166 = vdwg.mxu0
        %v1168 = vsel %vm1128, %v978, 0
        %v1171 = vsel %vm1128, %v1110, 0
        %1173 = vmatpush.bf16.xpose.msra.mxu0 0
        %1174 = vmatpush.bf16.xpose.msra.mxu0 0
        %1175 = vmatpush.bf16.xpose.msra.mxu0 0
        %1176 = vmatpush.bf16.xpose.msra.mxu0 0
        %1177 = vmatpush.bf16.xpose.msra.mxu0 0
        %1178 = vmatpush.bf16.xpose.msra.mxu0 0
        %1179 = vmatpush.bf16.xpose.msra.mxu0 0
        %1180 = vmatpush.bf16.xpose.msra.mxu0 %v1171
        %1181 = vmatmul.bf16.gmra.mxu0 %v1168
        %v1182 = vpop.f32.mrf.mxu0
        %v1183 = vadd.f32 0.0, %v1182
        %v1184 = vpop.f32.mrf.mxu0
        %1185 = vdwg.mxu0
        %v1187 = vsel %vm1128, %v979, 0
        %v1190 = vsel %vm1128, %v1111, 0
        %1192 = vmatpush.bf16.xpose.msra.mxu0 0
        %1193 = vmatpush.bf16.xpose.msra.mxu0 0
        %1194 = vmatpush.bf16.xpose.msra.mxu0 0
        %1195 = vmatpush.bf16.xpose.msra.mxu0 0
        %1196 = vmatpush.bf16.xpose.msra.mxu0 0
        %1197 = vmatpush.bf16.xpose.msra.mxu0 0
        %1198 = vmatpush.bf16.xpose.msra.mxu0 0
        %1199 = vmatpush.bf16.xpose.msra.mxu0 %v1190
        %1200 = vmatmul.bf16.gmra.mxu0 %v1187
        %v1201 = vpop.f32.mrf.mxu0
        %v1202 = vadd.f32 0.0, %v1201
        %v1203 = vpop.f32.mrf.mxu0
        %1204 = vdwg.mxu0
        %vm1205 = vcmask 64512
        %v1206 = vsel %vm1205, %v1145, -inf
        %1207 = vmax.xlane.f32.xlu0 %v1206
        %v1208 = vpop.xlane.xlu0 %1207
        %v1209 = vsel %vm1205, %v1164, -inf
        %1210 = vmax.xlane.f32.xlu0 %v1209
        %v1211 = vpop.xlane.xlu0 %1210
        %v1212 = vsel %vm1205, %v1183, -inf
        %1213 = vmax.xlane.f32.xlu0 %v1212
        %v1214 = vpop.xlane.xlu0 %1213
        %v1215 = vsel %vm1205, %v1202, -inf
        %1216 = vmax.xlane.f32.xlu0 %v1215
        %v1217 = vpop.xlane.xlu0 %1216
        %v1218 = vsub.f32 %v1145, %v1208
        %v1219 = vsub.f32 %v1164, %v1211
        %v1220 = vsub.f32 %v1183, %v1214
        %v1221 = vsub.f32 %v1202, %v1217
        %v1222 = vmul.f32 %v1218, 1.442695
        %v1223 = vpow.pop %v1222
        %v1224 = vmul.f32 %v1219, 1.442695
        %v1225 = vpow.pop %v1224
        %v1226 = vmul.f32 %v1220, 1.442695
        %v1227 = vpow.pop %v1226
        %v1228 = vmul.f32 %v1221, 1.442695
        %v1229 = vpow.pop %v1228
        %v1230 = vsel %vm1205, %v1223, 0.0
        %1231 = vadd.xlane.f32.xlu0 %v1230
        %v1232 = vpop.xlane.xlu0 %1231
        %v1233 = vsel %vm1205, %v1225, 0.0
        %1234 = vadd.xlane.f32.xlu0 %v1233
        %v1235 = vpop.xlane.xlu0 %1234
        %v1236 = vsel %vm1205, %v1227, 0.0
        %1237 = vadd.xlane.f32.xlu0 %v1236
        %v1238 = vpop.xlane.xlu0 %1237
        %v1239 = vsel %vm1205, %v1229, 0.0
        %1240 = vadd.xlane.f32.xlu0 %v1239
        %v1241 = vpop.xlane.xlu0 %1240
        %v1242 = vrcp.pop %v1232
        %v1243 = vrcp.pop %v1235
        %v1244 = vrcp.pop %v1238
        %v1245 = vrcp.pop %v1241
        %v1246 = vmul.f32 %v1223, %v1242
        %v1247 = vmul.f32 %v1225, %v1243
        %v1248 = vmul.f32 %v1227, %v1244
        %v1249 = vmul.f32 %v1229, %v1245
        %v1250 = vpack.c.bf16 %v1246, %v1246
        %v1251 = vpack.c.bf16 %v1247, %v1247
        %v1252 = vpack.c.bf16 %v1248, %v1248
        %v1253 = vpack.c.bf16 %v1249, %v1249
        %v1258 = vunpack.c.l.b16 %v1112
        %v1259 = vunpack.c.l.b16 %v1113
        %v1260 = vunpack.c.l.b16 %v1114
        %v1261 = vunpack.c.l.b16 %v1115
        %v1262 = vpack.c.b16 %v1259, %v1258
        %v1263 = vpack.c.b16 %v1261, %v1260
        %v1265 = vsel %vm1205, %v1250, 0
        %v1268 = vsel %vm1205, %v1262, 0
        %v1271 = vsel %vm1205, %v1263, 0
        %1273 = vmatpush.bf16.xpose.msra.mxu0 0
        %1274 = vmatpush.bf16.xpose.msra.mxu0 0
        %1275 = vmatpush.bf16.xpose.msra.mxu0 0
        %1276 = vmatpush.bf16.xpose.msra.mxu0 0
        %1277 = vmatpush.bf16.xpose.msra.mxu0 0
        %1278 = vmatpush.bf16.xpose.msra.mxu0 0
        %1279 = vmatpush.bf16.xpose.msra.mxu0 %v1271
        %1280 = vmatpush.bf16.xpose.msra.mxu0 %v1268
        %1281 = vmatmul.bf16.gmra.mxu0 %v1265
        %v1282 = vpop.f32.mrf.mxu0
        %v1283 = vadd.f32 0.0, %v1282
        %v1284 = vpop.f32.mrf.mxu0
        %1285 = vdwg.mxu0
        %v1290 = vunpack.c.l.b16 %v1116
        %v1291 = vunpack.c.l.b16 %v1117
        %v1292 = vunpack.c.l.b16 %v1118
        %v1293 = vunpack.c.l.b16 %v1119
        %v1294 = vpack.c.b16 %v1291, %v1290
        %v1295 = vpack.c.b16 %v1293, %v1292
        %v1297 = vsel %vm1205, %v1251, 0
        %v1300 = vsel %vm1205, %v1294, 0
        %v1303 = vsel %vm1205, %v1295, 0
        %1305 = vmatpush.bf16.xpose.msra.mxu0 0
        %1306 = vmatpush.bf16.xpose.msra.mxu0 0
        %1307 = vmatpush.bf16.xpose.msra.mxu0 0
        %1308 = vmatpush.bf16.xpose.msra.mxu0 0
        %1309 = vmatpush.bf16.xpose.msra.mxu0 0
        %1310 = vmatpush.bf16.xpose.msra.mxu0 0
        %1311 = vmatpush.bf16.xpose.msra.mxu0 %v1303
        %1312 = vmatpush.bf16.xpose.msra.mxu0 %v1300
        %1313 = vmatmul.bf16.gmra.mxu0 %v1297
        %v1314 = vpop.f32.mrf.mxu0
        %v1315 = vadd.f32 0.0, %v1314
        %v1316 = vpop.f32.mrf.mxu0
        %1317 = vdwg.mxu0
        %v1322 = vunpack.c.l.b16 %v1120
        %v1323 = vunpack.c.l.b16 %v1121
        %v1324 = vunpack.c.l.b16 %v1122
        %v1325 = vunpack.c.l.b16 %v1123
        %v1326 = vpack.c.b16 %v1323, %v1322
        %v1327 = vpack.c.b16 %v1325, %v1324
        %v1329 = vsel %vm1205, %v1252, 0
        %v1332 = vsel %vm1205, %v1326, 0
        %v1335 = vsel %vm1205, %v1327, 0
        %1337 = vmatpush.bf16.xpose.msra.mxu0 0
        %1338 = vmatpush.bf16.xpose.msra.mxu0 0
        %1339 = vmatpush.bf16.xpose.msra.mxu0 0
        %1340 = vmatpush.bf16.xpose.msra.mxu0 0
        %1341 = vmatpush.bf16.xpose.msra.mxu0 0
        %1342 = vmatpush.bf16.xpose.msra.mxu0 0
        %1343 = vmatpush.bf16.xpose.msra.mxu0 %v1335
        %1344 = vmatpush.bf16.xpose.msra.mxu0 %v1332
        %1345 = vmatmul.bf16.gmra.mxu0 %v1329
        %v1346 = vpop.f32.mrf.mxu0
        %v1347 = vadd.f32 0.0, %v1346
        %v1348 = vpop.f32.mrf.mxu0
        %1349 = vdwg.mxu0
        %v1354 = vunpack.c.l.b16 %v1124
        %v1355 = vunpack.c.l.b16 %v1125
        %v1356 = vunpack.c.l.b16 %v1126
        %v1357 = vunpack.c.l.b16 %v1127
        %v1358 = vpack.c.b16 %v1355, %v1354
        %v1359 = vpack.c.b16 %v1357, %v1356
        %v1361 = vsel %vm1205, %v1253, 0
        %v1364 = vsel %vm1205, %v1358, 0
        %v1367 = vsel %vm1205, %v1359, 0
        %1369 = vmatpush.bf16.xpose.msra.mxu0 0
        %1370 = vmatpush.bf16.xpose.msra.mxu0 0
        %1371 = vmatpush.bf16.xpose.msra.mxu0 0
        %1372 = vmatpush.bf16.xpose.msra.mxu0 0
        %1373 = vmatpush.bf16.xpose.msra.mxu0 0
        %1374 = vmatpush.bf16.xpose.msra.mxu0 0
        %1375 = vmatpush.bf16.xpose.msra.mxu0 %v1367
        %1376 = vmatpush.bf16.xpose.msra.mxu0 %v1364
        %1377 = vmatmul.bf16.gmra.mxu0 %v1361
        %v1378 = vpop.f32.mrf.mxu0
        %v1379 = vadd.f32 0.0, %v1378
        %v1380 = vpop.f32.mrf.mxu0
        %1381 = vdwg.mxu0
        %1382 = vxpose.xlu0.b32.start [1/16] %v1283, 128
        %1383 = vxpose.xlu0.b32.cont [2/16] 0.0, 128
        %1384 = vxpose.xlu0.b32.cont [3/16] 0.0, 128
        %1385 = vxpose.xlu0.b32.cont [4/16] 0.0, 128
        %1386 = vxpose.xlu0.b32.cont [5/16] 0.0, 128
        %1387 = vxpose.xlu0.b32.cont [6/16] 0.0, 128
        %1388 = vxpose.xlu0.b32.cont [7/16] 0.0, 128
        %1389 = vxpose.xlu0.b32.cont [8/16] 0.0, 128
        %1390 = vxpose.xlu0.b32.cont [9/16] 0.0, 128
        %1391 = vxpose.xlu0.b32.cont [10/16] 0.0, 128
        %1392 = vxpose.xlu0.b32.cont [11/16] 0.0, 128
        %1393 = vxpose.xlu0.b32.cont [12/16] 0.0, 128
        %1394 = vxpose.xlu0.b32.cont [13/16] 0.0, 128
        %1395 = vxpose.xlu0.b32.cont [14/16] 0.0, 128
        %1396 = vxpose.xlu0.b32.cont [15/16] 0.0, 128
        %1397 = vxpose.xlu0.b32.end [16/16] 0.0, 128
        %v1398 = vpop.trf.xlu0
        %v1399 = vpop.trf.xlu0
        %v1400 = vpop.trf.xlu0
        %v1401 = vpop.trf.xlu0
        %v1402 = vpop.trf.xlu0
        %v1403 = vpop.trf.xlu0
        %v1404 = vpop.trf.xlu0
        %v1405 = vpop.trf.xlu0
        %v1406 = vpop.trf.xlu0
        %v1407 = vpop.trf.xlu0
        %v1408 = vpop.trf.xlu0
        %v1409 = vpop.trf.xlu0
        %v1410 = vpop.trf.xlu0
        %v1411 = vpop.trf.xlu0
        %v1412 = vpop.trf.xlu0
        %v1413 = vpop.trf.xlu0
        %1414 = vxpose.xlu0.b32.start [1/16] %v1315, 128
        %1415 = vxpose.xlu0.b32.cont [2/16] 0.0, 128
        %1416 = vxpose.xlu0.b32.cont [3/16] 0.0, 128
        %1417 = vxpose.xlu0.b32.cont [4/16] 0.0, 128
        %1418 = vxpose.xlu0.b32.cont [5/16] 0.0, 128
        %1419 = vxpose.xlu0.b32.cont [6/16] 0.0, 128
        %1420 = vxpose.xlu0.b32.cont [7/16] 0.0, 128
        %1421 = vxpose.xlu0.b32.cont [8/16] 0.0, 128
        %1422 = vxpose.xlu0.b32.cont [9/16] 0.0, 128
        %1423 = vxpose.xlu0.b32.cont [10/16] 0.0, 128
        %1424 = vxpose.xlu0.b32.cont [11/16] 0.0, 128
        %1425 = vxpose.xlu0.b32.cont [12/16] 0.0, 128
        %1426 = vxpose.xlu0.b32.cont [13/16] 0.0, 128
        %1427 = vxpose.xlu0.b32.cont [14/16] 0.0, 128
        %1428 = vxpose.xlu0.b32.cont [15/16] 0.0, 128
        %1429 = vxpose.xlu0.b32.end [16/16] 0.0, 128
        %v1430 = vpop.trf.xlu0
        %v1431 = vpop.trf.xlu0
        %v1432 = vpop.trf.xlu0
        %v1433 = vpop.trf.xlu0
        %v1434 = vpop.trf.xlu0
        %v1435 = vpop.trf.xlu0
        %v1436 = vpop.trf.xlu0
        %v1437 = vpop.trf.xlu0
        %v1438 = vpop.trf.xlu0
        %v1439 = vpop.trf.xlu0
        %v1440 = vpop.trf.xlu0
        %v1441 = vpop.trf.xlu0
        %v1442 = vpop.trf.xlu0
        %v1443 = vpop.trf.xlu0
        %v1444 = vpop.trf.xlu0
        %v1445 = vpop.trf.xlu0
        %1446 = vxpose.xlu0.b32.start [1/16] %v1347, 128
        %1447 = vxpose.xlu0.b32.cont [2/16] 0.0, 128
        %1448 = vxpose.xlu0.b32.cont [3/16] 0.0, 128
        %1449 = vxpose.xlu0.b32.cont [4/16] 0.0, 128
        %1450 = vxpose.xlu0.b32.cont [5/16] 0.0, 128
        %1451 = vxpose.xlu0.b32.cont [6/16] 0.0, 128
        %1452 = vxpose.xlu0.b32.cont [7/16] 0.0, 128
        %1453 = vxpose.xlu0.b32.cont [8/16] 0.0, 128
        %1454 = vxpose.xlu0.b32.cont [9/16] 0.0, 128
        %1455 = vxpose.xlu0.b32.cont [10/16] 0.0, 128
        %1456 = vxpose.xlu0.b32.cont [11/16] 0.0, 128
        %1457 = vxpose.xlu0.b32.cont [12/16] 0.0, 128
        %1458 = vxpose.xlu0.b32.cont [13/16] 0.0, 128
        %1459 = vxpose.xlu0.b32.cont [14/16] 0.0, 128
        %1460 = vxpose.xlu0.b32.cont [15/16] 0.0, 128
        %1461 = vxpose.xlu0.b32.end [16/16] 0.0, 128
        %v1462 = vpop.trf.xlu0
        %v1463 = vpop.trf.xlu0
        %v1464 = vpop.trf.xlu0
        %v1465 = vpop.trf.xlu0
        %v1466 = vpop.trf.xlu0
        %v1467 = vpop.trf.xlu0
        %v1468 = vpop.trf.xlu0
        %v1469 = vpop.trf.xlu0
        %v1470 = vpop.trf.xlu0
        %v1471 = vpop.trf.xlu0
        %v1472 = vpop.trf.xlu0
        %v1473 = vpop.trf.xlu0
        %v1474 = vpop.trf.xlu0
        %v1475 = vpop.trf.xlu0
        %v1476 = vpop.trf.xlu0
        %v1477 = vpop.trf.xlu0
        %1478 = vxpose.xlu0.b32.start [1/16] %v1379, 128
        %1479 = vxpose.xlu0.b32.cont [2/16] 0.0, 128
        %1480 = vxpose.xlu0.b32.cont [3/16] 0.0, 128
        %1481 = vxpose.xlu0.b32.cont [4/16] 0.0, 128
        %1482 = vxpose.xlu0.b32.cont [5/16] 0.0, 128
        %1483 = vxpose.xlu0.b32.cont [6/16] 0.0, 128
        %1484 = vxpose.xlu0.b32.cont [7/16] 0.0, 128
        %1485 = vxpose.xlu0.b32.cont [8/16] 0.0, 128
        %1486 = vxpose.xlu0.b32.cont [9/16] 0.0, 128
        %1487 = vxpose.xlu0.b32.cont [10/16] 0.0, 128
        %1488 = vxpose.xlu0.b32.cont [11/16] 0.0, 128
        %1489 = vxpose.xlu0.b32.cont [12/16] 0.0, 128
        %1490 = vxpose.xlu0.b32.cont [13/16] 0.0, 128
        %1491 = vxpose.xlu0.b32.cont [14/16] 0.0, 128
        %1492 = vxpose.xlu0.b32.cont [15/16] 0.0, 128
        %1493 = vxpose.xlu0.b32.end [16/16] 0.0, 128
        %v1494 = vpop.trf.xlu0
        %v1495 = vpop.trf.xlu0
        %v1496 = vpop.trf.xlu0
        %v1497 = vpop.trf.xlu0
        %v1498 = vpop.trf.xlu0
        %v1499 = vpop.trf.xlu0
        %v1500 = vpop.trf.xlu0
        %v1501 = vpop.trf.xlu0
        %v1502 = vpop.trf.xlu0
        %v1503 = vpop.trf.xlu0
        %v1504 = vpop.trf.xlu0
        %v1505 = vpop.trf.xlu0
        %v1506 = vpop.trf.xlu0
        %v1507 = vpop.trf.xlu0
        %v1508 = vpop.trf.xlu0
        %v1509 = vpop.trf.xlu0
        %v1510 = vpack.c.bf16 %v1399, %v1398
        %v1511 = vpack.c.bf16 %v1401, %v1400
        %v1512 = vpack.c.bf16 %v1431, %v1430
        %v1513 = vpack.c.bf16 %v1433, %v1432
        %v1514 = vpack.c.bf16 %v1463, %v1462
        %v1515 = vpack.c.bf16 %v1465, %v1464
        %v1516 = vpack.c.bf16 %v1495, %v1494
        %v1517 = vpack.c.bf16 %v1497, %v1496
        %v1518 = vld [vmem:[%s3] sm:$0xf]
        %v1519 = vld [vmem:[%s3 + $0x4] sm:$0xf]
        %v1520 = vld [vmem:[%s3 + $0x8] sm:$0xf]
        %v1521 = vld [vmem:[%s3 + $0xc] sm:$0xf]
        %v1522 = vld [vmem:[%s3 + $0x10] sm:$0xf]
        %v1523 = vld [vmem:[%s3 + $0x14] sm:$0xf]
        %v1524 = vld [vmem:[%s3 + $0x18] sm:$0xf]
        %v1525 = vld [vmem:[%s3 + $0x1c] sm:$0xf]
        %v1526 = vld [vmem:[%s3 + $0x20] sm:$0xf]
        %v1527 = vld [vmem:[%s3 + $0x24] sm:$0xf]
        %v1528 = vld [vmem:[%s3 + $0x28] sm:$0xf]
        %v1529 = vld [vmem:[%s3 + $0x2c] sm:$0xf]
        %v1530 = vld [vmem:[%s3 + $0x30] sm:$0xf]
        %v1531 = vld [vmem:[%s3 + $0x34] sm:$0xf]
        %v1532 = vld [vmem:[%s3 + $0x38] sm:$0xf]
        %v1533 = vld [vmem:[%s3 + $0x3c] sm:$0xf]
        %v1534 = vld [vmem:[%s4] sm:$0x1]
        %v1536 = vperm.slane %v1534, 0
        %1538 = vxpose.xlu0.c.b16.start [1/8] %v1510, 128
        %1539 = vxpose.xlu0.c.b16.cont [2/8] %v1511, 128
        %1540 = vxpose.xlu0.c.b16.cont [3/8] %v1512, 128
        %1541 = vxpose.xlu0.c.b16.cont [4/8] %v1513, 128
        %1542 = vxpose.xlu0.c.b16.cont [5/8] %v1514, 128
        %1543 = vxpose.xlu0.c.b16.cont [6/8] %v1515, 128
        %1544 = vxpose.xlu0.c.b16.cont [7/8] %v1516, 128
        %1545 = vxpose.xlu0.c.b16.end [8/8] %v1517, 128
        %v1546 = vpop.trf.xlu0
        %v1547 = vpop.trf.xlu0
        %v1548 = vpop.trf.xlu0
        %v1549 = vpop.trf.xlu0
        %v1550 = vpop.trf.xlu0
        %v1551 = vpop.trf.xlu0
        %v1552 = vpop.trf.xlu0
        %v1553 = vpop.trf.xlu0
        %v1570 = vunpack.c.l.b16 %v1518
        %v1571 = vunpack.c.l.b16 %v1519
        %v1572 = vunpack.c.l.b16 %v1520
        %v1573 = vunpack.c.l.b16 %v1521
        %v1574 = vunpack.c.l.b16 %v1522
        %v1575 = vunpack.c.l.b16 %v1523
        %v1576 = vunpack.c.l.b16 %v1524
        %v1577 = vunpack.c.l.b16 %v1525
        %v1578 = vunpack.c.l.b16 %v1526
        %v1579 = vunpack.c.l.b16 %v1527
        %v1580 = vunpack.c.l.b16 %v1528
        %v1581 = vunpack.c.l.b16 %v1529
        %v1582 = vunpack.c.l.b16 %v1530
        %v1583 = vunpack.c.l.b16 %v1531
        %v1584 = vunpack.c.l.b16 %v1532
        %v1585 = vunpack.c.l.b16 %v1533
        %v1586 = vpack.c.b16 %v1571, %v1570
        %v1587 = vpack.c.b16 %v1573, %v1572
        %v1588 = vpack.c.b16 %v1575, %v1574
        %v1589 = vpack.c.b16 %v1577, %v1576
        %v1590 = vpack.c.b16 %v1579, %v1578
        %v1591 = vpack.c.b16 %v1581, %v1580
        %v1592 = vpack.c.b16 %v1583, %v1582
        %v1593 = vpack.c.b16 %v1585, %v1584
        %1602 = vmatpush.bf16.xpose.msra.mxu0 %v1593
        %1603 = vmatpush.bf16.xpose.msra.mxu0 %v1592
        %1604 = vmatpush.bf16.xpose.msra.mxu0 %v1591
        %1605 = vmatpush.bf16.xpose.msra.mxu0 %v1590
        %1606 = vmatpush.bf16.xpose.msra.mxu0 %v1589
        %1607 = vmatpush.bf16.xpose.msra.mxu0 %v1588
        %1608 = vmatpush.bf16.xpose.msra.mxu0 %v1587
        %1609 = vmatpush.bf16.xpose.msra.mxu0 %v1586
        %1610 = vmatmul.bf16.gmra.mxu0 %v1546
        %v1611 = vpop.f32.mrf.mxu0
        %v1612 = vadd.f32 %v1536, %v1611
        %v1613 = vpop.f32.mrf.mxu0
        %1614 = vdwg.mxu0
        %1615 = vst [vmem:[%s215] sm:$0xff] %v1612
        %s1616 = sand.u32 %s137, 1
        %s1617 = scalar_lea.sflag [#allocation3], %s1616
        %s1618 = sand.u32 %s137, 1
        %s1619 = smul.addr %s1618, 8
        %s1620 = scalar_lea.vmem [#allocation2], %s1619
        // Predicated region
        $region41: #{tpu_custom_call.1} parent=39 // pred_check
          %p1621 = pneg %p147
        $region42: #{tpu_custom_call.1} parent=39 // pred_check_branch
          %1623 = sbr.rel (%p1621) target = $region44
        $region43: #{tpu_custom_call.1} parent=39 // pred_region
          %1625 = vsyncadd %s1617, 0
          %s1626 = smul.addr %s19, 8
          %s1627 = scalar_lea.hbm %s5, %s1626
          %s1629 = sshll.u32 %s1620, 4
          %s1630 = int_to_ptr.vmem [resolvable:$true] %s1629
          %s1631 = sshll.u32 %s1627, 4
          %s1632 = int_to_ptr.hbm [resolvable:$true] %s1631
          %1634 = dma.vmem_to_hbm [thread:$0]  %s1630, 128, %s1632, %s1617
        $region44: #{tpu_custom_call.1} parent=39 // pred_fallthru
          _
      $region40: #{tpu_custom_call.1} parent=5 // pred_fallthru
        _
      %p1635 = scmp.le.s32.totalorder 2, %s14
      // Predicated region
      $region45: #{tpu_custom_call.1} parent=5 // pred_check
        %p1636 = pneg %p1635
      $region46: #{tpu_custom_call.1} parent=5 // pred_check_branch
        %1638 = sbr.rel (%p1636) target = $region48
      $region47: #{tpu_custom_call.1} parent=5 // pred_region
        %s1639 = ssub.s32 %s14, 2
        // Predicated region
        $region49: #{tpu_custom_call.1} parent=47 // pred_check
          %p1640 = pneg %p153
        $region50: #{tpu_custom_call.1} parent=47 // pred_check_branch
          %1642 = sbr.rel (%p1640) target = $region52
        $region51: #{tpu_custom_call.1} parent=47 // pred_region
          %s1643 = sand.u32 %s138, 1
          %s1644 = scalar_lea.sflag [#allocation3], %s1643
          %s1645 = sand.u32 %s138, 1
          %s1646 = smul.addr %s1645, 8
          %s1647 = scalar_lea.vmem [#allocation2], %s1646
          %1649 = dma.done %s1644, 128
        $region52: #{tpu_custom_call.1} parent=47 // pred_fallthru
          _
      $region48: #{tpu_custom_call.1} parent=5 // pred_fallthru
        _
    $region6: #{tpu_custom_call.1} parent=1 // loop_footer
      %s18 = sadd.s32 1, %s14
    $region7: #{tpu_custom_call.1} parent=1 // loop_footer_branch
      %13 = sbr.rel target = $region3
    $region8: #{tpu_custom_call.1} parent=1 // loop_exit
      _
    %1650 = vsyncpa [#allocation3], 1
    %s1651 = scalar_lea.sflag [#allocation3], 1
    %1652 = vsyncpa %s1651, 1

// kernel: tpu_custom_call.1
$region0: #{tpu_custom_call.1}
  #allocation0 [shape = 'u32[]', space=smem, size = 0x4, offset = 0x4, fixed_abs, tag = 'smem constant byte address 0x4 - core index']
  #allocation1 [shape = 'u32[72,128]{1,0:T(1,128)}', space=vmem, size = 0x9000, scoped, tag = 'internal scratch']
  %s0 = inlined_call_operand.vmem [shape: f32[2,8,128], index: 0, kind: input, shape index: {}]
  %s1 = inlined_call_operand.vmem [shape: bf16[384,128], index: 1, kind: input, shape index: {}]
  %s2 = inlined_call_operand.vmem [shape: f32[384,1], index: 2, kind: input, shape index: {}]
  %s3 = inlined_call_operand.vmem [shape: bf16[128,128], index: 3, kind: input, shape index: {}]
  %s4 = inlined_call_operand.vmem [shape: f32[1,128], index: 4, kind: input, shape index: {}]
  %s5 = inlined_call_operand.hbm [shape: f32[2,8,128], index: 5, kind: output, shape index: {}]
  %s6 = sld [smem:[#allocation0]]
  $region53: #{tpu_custom_call.1} parent=0
    _
  %s8 = ssub.s32 1, %s6
  %s9 = scalar_select 0, %s8, %s6
  $region1: #{tpu_custom_call.1} parent=0
    #allocation2 [shape = 'u8[8192]{0}', space=vmem, size = 0x2000, scoped, tag = 'output window, operand 0']
    #allocation3 [shape = 's32[2]{0}', space=sflag, size = 0x8, scoped, tag = 'scoped memory for tpu_custom_call.1']
    %10 = vsyncpa [#allocation3], 0
    %s11 = scalar_lea.sflag [#allocation3], 1
    %12 = vsyncpa %s11, 0
    loop: start=0, step=1, limit=4
    $region2: #{tpu_custom_call.1} parent=1 // loop_pre_header
      _
    $region3: #{tpu_custom_call.1} parent=1 // loop_header
      %s14 = sphi 0, %s18
      %p15 = scmp.ge.s32.totalorder %s14, 4
      %s24 = sphi 0, %s26
      %s27 = sphi 0, %s24
      %s28 = sphi 0, %s27
      %s44 = sphi 0, %s28
      %s48 = sphi 0, %s48
      %s50 = sphi 0, %s48
      %s51 = sphi 0, %s50
      %s65 = sphi 0, %s51
      %s69 = sphi 0, %s69
      %s71 = sphi 0, %s69
      %s72 = sphi 0, %s71
      %s86 = sphi 0, %s72
      %s90 = sphi 0, %s90
      %s92 = sphi 0, %s90
      %s93 = sphi 0, %s92
      %s107 = sphi 0, %s93
      %s111 = sphi 0, %s111
      %s113 = sphi 0, %s111
      %s114 = sphi 0, %s113
      %s128 = sphi 0, %s114
      %s134 = sphi 0, %s136
      %s137 = sphi 0, %s134
      %s138 = sphi 0, %s137
      %s154 = sphi 0, %s138
    $region4: #{tpu_custom_call.1} parent=1 // loop_header_branch
      %17 = sbr.rel (%p15) target = $region8
    $region5: #{tpu_custom_call.1} parent=1 // loop_body
      %s19 = ssub.s32 %s14, 1
      %s20 = ssub.s32 %s14, 2
      %s21 = sadd.s32 %s14, 1
      %s22 = ssub.s32 %s14, %s21
      %p23 = scmp.eq.s32.totalorder %s22, 0
      %s25 = sadd.s32 %s24, 1
      %s26 = scalar_select %p23, %s24, %s25
      %p29 = pneg %p23
      %p30 = scmp.eq.s32.totalorder %s14, 1
      %p31 = por %p29, %p30
      %p32 = scmp.ne.s32.totalorder %s24, %s27
      %p33 = scmp.eq.s32.totalorder %s14, 0
      %p34 = por %p32, %p33
      %p35 = scmp.ne.s32.totalorder %s24, %s27
      %p36 = scmp.eq.s32.totalorder %s19, 1
      %p37 = por %p35, %p36
      %p38 = scmp.ne.s32.totalorder %s27, %s28
      %p39 = scmp.eq.s32.totalorder %s19, 0
      %p40 = por %p38, %p39
      %p41 = scmp.ne.s32.totalorder %s27, %s28
      %p42 = scmp.eq.s32.totalorder %s20, 1
      %p43 = por %p41, %p42
      %p45 = scmp.ne.s32.totalorder %s28, %s44
      %p46 = scmp.eq.s32.totalorder %s20, 0
      %p47 = por %p45, %p46
      %s49 = sadd.s32 %s48, 1
      %p52 = scmp.eq.s32.totalorder %s14, 1
      %p53 = scmp.ne.s32.totalorder %s48, %s50
      %p54 = scmp.eq.s32.totalorder %s14, 0
      %p55 = por %p53, %p54
      %p56 = scmp.ne.s32.totalorder %s48, %s50
      %p57 = scmp.eq.s32.totalorder %s19, 1
      %p58 = por %p56, %p57
      %p59 = scmp.ne.s32.totalorder %s50, %s51
      %p60 = scmp.eq.s32.totalorder %s19, 0
      %p61 = por %p59, %p60
      %p62 = scmp.ne.s32.totalorder %s50, %s51
      %p63 = scmp.eq.s32.totalorder %s20, 1
      %p64 = por %p62, %p63
      %p66 = scmp.ne.s32.totalorder %s51, %s65
      %p67 = scmp.eq.s32.totalorder %s20, 0
      %p68 = por %p66, %p67
      %s70 = sadd.s32 %s69, 1
      %p73 = scmp.eq.s32.totalorder %s14, 1
      %p74 = scmp.ne.s32.totalorder %s69, %s71
      %p75 = scmp.eq.s32.totalorder %s14, 0
      %p76 = por %p74, %p75
      %p77 = scmp.ne.s32.totalorder %s69, %s71
      %p78 = scmp.eq.s32.totalorder %s19, 1
      %p79 = por %p77, %p78
      %p80 = scmp.ne.s32.totalorder %s71, %s72
      %p81 = scmp.eq.s32.totalorder %s19, 0
      %p82 = por %p80, %p81
      %p83 = scmp.ne.s32.totalorder %s71, %s72
      %p84 = scmp.eq.s32.totalorder %s20, 1
      %p85 = por %p83, %p84
      %p87 = scmp.ne.s32.totalorder %s72, %s86
      %p88 = scmp.eq.s32.totalorder %s20, 0
      %p89 = por %p87, %p88
      %s91 = sadd.s32 %s90, 1
      %p94 = scmp.eq.s32.totalorder %s14, 1
      %p95 = scmp.ne.s32.totalorder %s90, %s92
      %p96 = scmp.eq.s32.totalorder %s14, 0
      %p97 = por %p95, %p96
      %p98 = scmp.ne.s32.totalorder %s90, %s92
      %p99 = scmp.eq.s32.totalorder %s19, 1
      %p100 = por %p98, %p99
      %p101 = scmp.ne.s32.totalorder %s92, %s93
      %p102 = scmp.eq.s32.totalorder %s19, 0
      %p103 = por %p101, %p102
      %p104 = scmp.ne.s32.totalorder %s92, %s93
      %p105 = scmp.eq.s32.totalorder %s20, 1
      %p106 = por %p104, %p105
      %p108 = scmp.ne.s32.totalorder %s93, %s107
      %p109 = scmp.eq.s32.totalorder %s20, 0
      %p110 = por %p108, %p109
      %s112 = sadd.s32 %s111, 1
      %p115 = scmp.eq.s32.totalorder %s14, 1
      %p116 = scmp.ne.s32.totalorder %s111, %s113
      %p117 = scmp.eq.s32.totalorder %s14, 0
      %p118 = por %p116, %p117
      %p119 = scmp.ne.s32.totalorder %s111, %s113
      %p120 = scmp.eq.s32.totalorder %s19, 1
      %p121 = por %p119, %p120
      %p122 = scmp.ne.s32.totalorder %s113, %s114
      %p123 = scmp.eq.s32.totalorder %s19, 0
      %p124 = por %p122, %p123
      %p125 = scmp.ne.s32.totalorder %s113, %s114
      %p126 = scmp.eq.s32.totalorder %s20, 1
      %p127 = por %p125, %p126
      %p129 = scmp.ne.s32.totalorder %s114, %s128
      %p130 = scmp.eq.s32.totalorder %s20, 0
      %p131 = por %p129, %p130
      %s132 = ssub.s32 %s14, %s21
      %p133 = scmp.eq.s32.totalorder %s132, 0
      %s135 = sadd.s32 %s134, 1
      %s136 = scalar_select %p133, %s134, %s135
      %p139 = pneg %p133
      %p140 = scmp.eq.s32.totalorder %s14, 1
      %p141 = por %p139, %p140
      %p142 = scmp.ne.s32.totalorder %s134, %s137
      %p143 = scmp.eq.s32.totalorder %s14, 0
      %p144 = por %p142, %p143
      %p145 = scmp.ne.s32.totalorder %s134, %s137
      %p146 = scmp.eq.s32.totalorder %s19, 1
      %p147 = por %p145, %p146
      %p148 = scmp.ne.s32.totalorder %s137, %s138
      %p149 = scmp.eq.s32.totalorder %s19, 0
      %p150 = por %p148, %p149
      %p151 = scmp.ne.s32.totalorder %s137, %s138
      %p152 = scmp.eq.s32.totalorder %s20, 1
      %p153 = por %p151, %p152
      %p155 = scmp.ne.s32.totalorder %s138, %s154
      %p156 = scmp.eq.s32.totalorder %s20, 0
      %p157 = por %p155, %p156
      %p158 = scmp.le.s32.totalorder 1, %s14
      %p159 = scmp.lt.s32.totalorder %s14, 3
      %p160 = pnand %p158, %p159
      %p161 = pneg %p160
      // Predicated region
      $region9: #{tpu_custom_call.1} parent=5 // pred_check
        _
      $region10: #{tpu_custom_call.1} parent=5 // pred_check_branch
        %163 = sbr.rel (%p160) target = $region12
      $region11: #{tpu_custom_call.1} parent=5 // pred_region
        %s164 = ssub.s32 %s14, 1
        // Predicated region
        $region13: #{tpu_custom_call.1} parent=11 // pred_check
          %p165 = pneg %p61
        $region14: #{tpu_custom_call.1} parent=11 // pred_check_branch
          %167 = sbr.rel (%p165) target = $region16
        $region15: #{tpu_custom_call.1} parent=11 // pred_region
          _
        $region16: #{tpu_custom_call.1} parent=11 // pred_fallthru
          _
        // Predicated region
        $region17: #{tpu_custom_call.1} parent=11 // pred_check
          %p168 = pneg %p82
        $region18: #{tpu_custom_call.1} parent=11 // pred_check_branch
          %170 = sbr.rel (%p168) target = $region20
        $region19: #{tpu_custom_call.1} parent=11 // pred_region
          _
        $region20: #{tpu_custom_call.1} parent=11 // pred_fallthru
          _
        // Predicated region
        $region21: #{tpu_custom_call.1} parent=11 // pred_check
          %p171 = pneg %p103
        $region22: #{tpu_custom_call.1} parent=11 // pred_check_branch
          %173 = sbr.rel (%p171) target = $region24
        $region23: #{tpu_custom_call.1} parent=11 // pred_region
          _
        $region24: #{tpu_custom_call.1} parent=11 // pred_fallthru
          _
        // Predicated region
        $region25: #{tpu_custom_call.1} parent=11 // pred_check
          %p174 = pneg %p124
        $region26: #{tpu_custom_call.1} parent=11 // pred_check_branch
          %176 = sbr.rel (%p174) target = $region28
        $region27: #{tpu_custom_call.1} parent=11 // pred_region
          _
        $region28: #{tpu_custom_call.1} parent=11 // pred_fallthru
          _
      $region12: #{tpu_custom_call.1} parent=5 // pred_fallthru
        _
      %p177 = scmp.lt.s32.totalorder %s14, 2
      // Predicated region
      $region29: #{tpu_custom_call.1} parent=5 // pred_check
        %p178 = pneg %p177
      $region30: #{tpu_custom_call.1} parent=5 // pred_check_branch
        %180 = sbr.rel (%p178) target = $region32
      $region31: #{tpu_custom_call.1} parent=5 // pred_region
        // Predicated region
        $region33: #{tpu_custom_call.1} parent=31 // pred_check
          %p181 = pneg %p34
        $region34: #{tpu_custom_call.1} parent=31 // pred_check_branch
          %183 = sbr.rel (%p181) target = $region36
        $region35: #{tpu_custom_call.1} parent=31 // pred_region
          %p184 = scmp.lt.s32.totalorder %s14, 1
          %s185 = scalar_select %p184, %s14, 1
          %s186 = smul.addr %s185, 8
          %s187 = scalar_lea.vmem %s0, %s186
        $region36: #{tpu_custom_call.1} parent=31 // pred_fallthru
          _
      $region32: #{tpu_custom_call.1} parent=5 // pred_fallthru
        _
      %p188 = scmp.le.s32.totalorder 1, %s14
      %p189 = scmp.lt.s32.totalorder %s14, 3
      %p190 = pnand %p188, %p189
      %p191 = pneg %p190
      // Predicated region
      $region37: #{tpu_custom_call.1} parent=5 // pred_check
        _
      $region38: #{tpu_custom_call.1} parent=5 // pred_check_branch
        %193 = sbr.rel (%p190) target = $region40
      $region39: #{tpu_custom_call.1} parent=5 // pred_region
        %s194 = ssub.s32 %s14, 1
        %p195 = scmp.lt.s32.totalorder %s19, 1
        %s196 = scalar_select %p195, %s19, 1
        %s197 = smul.addr %s196, 8
        %s198 = scalar_lea.vmem %s0, %s197
        %p199 = pneg %p40
        %p200 = pneg %p37
        %p201 = pneg %p61
        %p202 = pneg %p58
        %p203 = pneg %p82
        %p204 = pneg %p79
        %p205 = pneg %p103
        %p206 = pneg %p100
        %p207 = pneg %p124
        %p208 = pneg %p121
        %p209 = pneg %p150
        %p210 = pneg %p147
        %s211 = sand.u32 %s137, 1
        %s212 = scalar_lea.sflag [#allocation3], %s211
        %s213 = sand.u32 %s137, 1
        %s214 = smul.addr %s213, 8
        %s215 = scalar_lea.vmem [#allocation2], %s214
        %p216 = scmp.lt.s32.totalorder %s19, 1
        %s217 = scalar_select %p216, %s19, 1
        %s218 = smul.addr %s217, 8
        %s219 = scalar_lea.vmem %s0, %s218
        %v221 = vld [vmem:[%s219] sm:$0xff]
        %v222 = vpack.c.bf16 %v221, %v221
        %v223 = vld [vmem:[%s1] sm:$0xf]
        %v224 = vld [vmem:[%s1 + $0x4] sm:$0xf]
        %v225 = vld [vmem:[%s1 + $0x8] sm:$0xf]
        %v226 = vld [vmem:[%s1 + $0xc] sm:$0xf]
        %v227 = vld [vmem:[%s1 + $0x10] sm:$0xf]
        %v228 = vld [vmem:[%s1 + $0x14] sm:$0xf]
        %v229 = vld [vmem:[%s1 + $0x18] sm:$0xf]
        %v230 = vld [vmem:[%s1 + $0x1c] sm:$0xf]
        %v231 = vld [vmem:[%s1 + $0x20] sm:$0xf]
        %v232 = vld [vmem:[%s1 + $0x24] sm:$0xf]
        %v233 = vld [vmem:[%s1 + $0x28] sm:$0xf]
        %v234 = vld [vmem:[%s1 + $0x2c] sm:$0xf]
        %v235 = vld [vmem:[%s1 + $0x30] sm:$0xf]
        %v236 = vld [vmem:[%s1 + $0x34] sm:$0xf]
        %v237 = vld [vmem:[%s1 + $0x38] sm:$0xf]
        %v238 = vld [vmem:[%s1 + $0x3c] sm:$0xf]
        %v239 = vld [vmem:[%s1 + $0x40] sm:$0xf]
        %v240 = vld [vmem:[%s1 + $0x44] sm:$0xf]
        %v241 = vld [vmem:[%s1 + $0x48] sm:$0xf]
        %v242 = vld [vmem:[%s1 + $0x4c] sm:$0xf]
        %v243 = vld [vmem:[%s1 + $0x50] sm:$0xf]
        %v244 = vld [vmem:[%s1 + $0x54] sm:$0xf]
        %v245 = vld [vmem:[%s1 + $0x58] sm:$0xf]
        %v246 = vld [vmem:[%s1 + $0x5c] sm:$0xf]
        %v247 = vld [vmem:[%s1 + $0x60] sm:$0xf]
        %v248 = vld [vmem:[%s1 + $0x64] sm:$0xf]
        %v249 = vld [vmem:[%s1 + $0x68] sm:$0xf]
        %v250 = vld [vmem:[%s1 + $0x6c] sm:$0xf]
        %v251 = vld [vmem:[%s1 + $0x70] sm:$0xf]
        %v252 = vld [vmem:[%s1 + $0x74] sm:$0xf]
        %v253 = vld [vmem:[%s1 + $0x78] sm:$0xf]
        %v254 = vld [vmem:[%s1 + $0x7c] sm:$0xf]
        %v255 = vld [vmem:[%s1 + $0x80] sm:$0xf]
        %v256 = vld [vmem:[%s1 + $0x84] sm:$0xf]
        %v257 = vld [vmem:[%s1 + $0x88] sm:$0xf]
        %v258 = vld [vmem:[%s1 + $0x8c] sm:$0xf]
        %v259 = vld [vmem:[%s1 + $0x90] sm:$0xf]
        %v260 = vld [vmem:[%s1 + $0x94] sm:$0xf]
        %v261 = vld [vmem:[%s1 + $0x98] sm:$0xf]
        %v262 = vld [vmem:[%s1 + $0x9c] sm:$0xf]
        %v263 = vld [vmem:[%s1 + $0xa0] sm:$0xf]
        %v264 = vld [vmem:[%s1 + $0xa4] sm:$0xf]
        %v265 = vld [vmem:[%s1 + $0xa8] sm:$0xf]
        %v266 = vld [vmem:[%s1 + $0xac] sm:$0xf]
        %v267 = vld [vmem:[%s1 + $0xb0] sm:$0xf]
        %v268 = vld [vmem:[%s1 + $0xb4] sm:$0xf]
        %v269 = vld [vmem:[%s1 + $0xb8] sm:$0xf]
        %v270 = vld [vmem:[%s1 + $0xbc] sm:$0xf]
        %v271 = vld [vmem:[%s2] sm:$0xff]
        %v272 = vld [vmem:[%s2 + $0x8] sm:$0xff]
        %v273 = vld [vmem:[%s2 + $0x10] sm:$0xff]
        %v274 = vld [vmem:[%s2 + $0x18] sm:$0xff]
        %v275 = vld [vmem:[%s2 + $0x20] sm:$0xff]
        %v276 = vld [vmem:[%s2 + $0x28] sm:$0xff]
        %v277 = vld [vmem:[%s2 + $0x30] sm:$0xff]
        %v278 = vld [vmem:[%s2 + $0x38] sm:$0xff]
        %v279 = vld [vmem:[%s2 + $0x40] sm:$0xff]
        %v280 = vld [vmem:[%s2 + $0x48] sm:$0xff]
        %v281 = vld [vmem:[%s2 + $0x50] sm:$0xff]
        %v282 = vld [vmem:[%s2 + $0x58] sm:$0xff]
        %v283 = vld [vmem:[%s2 + $0x60] sm:$0xff]
        %v284 = vld [vmem:[%s2 + $0x68] sm:$0xff]
        %v285 = vld [vmem:[%s2 + $0x70] sm:$0xff]
        %v286 = vld [vmem:[%s2 + $0x78] sm:$0xff]
        %v287 = vld [vmem:[%s2 + $0x80] sm:$0xff]
        %v288 = vld [vmem:[%s2 + $0x88] sm:$0xff]
        %v289 = vld [vmem:[%s2 + $0x90] sm:$0xff]
        %v290 = vld [vmem:[%s2 + $0x98] sm:$0xff]
        %v291 = vld [vmem:[%s2 + $0xa0] sm:$0xff]
        %v292 = vld [vmem:[%s2 + $0xa8] sm:$0xff]
        %v293 = vld [vmem:[%s2 + $0xb0] sm:$0xff]
        %v294 = vld [vmem:[%s2 + $0xb8] sm:$0xff]
        %v295 = vld [vmem:[%s2 + $0xc0] sm:$0xff]
        %v296 = vld [vmem:[%s2 + $0xc8] sm:$0xff]
        %v297 = vld [vmem:[%s2 + $0xd0] sm:$0xff]
        %v298 = vld [vmem:[%s2 + $0xd8] sm:$0xff]
        %v299 = vld [vmem:[%s2 + $0xe0] sm:$0xff]
        %v300 = vld [vmem:[%s2 + $0xe8] sm:$0xff]
        %v301 = vld [vmem:[%s2 + $0xf0] sm:$0xff]
        %v302 = vld [vmem:[%s2 + $0xf8] sm:$0xff]
        %v303 = vld [vmem:[%s2 + $0x100] sm:$0xff]
        %v304 = vld [vmem:[%s2 + $0x108] sm:$0xff]
        %v305 = vld [vmem:[%s2 + $0x110] sm:$0xff]
        %v306 = vld [vmem:[%s2 + $0x118] sm:$0xff]
        %v307 = vld [vmem:[%s2 + $0x120] sm:$0xff]
        %v308 = vld [vmem:[%s2 + $0x128] sm:$0xff]
        %v309 = vld [vmem:[%s2 + $0x130] sm:$0xff]
        %v310 = vld [vmem:[%s2 + $0x138] sm:$0xff]
        %v311 = vld [vmem:[%s2 + $0x140] sm:$0xff]
        %v312 = vld [vmem:[%s2 + $0x148] sm:$0xff]
        %v313 = vld [vmem:[%s2 + $0x150] sm:$0xff]
        %v314 = vld [vmem:[%s2 + $0x158] sm:$0xff]
        %v315 = vld [vmem:[%s2 + $0x160] sm:$0xff]
        %v316 = vld [vmem:[%s2 + $0x168] sm:$0xff]
        %v317 = vld [vmem:[%s2 + $0x170] sm:$0xff]
        %v318 = vld [vmem:[%s2 + $0x178] sm:$0xff]
        %320 = vset.pattern.permute.xlu0 0
        %321 = vperm.xlu0 %320, %v271
        %v322 = vpop.permute.xlu0 %321
        %325 = vset.pattern.permute.xlu0 0
        %326 = vperm.xlu0 %325, %v272
        %v327 = vpop.permute.xlu0 %326
        %330 = vset.pattern.permute.xlu0 0
        %331 = vperm.xlu0 %330, %v273
        %v332 = vpop.permute.xlu0 %331
        %335 = vset.pattern.permute.xlu0 0
        %336 = vperm.xlu0 %335, %v274
        %v337 = vpop.permute.xlu0 %336
        %340 = vset.pattern.permute.xlu0 0
        %341 = vperm.xlu0 %340, %v275
        %v342 = vpop.permute.xlu0 %341
        %345 = vset.pattern.permute.xlu0 0
        %346 = vperm.xlu0 %345, %v276
        %v347 = vpop.permute.xlu0 %346
        %350 = vset.pattern.permute.xlu0 0
        %351 = vperm.xlu0 %350, %v277
        %v352 = vpop.permute.xlu0 %351
        %355 = vset.pattern.permute.xlu0 0
        %356 = vperm.xlu0 %355, %v278
        %v357 = vpop.permute.xlu0 %356
        %360 = vset.pattern.permute.xlu0 0
        %361 = vperm.xlu0 %360, %v279
        %v362 = vpop.permute.xlu0 %361
        %365 = vset.pattern.permute.xlu0 0
        %366 = vperm.xlu0 %365, %v280
        %v367 = vpop.permute.xlu0 %366
        %370 = vset.pattern.permute.xlu0 0
        %371 = vperm.xlu0 %370, %v281
        %v372 = vpop.permute.xlu0 %371
        %375 = vset.pattern.permute.xlu0 0
        %376 = vperm.xlu0 %375, %v282
        %v377 = vpop.permute.xlu0 %376
        %380 = vset.pattern.permute.xlu0 0
        %381 = vperm.xlu0 %380, %v283
        %v382 = vpop.permute.xlu0 %381
        %385 = vset.pattern.permute.xlu0 0
        %386 = vperm.xlu0 %385, %v284
        %v387 = vpop.permute.xlu0 %386
        %390 = vset.pattern.permute.xlu0 0
        %391 = vperm.xlu0 %390, %v285
        %v392 = vpop.permute.xlu0 %391
        %395 = vset.pattern.permute.xlu0 0
        %396 = vperm.xlu0 %395, %v286
        %v397 = vpop.permute.xlu0 %396
        %400 = vset.pattern.permute.xlu0 0
        %401 = vperm.xlu0 %400, %v287
        %v402 = vpop.permute.xlu0 %401
        %405 = vset.pattern.permute.xlu0 0
        %406 = vperm.xlu0 %405, %v288
        %v407 = vpop.permute.xlu0 %406
        %410 = vset.pattern.permute.xlu0 0
        %411 = vperm.xlu0 %410, %v289
        %v412 = vpop.permute.xlu0 %411
        %415 = vset.pattern.permute.xlu0 0
        %416 = vperm.xlu0 %415, %v290
        %v417 = vpop.permute.xlu0 %416
        %420 = vset.pattern.permute.xlu0 0
        %421 = vperm.xlu0 %420, %v291
        %v422 = vpop.permute.xlu0 %421
        %425 = vset.pattern.permute.xlu0 0
        %426 = vperm.xlu0 %425, %v292
        %v427 = vpop.permute.xlu0 %426
        %430 = vset.pattern.permute.xlu0 0
        %431 = vperm.xlu0 %430, %v293
        %v432 = vpop.permute.xlu0 %431
        %435 = vset.pattern.permute.xlu0 0
        %436 = vperm.xlu0 %435, %v294
        %v437 = vpop.permute.xlu0 %436
        %440 = vset.pattern.permute.xlu0 0
        %441 = vperm.xlu0 %440, %v295
        %v442 = vpop.permute.xlu0 %441
        %445 = vset.pattern.permute.xlu0 0
        %446 = vperm.xlu0 %445, %v296
        %v447 = vpop.permute.xlu0 %446
        %450 = vset.pattern.permute.xlu0 0
        %451 = vperm.xlu0 %450, %v297
        %v452 = vpop.permute.xlu0 %451
        %455 = vset.pattern.permute.xlu0 0
        %456 = vperm.xlu0 %455, %v298
        %v457 = vpop.permute.xlu0 %456
        %460 = vset.pattern.permute.xlu0 0
        %461 = vperm.xlu0 %460, %v299
        %v462 = vpop.permute.xlu0 %461
        %465 = vset.pattern.permute.xlu0 0
        %466 = vperm.xlu0 %465, %v300
        %v467 = vpop.permute.xlu0 %466
        %470 = vset.pattern.permute.xlu0 0
        %471 = vperm.xlu0 %470, %v301
        %v472 = vpop.permute.xlu0 %471
        %475 = vset.pattern.permute.xlu0 0
        %476 = vperm.xlu0 %475, %v302
        %v477 = vpop.permute.xlu0 %476
        %480 = vset.pattern.permute.xlu0 0
        %481 = vperm.xlu0 %480, %v303
        %v482 = vpop.permute.xlu0 %481
        %485 = vset.pattern.permute.xlu0 0
        %486 = vperm.xlu0 %485, %v304
        %v487 = vpop.permute.xlu0 %486
        %490 = vset.pattern.permute.xlu0 0
        %491 = vperm.xlu0 %490, %v305
        %v492 = vpop.permute.xlu0 %491
        %495 = vset.pattern.permute.xlu0 0
        %496 = vperm.xlu0 %495, %v306
        %v497 = vpop.permute.xlu0 %496
        %500 = vset.pattern.permute.xlu0 0
        %501 = vperm.xlu0 %500, %v307
        %v502 = vpop.permute.xlu0 %501
        %505 = vset.pattern.permute.xlu0 0
        %506 = vperm.xlu0 %505, %v308
        %v507 = vpop.permute.xlu0 %506
        %510 = vset.pattern.permute.xlu0 0
        %511 = vperm.xlu0 %510, %v309
        %v512 = vpop.permute.xlu0 %511
        %515 = vset.pattern.permute.xlu0 0
        %516 = vperm.xlu0 %515, %v310
        %v517 = vpop.permute.xlu0 %516
        %520 = vset.pattern.permute.xlu0 0
        %521 = vperm.xlu0 %520, %v311
        %v522 = vpop.permute.xlu0 %521
        %525 = vset.pattern.permute.xlu0 0
        %526 = vperm.xlu0 %525, %v312
        %v527 = vpop.permute.xlu0 %526
        %530 = vset.pattern.permute.xlu0 0
        %531 = vperm.xlu0 %530, %v313
        %v532 = vpop.permute.xlu0 %531
        %535 = vset.pattern.permute.xlu0 0
        %536 = vperm.xlu0 %535, %v314
        %v537 = vpop.permute.xlu0 %536
        %540 = vset.pattern.permute.xlu0 0
        %541 = vperm.xlu0 %540, %v315
        %v542 = vpop.permute.xlu0 %541
        %545 = vset.pattern.permute.xlu0 0
        %546 = vperm.xlu0 %545, %v316
        %v547 = vpop.permute.xlu0 %546
        %550 = vset.pattern.permute.xlu0 0
        %551 = vperm.xlu0 %550, %v317
        %v552 = vpop.permute.xlu0 %551
        %555 = vset.pattern.permute.xlu0 0
        %556 = vperm.xlu0 %555, %v318
        %v557 = vpop.permute.xlu0 %556
        %v607 = vunpack.c.l.b16 %v223
        %v608 = vunpack.c.l.b16 %v224
        %v609 = vunpack.c.l.b16 %v225
        %v610 = vunpack.c.l.b16 %v226
        %v611 = vunpack.c.l.b16 %v227
        %v612 = vunpack.c.l.b16 %v228
        %v613 = vunpack.c.l.b16 %v229
        %v614 = vunpack.c.l.b16 %v230
        %v615 = vunpack.c.l.b16 %v231
        %v616 = vunpack.c.l.b16 %v232
        %v617 = vunpack.c.l.b16 %v233
        %v618 = vunpack.c.l.b16 %v234
        %v619 = vunpack.c.l.b16 %v235
        %v620 = vunpack.c.l.b16 %v236
        %v621 = vunpack.c.l.b16 %v237
        %v622 = vunpack.c.l.b16 %v238
        %v623 = vunpack.c.l.b16 %v239
        %v624 = vunpack.c.l.b16 %v240
        %v625 = vunpack.c.l.b16 %v241
        %v626 = vunpack.c.l.b16 %v242
        %v627 = vunpack.c.l.b16 %v243
        %v628 = vunpack.c.l.b16 %v244
        %v629 = vunpack.c.l.b16 %v245
        %v630 = vunpack.c.l.b16 %v246
        %v631 = vunpack.c.l.b16 %v247
        %v632 = vunpack.c.l.b16 %v248
        %v633 = vunpack.c.l.b16 %v249
        %v634 = vunpack.c.l.b16 %v250
        %v635 = vunpack.c.l.b16 %v251
        %v636 = vunpack.c.l.b16 %v252
        %v637 = vunpack.c.l.b16 %v253
        %v638 = vunpack.c.l.b16 %v254
        %v639 = vunpack.c.l.b16 %v255
        %v640 = vunpack.c.l.b16 %v256
        %v641 = vunpack.c.l.b16 %v257
        %v642 = vunpack.c.l.b16 %v258
        %v643 = vunpack.c.l.b16 %v259
        %v644 = vunpack.c.l.b16 %v260
        %v645 = vunpack.c.l.b16 %v261
        %v646 = vunpack.c.l.b16 %v262
        %v647 = vunpack.c.l.b16 %v263
        %v648 = vunpack.c.l.b16 %v264
        %v649 = vunpack.c.l.b16 %v265
        %v650 = vunpack.c.l.b16 %v266
        %v651 = vunpack.c.l.b16 %v267
        %v652 = vunpack.c.l.b16 %v268
        %v653 = vunpack.c.l.b16 %v269
        %v654 = vunpack.c.l.b16 %v270
        %v655 = vpack.c.b16 %v608, %v607
        %v656 = vpack.c.b16 %v610, %v609
        %v657 = vpack.c.b16 %v612, %v611
        %v658 = vpack.c.b16 %v614, %v613
        %v659 = vpack.c.b16 %v616, %v615
        %v660 = vpack.c.b16 %v618, %v617
        %v661 = vpack.c.b16 %v620, %v619
        %v662 = vpack.c.b16 %v622, %v621
        %v663 = vpack.c.b16 %v624, %v623
        %v664 = vpack.c.b16 %v626, %v625
        %v665 = vpack.c.b16 %v628, %v627
        %v666 = vpack.c.b16 %v630, %v629
        %v667 = vpack.c.b16 %v632, %v631
        %v668 = vpack.c.b16 %v634, %v633
        %v669 = vpack.c.b16 %v636, %v635
        %v670 = vpack.c.b16 %v638, %v637
        %v671 = vpack.c.b16 %v640, %v639
        %v672 = vpack.c.b16 %v642, %v641
        %v673 = vpack.c.b16 %v644, %v643
        %v674 = vpack.c.b16 %v646, %v645
        %v675 = vpack.c.b16 %v648, %v647
        %v676 = vpack.c.b16 %v650, %v649
        %v677 = vpack.c.b16 %v652, %v651
        %v678 = vpack.c.b16 %v654, %v653
        %703 = vmatpush.bf16.xpose.msra.mxu0 0
        %704 = vmatpush.bf16.xpose.msra.mxu0 0
        %705 = vmatpush.bf16.xpose.msra.mxu0 0
        %706 = vmatpush.bf16.xpose.msra.mxu0 0
        %707 = vmatpush.bf16.xpose.msra.mxu0 0
        %708 = vmatpush.bf16.xpose.msra.mxu0 0
        %709 = vmatpush.bf16.xpose.msra.mxu0 0
        %710 = vmatpush.bf16.xpose.msra.mxu0 %v222
        %711 = vmatmul.bf16.gmra.mxu0 %v655
        %v712 = vpop.f32.mrf.mxu0
        %v713 = vadd.f32 %v322, %v712
        %v714 = vpop.f32.mrf.mxu0
        %v715 = vadd.f32 %v327, %v714
        %716 = vmatmul.bf16.gmra.mxu0 %v656
        %v717 = vpop.f32.mrf.mxu0
        %v718 = vadd.f32 %v332, %v717
        %v719 = vpop.f32.mrf.mxu0
        %v720 = vadd.f32 %v337, %v719
        %721 = vmatmul.bf16.gmra.mxu0 %v657
        %v722 = vpop.f32.mrf.mxu0
        %v723 = vadd.f32 %v342, %v722
        %v724 = vpop.f32.mrf.mxu0
        %v725 = vadd.f32 %v347, %v724
        %726 = vmatmul.bf16.gmra.mxu0 %v658
        %v727 = vpop.f32.mrf.mxu0
        %v728 = vadd.f32 %v352, %v727
        %v729 = vpop.f32.mrf.mxu0
        %v730 = vadd.f32 %v357, %v729
        %731 = vmatmul.bf16.gmra.mxu0 %v659
        %v732 = vpop.f32.mrf.mxu0
        %v733 = vadd.f32 %v362, %v732
        %v734 = vpop.f32.mrf.mxu0
        %v735 = vadd.f32 %v367, %v734
        %736 = vmatmul.bf16.gmra.mxu0 %v660
        %v737 = vpop.f32.mrf.mxu0
        %v738 = vadd.f32 %v372, %v737
        %v739 = vpop.f32.mrf.mxu0
        %v740 = vadd.f32 %v377, %v739
        %741 = vmatmul.bf16.gmra.mxu0 %v661
        %v742 = vpop.f32.mrf.mxu0
        %v743 = vadd.f32 %v382, %v742
        %v744 = vpop.f32.mrf.mxu0
        %v745 = vadd.f32 %v387, %v744
        %746 = vmatmul.bf16.gmra.mxu0 %v662
        %v747 = vpop.f32.mrf.mxu0
        %v748 = vadd.f32 %v392, %v747
        %v749 = vpop.f32.mrf.mxu0
        %v750 = vadd.f32 %v397, %v749
        %751 = vmatmul.bf16.gmra.mxu0 %v663
        %v752 = vpop.f32.mrf.mxu0
        %v753 = vadd.f32 %v402, %v752
        %v754 = vpop.f32.mrf.mxu0
        %v755 = vadd.f32 %v407, %v754
        %756 = vmatmul.bf16.gmra.mxu0 %v664
        %v757 = vpop.f32.mrf.mxu0
        %v758 = vadd.f32 %v412, %v757
        %v759 = vpop.f32.mrf.mxu0
        %v760 = vadd.f32 %v417, %v759
        %761 = vmatmul.bf16.gmra.mxu0 %v665
        %v762 = vpop.f32.mrf.mxu0
        %v763 = vadd.f32 %v422, %v762
        %v764 = vpop.f32.mrf.mxu0
        %v765 = vadd.f32 %v427, %v764
        %766 = vmatmul.bf16.gmra.mxu0 %v666
        %v767 = vpop.f32.mrf.mxu0
        %v768 = vadd.f32 %v432, %v767
        %v769 = vpop.f32.mrf.mxu0
        %v770 = vadd.f32 %v437, %v769
        %771 = vmatmul.bf16.gmra.mxu0 %v667
        %v772 = vpop.f32.mrf.mxu0
        %v773 = vadd.f32 %v442, %v772
        %v774 = vpop.f32.mrf.mxu0
        %v775 = vadd.f32 %v447, %v774
        %776 = vmatmul.bf16.gmra.mxu0 %v668
        %v777 = vpop.f32.mrf.mxu0
        %v778 = vadd.f32 %v452, %v777
        %v779 = vpop.f32.mrf.mxu0
        %v780 = vadd.f32 %v457, %v779
        %781 = vmatmul.bf16.gmra.mxu0 %v669
        %v782 = vpop.f32.mrf.mxu0
        %v783 = vadd.f32 %v462, %v782
        %v784 = vpop.f32.mrf.mxu0
        %v785 = vadd.f32 %v467, %v784
        %786 = vmatmul.bf16.gmra.mxu0 %v670
        %v787 = vpop.f32.mrf.mxu0
        %v788 = vadd.f32 %v472, %v787
        %v789 = vpop.f32.mrf.mxu0
        %v790 = vadd.f32 %v477, %v789
        %791 = vmatmul.bf16.gmra.mxu0 %v671
        %v792 = vpop.f32.mrf.mxu0
        %v793 = vadd.f32 %v482, %v792
        %v794 = vpop.f32.mrf.mxu0
        %v795 = vadd.f32 %v487, %v794
        %796 = vmatmul.bf16.gmra.mxu0 %v672
        %v797 = vpop.f32.mrf.mxu0
        %v798 = vadd.f32 %v492, %v797
        %v799 = vpop.f32.mrf.mxu0
        %v800 = vadd.f32 %v497, %v799
        %801 = vmatmul.bf16.gmra.mxu0 %v673
        %v802 = vpop.f32.mrf.mxu0
        %v803 = vadd.f32 %v502, %v802
        %v804 = vpop.f32.mrf.mxu0
        %v805 = vadd.f32 %v507, %v804
        %806 = vmatmul.bf16.gmra.mxu0 %v674
        %v807 = vpop.f32.mrf.mxu0
        %v808 = vadd.f32 %v512, %v807
        %v809 = vpop.f32.mrf.mxu0
        %v810 = vadd.f32 %v517, %v809
        %811 = vmatmul.bf16.gmra.mxu0 %v675
        %v812 = vpop.f32.mrf.mxu0
        %v813 = vadd.f32 %v522, %v812
        %v814 = vpop.f32.mrf.mxu0
        %v815 = vadd.f32 %v527, %v814
        %816 = vmatmul.bf16.gmra.mxu0 %v676
        %v817 = vpop.f32.mrf.mxu0
        %v818 = vadd.f32 %v532, %v817
        %v819 = vpop.f32.mrf.mxu0
        %v820 = vadd.f32 %v537, %v819
        %821 = vmatmul.bf16.gmra.mxu0 %v677
        %v822 = vpop.f32.mrf.mxu0
        %v823 = vadd.f32 %v542, %v822
        %v824 = vpop.f32.mrf.mxu0
        %v825 = vadd.f32 %v547, %v824
        %826 = vmatmul.bf16.gmra.mxu0 %v678
        %v827 = vpop.f32.mrf.mxu0
        %v828 = vadd.f32 %v552, %v827
        %v829 = vpop.f32.mrf.mxu0
        %v830 = vadd.f32 %v557, %v829
        %831 = vdwg.mxu0
        %v832 = vmul.f32 %v713, 0.17677669
        %v833 = vmul.f32 %v715, 0.17677669
        %v834 = vmul.f32 %v718, 0.17677669
        %v835 = vmul.f32 %v720, 0.17677669
        %v836 = vmul.f32 %v723, 0.17677669
        %v837 = vmul.f32 %v725, 0.17677669
        %v838 = vmul.f32 %v728, 0.17677669
        %v839 = vmul.f32 %v730, 0.17677669
        %v840 = vmul.f32 %v733, 0.17677669
        %v841 = vmul.f32 %v735, 0.17677669
        %v842 = vmul.f32 %v738, 0.17677669
        %v843 = vmul.f32 %v740, 0.17677669
        %v844 = vmul.f32 %v743, 0.17677669
        %v845 = vmul.f32 %v745, 0.17677669
        %v846 = vmul.f32 %v748, 0.17677669
        %v847 = vmul.f32 %v750, 0.17677669
        %848 = vxpose.xlu0.b32.start [1/16] %v832, 128
        %849 = vxpose.xlu0.b32.cont [2/16] %v833, 128
        %850 = vxpose.xlu0.b32.cont [3/16] %v834, 128
        %851 = vxpose.xlu0.b32.cont [4/16] %v835, 128
        %852 = vxpose.xlu0.b32.cont [5/16] 0.0, 128
        %853 = vxpose.xlu0.b32.cont [6/16] 0.0, 128
        %854 = vxpose.xlu0.b32.cont [7/16] 0.0, 128
        %855 = vxpose.xlu0.b32.cont [8/16] 0.0, 128
        %856 = vxpose.xlu0.b32.cont [9/16] 0.0, 128
        %857 = vxpose.xlu0.b32.cont [10/16] 0.0, 128
        %858 = vxpose.xlu0.b32.cont [11/16] 0.0, 128
        %859 = vxpose.xlu0.b32.cont [12/16] 0.0, 128
        %860 = vxpose.xlu0.b32.cont [13/16] 0.0, 128
        %861 = vxpose.xlu0.b32.cont [14/16] 0.0, 128
        %862 = vxpose.xlu0.b32.cont [15/16] 0.0, 128
        %863 = vxpose.xlu0.b32.end [16/16] 0.0, 128
        %v864 = vpop.trf.xlu0
        %v865 = vpop.trf.xlu0
        %v866 = vpop.trf.xlu0
        %v867 = vpop.trf.xlu0
        %v868 = vpop.trf.xlu0
        %v869 = vpop.trf.xlu0
        %v870 = vpop.trf.xlu0
        %v871 = vpop.trf.xlu0
        %v872 = vpop.trf.xlu0
        %v873 = vpop.trf.xlu0
        %v874 = vpop.trf.xlu0
        %v875 = vpop.trf.xlu0
        %v876 = vpop.trf.xlu0
        %v877 = vpop.trf.xlu0
        %v878 = vpop.trf.xlu0
        %v879 = vpop.trf.xlu0
        %880 = vxpose.xlu0.b32.start [1/16] %v836, 128
        %881 = vxpose.xlu0.b32.cont [2/16] %v837, 128
        %882 = vxpose.xlu0.b32.cont [3/16] %v838, 128
        %883 = vxpose.xlu0.b32.cont [4/16] %v839, 128
        %884 = vxpose.xlu0.b32.cont [5/16] 0.0, 128
        %885 = vxpose.xlu0.b32.cont [6/16] 0.0, 128
        %886 = vxpose.xlu0.b32.cont [7/16] 0.0, 128
        %887 = vxpose.xlu0.b32.cont [8/16] 0.0, 128
        %888 = vxpose.xlu0.b32.cont [9/16] 0.0, 128
        %889 = vxpose.xlu0.b32.cont [10/16] 0.0, 128
        %890 = vxpose.xlu0.b32.cont [11/16] 0.0, 128
        %891 = vxpose.xlu0.b32.cont [12/16] 0.0, 128
        %892 = vxpose.xlu0.b32.cont [13/16] 0.0, 128
        %893 = vxpose.xlu0.b32.cont [14/16] 0.0, 128
        %894 = vxpose.xlu0.b32.cont [15/16] 0.0, 128
        %895 = vxpose.xlu0.b32.end [16/16] 0.0, 128
        %v896 = vpop.trf.xlu0
        %v897 = vpop.trf.xlu0
        %v898 = vpop.trf.xlu0
        %v899 = vpop.trf.xlu0
        %v900 = vpop.trf.xlu0
        %v901 = vpop.trf.xlu0
        %v902 = vpop.trf.xlu0
        %v903 = vpop.trf.xlu0
        %v904 = vpop.trf.xlu0
        %v905 = vpop.trf.xlu0
        %v906 = vpop.trf.xlu0
        %v907 = vpop.trf.xlu0
        %v908 = vpop.trf.xlu0
        %v909 = vpop.trf.xlu0
        %v910 = vpop.trf.xlu0
        %v911 = vpop.trf.xlu0
        %912 = vxpose.xlu0.b32.start [1/16] %v840, 128
        %913 = vxpose.xlu0.b32.cont [2/16] %v841, 128
        %914 = vxpose.xlu0.b32.cont [3/16] %v842, 128
        %915 = vxpose.xlu0.b32.cont [4/16] %v843, 128
        %916 = vxpose.xlu0.b32.cont [5/16] 0.0, 128
        %917 = vxpose.xlu0.b32.cont [6/16] 0.0, 128
        %918 = vxpose.xlu0.b32.cont [7/16] 0.0, 128
        %919 = vxpose.xlu0.b32.cont [8/16] 0.0, 128
        %920 = vxpose.xlu0.b32.cont [9/16] 0.0, 128
        %921 = vxpose.xlu0.b32.cont [10/16] 0.0, 128
        %922 = vxpose.xlu0.b32.cont [11/16] 0.0, 128
        %923 = vxpose.xlu0.b32.cont [12/16] 0.0, 128
        %924 = vxpose.xlu0.b32.cont [13/16] 0.0, 128
        %925 = vxpose.xlu0.b32.cont [14/16] 0.0, 128
        %926 = vxpose.xlu0.b32.cont [15/16] 0.0, 128
        %927 = vxpose.xlu0.b32.end [16/16] 0.0, 128
        %v928 = vpop.trf.xlu0
        %v929 = vpop.trf.xlu0
        %v930 = vpop.trf.xlu0
        %v931 = vpop.trf.xlu0
        %v932 = vpop.trf.xlu0
        %v933 = vpop.trf.xlu0
        %v934 = vpop.trf.xlu0
        %v935 = vpop.trf.xlu0
        %v936 = vpop.trf.xlu0
        %v937 = vpop.trf.xlu0
        %v938 = vpop.trf.xlu0
        %v939 = vpop.trf.xlu0
        %v940 = vpop.trf.xlu0
        %v941 = vpop.trf.xlu0
        %v942 = vpop.trf.xlu0
        %v943 = vpop.trf.xlu0
        %944 = vxpose.xlu0.b32.start [1/16] %v844, 128
        %945 = vxpose.xlu0.b32.cont [2/16] %v845, 128
        %946 = vxpose.xlu0.b32.cont [3/16] %v846, 128
        %947 = vxpose.xlu0.b32.cont [4/16] %v847, 128
        %948 = vxpose.xlu0.b32.cont [5/16] 0.0, 128
        %949 = vxpose.xlu0.b32.cont [6/16] 0.0, 128
        %950 = vxpose.xlu0.b32.cont [7/16] 0.0, 128
        %951 = vxpose.xlu0.b32.cont [8/16] 0.0, 128
        %952 = vxpose.xlu0.b32.cont [9/16] 0.0, 128
        %953 = vxpose.xlu0.b32.cont [10/16] 0.0, 128
        %954 = vxpose.xlu0.b32.cont [11/16] 0.0, 128
        %955 = vxpose.xlu0.b32.cont [12/16] 0.0, 128
        %956 = vxpose.xlu0.b32.cont [13/16] 0.0, 128
        %957 = vxpose.xlu0.b32.cont [14/16] 0.0, 128
        %958 = vxpose.xlu0.b32.cont [15/16] 0.0, 128
        %959 = vxpose.xlu0.b32.end [16/16] 0.0, 128
        %v960 = vpop.trf.xlu0
        %v961 = vpop.trf.xlu0
        %v962 = vpop.trf.xlu0
        %v963 = vpop.trf.xlu0
        %v964 = vpop.trf.xlu0
        %v965 = vpop.trf.xlu0
        %v966 = vpop.trf.xlu0
        %v967 = vpop.trf.xlu0
        %v968 = vpop.trf.xlu0
        %v969 = vpop.trf.xlu0
        %v970 = vpop.trf.xlu0
        %v971 = vpop.trf.xlu0
        %v972 = vpop.trf.xlu0
        %v973 = vpop.trf.xlu0
        %v974 = vpop.trf.xlu0
        %v975 = vpop.trf.xlu0
        %v976 = vpack.c.bf16 %v864, %v864
        %v977 = vpack.c.bf16 %v896, %v896
        %v978 = vpack.c.bf16 %v928, %v928
        %v979 = vpack.c.bf16 %v960, %v960
        %980 = vxpose.xlu0.b32.start [1/16] %v753, 128
        %981 = vxpose.xlu0.b32.cont [2/16] %v755, 128
        %982 = vxpose.xlu0.b32.cont [3/16] %v758, 128
        %983 = vxpose.xlu0.b32.cont [4/16] %v760, 128
        %984 = vxpose.xlu0.b32.cont [5/16] 0.0, 128
        %985 = vxpose.xlu0.b32.cont [6/16] 0.0, 128
        %986 = vxpose.xlu0.b32.cont [7/16] 0.0, 128
        %987 = vxpose.xlu0.b32.cont [8/16] 0.0, 128
        %988 = vxpose.xlu0.b32.cont [9/16] 0.0, 128
        %989 = vxpose.xlu0.b32.cont [10/16] 0.0, 128
        %990 = vxpose.xlu0.b32.cont [11/16] 0.0, 128
        %991 = vxpose.xlu0.b32.cont [12/16] 0.0, 128
        %992 = vxpose.xlu0.b32.cont [13/16] 0.0, 128
        %993 = vxpose.xlu0.b32.cont [14/16] 0.0, 128
        %994 = vxpose.xlu0.b32.cont [15/16] 0.0, 128
        %995 = vxpose.xlu0.b32.end [16/16] 0.0, 128
        %v996 = vpop.trf.xlu0
        %v997 = vpop.trf.xlu0
        %v998 = vpop.trf.xlu0
        %v999 = vpop.trf.xlu0
        %v1000 = vpop.trf.xlu0
        %v1001 = vpop.trf.xlu0
        %v1002 = vpop.trf.xlu0
        %v1003 = vpop.trf.xlu0
        %v1004 = vpop.trf.xlu0
        %v1005 = vpop.trf.xlu0
        %v1006 = vpop.trf.xlu0
        %v1007 = vpop.trf.xlu0
        %v1008 = vpop.trf.xlu0
        %v1009 = vpop.trf.xlu0
        %v1010 = vpop.trf.xlu0
        %v1011 = vpop.trf.xlu0
        %1012 = vxpose.xlu0.b32.start [1/16] %v763, 128
        %1013 = vxpose.xlu0.b32.cont [2/16] %v765, 128
        %1014 = vxpose.xlu0.b32.cont [3/16] %v768, 128
        %1015 = vxpose.xlu0.b32.cont [4/16] %v770, 128
        %1016 = vxpose.xlu0.b32.cont [5/16] 0.0, 128
        %1017 = vxpose.xlu0.b32.cont [6/16] 0.0, 128
        %1018 = vxpose.xlu0.b32.cont [7/16] 0.0, 128
        %1019 = vxpose.xlu0.b32.cont [8/16] 0.0, 128
        %1020 = vxpose.xlu0.b32.cont [9/16] 0.0, 128
        %1021 = vxpose.xlu0.b32.cont [10/16] 0.0, 128
        %1022 = vxpose.xlu0.b32.cont [11/16] 0.0, 128
        %1023 = vxpose.xlu0.b32.cont [12/16] 0.0, 128
        %1024 = vxpose.xlu0.b32.cont [13/16] 0.0, 128
        %1025 = vxpose.xlu0.b32.cont [14/16] 0.0, 128
        %1026 = vxpose.xlu0.b32.cont [15/16] 0.0, 128
        %1027 = vxpose.xlu0.b32.end [16/16] 0.0, 128
        %v1028 = vpop.trf.xlu0
        %v1029 = vpop.trf.xlu0
        %v1030 = vpop.trf.xlu0
        %v1031 = vpop.trf.xlu0
        %v1032 = vpop.trf.xlu0
        %v1033 = vpop.trf.xlu0
        %v1034 = vpop.trf.xlu0
        %v1035 = vpop.trf.xlu0
        %v1036 = vpop.trf.xlu0
        %v1037 = vpop.trf.xlu0
        %v1038 = vpop.trf.xlu0
        %v1039 = vpop.trf.xlu0
        %v1040 = vpop.trf.xlu0
        %v1041 = vpop.trf.xlu0
        %v1042 = vpop.trf.xlu0
        %v1043 = vpop.trf.xlu0
        %1044 = vxpose.xlu0.b32.start [1/16] %v773, 128
        %1045 = vxpose.xlu0.b32.cont [2/16] %v775, 128
        %1046 = vxpose.xlu0.b32.cont [3/16] %v778, 128
        %1047 = vxpose.xlu0.b32.cont [4/16] %v780, 128
        %1048 = vxpose.xlu0.b32.cont [5/16] 0.0, 128
        %1049 = vxpose.xlu0.b32.cont [6/16] 0.0, 128
        %1050 = vxpose.xlu0.b32.cont [7/16] 0.0, 128
        %1051 = vxpose.xlu0.b32.cont [8/16] 0.0, 128
        %1052 = vxpose.xlu0.b32.cont [9/16] 0.0, 128
        %1053 = vxpose.xlu0.b32.cont [10/16] 0.0, 128
        %1054 = vxpose.xlu0.b32.cont [11/16] 0.0, 128
        %1055 = vxpose.xlu0.b32.cont [12/16] 0.0, 128
        %1056 = vxpose.xlu0.b32.cont [13/16] 0.0, 128
        %1057 = vxpose.xlu0.b32.cont [14/16] 0.0, 128
        %1058 = vxpose.xlu0.b32.cont [15/16] 0.0, 128
        %1059 = vxpose.xlu0.b32.end [16/16] 0.0, 128
        %v1060 = vpop.trf.xlu0
        %v1061 = vpop.trf.xlu0
        %v1062 = vpop.trf.xlu0
        %v1063 = vpop.trf.xlu0
        %v1064 = vpop.trf.xlu0
        %v1065 = vpop.trf.xlu0
        %v1066 = vpop.trf.xlu0
        %v1067 = vpop.trf.xlu0
        %v1068 = vpop.trf.xlu0
        %v1069 = vpop.trf.xlu0
        %v1070 = vpop.trf.xlu0
        %v1071 = vpop.trf.xlu0
        %v1072 = vpop.trf.xlu0
        %v1073 = vpop.trf.xlu0
        %v1074 = vpop.trf.xlu0
        %v1075 = vpop.trf.xlu0
        %1076 = vxpose.xlu0.b32.start [1/16] %v783, 128
        %1077 = vxpose.xlu0.b32.cont [2/16] %v785, 128
        %1078 = vxpose.xlu0.b32.cont [3/16] %v788, 128
        %1079 = vxpose.xlu0.b32.cont [4/16] %v790, 128
        %1080 = vxpose.xlu0.b32.cont [5/16] 0.0, 128
        %1081 = vxpose.xlu0.b32.cont [6/16] 0.0, 128
        %1082 = vxpose.xlu0.b32.cont [7/16] 0.0, 128
        %1083 = vxpose.xlu0.b32.cont [8/16] 0.0, 128
        %1084 = vxpose.xlu0.b32.cont [9/16] 0.0, 128
        %1085 = vxpose.xlu0.b32.cont [10/16] 0.0, 128
        %1086 = vxpose.xlu0.b32.cont [11/16] 0.0, 128
        %1087 = vxpose.xlu0.b32.cont [12/16] 0.0, 128
        %1088 = vxpose.xlu0.b32.cont [13/16] 0.0, 128
        %1089 = vxpose.xlu0.b32.cont [14/16] 0.0, 128
        %1090 = vxpose.xlu0.b32.cont [15/16] 0.0, 128
        %1091 = vxpose.xlu0.b32.end [16/16] 0.0, 128
        %v1092 = vpop.trf.xlu0
        %v1093 = vpop.trf.xlu0
        %v1094 = vpop.trf.xlu0
        %v1095 = vpop.trf.xlu0
        %v1096 = vpop.trf.xlu0
        %v1097 = vpop.trf.xlu0
        %v1098 = vpop.trf.xlu0
        %v1099 = vpop.trf.xlu0
        %v1100 = vpop.trf.xlu0
        %v1101 = vpop.trf.xlu0
        %v1102 = vpop.trf.xlu0
        %v1103 = vpop.trf.xlu0
        %v1104 = vpop.trf.xlu0
        %v1105 = vpop.trf.xlu0
        %v1106 = vpop.trf.xlu0
        %v1107 = vpop.trf.xlu0
        %v1108 = vpack.c.bf16 %v996, %v996
        %v1109 = vpack.c.bf16 %v1028, %v1028
        %v1110 = vpack.c.bf16 %v1060, %v1060
        %v1111 = vpack.c.bf16 %v1092, %v1092
        %v1112 = vpack.c.bf16 %v793, %v793
        %v1113 = vpack.c.bf16 %v795, %v795
        %v1114 = vpack.c.bf16 %v798, %v798
        %v1115 = vpack.c.bf16 %v800, %v800
        %v1116 = vpack.c.bf16 %v803, %v803
        %v1117 = vpack.c.bf16 %v805, %v805
        %v1118 = vpack.c.bf16 %v808, %v808
        %v1119 = vpack.c.bf16 %v810, %v810
        %v1120 = vpack.c.bf16 %v813, %v813
        %v1121 = vpack.c.bf16 %v815, %v815
        %v1122 = vpack.c.bf16 %v818, %v818
        %v1123 = vpack.c.bf16 %v820, %v820
        %v1124 = vpack.c.bf16 %v823, %v823
        %v1125 = vpack.c.bf16 %v825, %v825
        %v1126 = vpack.c.bf16 %v828, %v828
        %v1127 = vpack.c.bf16 %v830, %v830
        %vm1128 = vcmask 261120
        %v1130 = vsel %vm1128, %v976, 0
        %v1133 = vsel %vm1128, %v1108, 0
        %1135 = vmatpush.bf16.xpose.msra.mxu0 0
        %1136 = vmatpush.bf16.xpose.msra.mxu0 0
        %1137 = vmatpush.bf16.xpose.msra.mxu0 0
        %1138 = vmatpush.bf16.xpose.msra.mxu0 0
        %1139 = vmatpush.bf16.xpose.msra.mxu0 0
        %1140 = vmatpush.bf16.xpose.msra.mxu0 0
        %1141 = vmatpush.bf16.xpose.msra.mxu0 0
        %1142 = vmatpush.bf16.xpose.msra.mxu0 %v1133
        %1143 = vmatmul.bf16.gmra.mxu0 %v1130
        %v1144 = vpop.f32.mrf.mxu0
        %v1145 = vadd.f32 0.0, %v1144
        %v1146 = vpop.f32.mrf.mxu0
        %1147 = vdwg.mxu0
        %v1149 = vsel %vm1128, %v977, 0
        %v1152 = vsel %vm1128, %v1109, 0
        %1154 = vmatpush.bf16.xpose.msra.mxu0 0
        %1155 = vmatpush.bf16.xpose.msra.mxu0 0
        %1156 = vmatpush.bf16.xpose.msra.mxu0 0
        %1157 = vmatpush.bf16.xpose.msra.mxu0 0
        %1158 = vmatpush.bf16.xpose.msra.mxu0 0
        %1159 = vmatpush.bf16.xpose.msra.mxu0 0
        %1160 = vmatpush.bf16.xpose.msra.mxu0 0
        %1161 = vmatpush.bf16.xpose.msra.mxu0 %v1152
        %1162 = vmatmul.bf16.gmra.mxu0 %v1149
        %v1163 = vpop.f32.mrf.mxu0
        %v1164 = vadd.f32 0.0, %v1163
        %v1165 = vpop.f32.mrf.mxu0
        %1166 = vdwg.mxu0
        %v1168 = vsel %vm1128, %v978, 0
        %v1171 = vsel %vm1128, %v1110, 0
        %1173 = vmatpush.bf16.xpose.msra.mxu0 0
        %1174 = vmatpush.bf16.xpose.msra.mxu0 0
        %1175 = vmatpush.bf16.xpose.msra.mxu0 0
        %1176 = vmatpush.bf16.xpose.msra.mxu0 0
        %1177 = vmatpush.bf16.xpose.msra.mxu0 0
        %1178 = vmatpush.bf16.xpose.msra.mxu0 0
        %1179 = vmatpush.bf16.xpose.msra.mxu0 0
        %1180 = vmatpush.bf16.xpose.msra.mxu0 %v1171
        %1181 = vmatmul.bf16.gmra.mxu0 %v1168
        %v1182 = vpop.f32.mrf.mxu0
        %v1183 = vadd.f32 0.0, %v1182
        %v1184 = vpop.f32.mrf.mxu0
        %1185 = vdwg.mxu0
        %v1187 = vsel %vm1128, %v979, 0
        %v1190 = vsel %vm1128, %v1111, 0
        %1192 = vmatpush.bf16.xpose.msra.mxu0 0
        %1193 = vmatpush.bf16.xpose.msra.mxu0 0
        %1194 = vmatpush.bf16.xpose.msra.mxu0 0
        %1195 = vmatpush.bf16.xpose.msra.mxu0 0
        %1196 = vmatpush.bf16.xpose.msra.mxu0 0
        %1197 = vmatpush.bf16.xpose.msra.mxu0 0
        %1198 = vmatpush.bf16.xpose.msra.mxu0 0
        %1199 = vmatpush.bf16.xpose.msra.mxu0 %v1190
        %1200 = vmatmul.bf16.gmra.mxu0 %v1187
        %v1201 = vpop.f32.mrf.mxu0
        %v1202 = vadd.f32 0.0, %v1201
        %v1203 = vpop.f32.mrf.mxu0
        %1204 = vdwg.mxu0
        %vm1205 = vcmask 64512
        %v1206 = vsel %vm1205, %v1145, -inf
        %1207 = vmax.xlane.f32.xlu0 %v1206
        %v1208 = vpop.xlane.xlu0 %1207
        %v1209 = vsel %vm1205, %v1164, -inf
        %1210 = vmax.xlane.f32.xlu0 %v1209
        %v1211 = vpop.xlane.xlu0 %1210
        %v1212 = vsel %vm1205, %v1183, -inf
        %1213 = vmax.xlane.f32.xlu0 %v1212
        %v1214 = vpop.xlane.xlu0 %1213
        %v1215 = vsel %vm1205, %v1202, -inf
        %1216 = vmax.xlane.f32.xlu0 %v1215
        %v1217 = vpop.xlane.xlu0 %1216
        %v1218 = vsub.f32 %v1145, %v1208
        %v1219 = vsub.f32 %v1164, %v1211
        %v1220 = vsub.f32 %v1183, %v1214
        %v1221 = vsub.f32 %v1202, %v1217
        %v1222 = vmul.f32 %v1218, 1.442695
        %v1223 = vpow.pop %v1222
        %v1224 = vmul.f32 %v1219, 1.442695
        %v1225 = vpow.pop %v1224
        %v1226 = vmul.f32 %v1220, 1.442695
        %v1227 = vpow.pop %v1226
        %v1228 = vmul.f32 %v1221, 1.442695
        %v1229 = vpow.pop %v1228
        %v1230 = vsel %vm1205, %v1223, 0.0
        %1231 = vadd.xlane.f32.xlu0 %v1230
        %v1232 = vpop.xlane.xlu0 %1231
        %v1233 = vsel %vm1205, %v1225, 0.0
        %1234 = vadd.xlane.f32.xlu0 %v1233
        %v1235 = vpop.xlane.xlu0 %1234
        %v1236 = vsel %vm1205, %v1227, 0.0
        %1237 = vadd.xlane.f32.xlu0 %v1236
        %v1238 = vpop.xlane.xlu0 %1237
        %v1239 = vsel %vm1205, %v1229, 0.0
        %1240 = vadd.xlane.f32.xlu0 %v1239
        %v1241 = vpop.xlane.xlu0 %1240
        %v1242 = vrcp.pop %v1232
        %v1243 = vrcp.pop %v1235
        %v1244 = vrcp.pop %v1238
        %v1245 = vrcp.pop %v1241
        %v1246 = vmul.f32 %v1223, %v1242
        %v1247 = vmul.f32 %v1225, %v1243
        %v1248 = vmul.f32 %v1227, %v1244
        %v1249 = vmul.f32 %v1229, %v1245
        %v1250 = vpack.c.bf16 %v1246, %v1246
        %v1251 = vpack.c.bf16 %v1247, %v1247
        %v1252 = vpack.c.bf16 %v1248, %v1248
        %v1253 = vpack.c.bf16 %v1249, %v1249
        %v1258 = vunpack.c.l.b16 %v1112
        %v1259 = vunpack.c.l.b16 %v1113
        %v1260 = vunpack.c.l.b16 %v1114
        %v1261 = vunpack.c.l.b16 %v1115
        %v1262 = vpack.c.b16 %v1259, %v1258
        %v1263 = vpack.c.b16 %v1261, %v1260
        %v1265 = vsel %vm1205, %v1250, 0
        %v1268 = vsel %vm1205, %v1262, 0
        %v1271 = vsel %vm1205, %v1263, 0
        %1273 = vmatpush.bf16.xpose.msra.mxu0 0
        %1274 = vmatpush.bf16.xpose.msra.mxu0 0
        %1275 = vmatpush.bf16.xpose.msra.mxu0 0
        %1276 = vmatpush.bf16.xpose.msra.mxu0 0
        %1277 = vmatpush.bf16.xpose.msra.mxu0 0
        %1278 = vmatpush.bf16.xpose.msra.mxu0 0
        %1279 = vmatpush.bf16.xpose.msra.mxu0 %v1271
        %1280 = vmatpush.bf16.xpose.msra.mxu0 %v1268
        %1281 = vmatmul.bf16.gmra.mxu0 %v1265
        %v1282 = vpop.f32.mrf.mxu0
        %v1283 = vadd.f32 0.0, %v1282
        %v1284 = vpop.f32.mrf.mxu0
        %1285 = vdwg.mxu0
        %v1290 = vunpack.c.l.b16 %v1116
        %v1291 = vunpack.c.l.b16 %v1117
        %v1292 = vunpack.c.l.b16 %v1118
        %v1293 = vunpack.c.l.b16 %v1119
        %v1294 = vpack.c.b16 %v1291, %v1290
        %v1295 = vpack.c.b16 %v1293, %v1292
        %v1297 = vsel %vm1205, %v1251, 0
        %v1300 = vsel %vm1205, %v1294, 0
        %v1303 = vsel %vm1205, %v1295, 0
        %1305 = vmatpush.bf16.xpose.msra.mxu0 0
        %1306 = vmatpush.bf16.xpose.msra.mxu0 0
        %1307 = vmatpush.bf16.xpose.msra.mxu0 0
        %1308 = vmatpush.bf16.xpose.msra.mxu0 0
        %1309 = vmatpush.bf16.xpose.msra.mxu0 0
        %1310 = vmatpush.bf16.xpose.msra.mxu0 0
        %1311 = vmatpush.bf16.xpose.msra.mxu0 %v1303
        %1312 = vmatpush.bf16.xpose.msra.mxu0 %v1300
        %1313 = vmatmul.bf16.gmra.mxu0 %v1297
        %v1314 = vpop.f32.mrf.mxu0
        %v1315 = vadd.f32 0.0, %v1314
        %v1316 = vpop.f32.mrf.mxu0
        %1317 = vdwg.mxu0
        %v1322 = vunpack.c.l.b16 %v1120
        %v1323 = vunpack.c.l.b16 %v1121
        %v1324 = vunpack.c.l.b16 %v1122
        %v1325 = vunpack.c.l.b16 %v1123
        %v1326 = vpack.c.b16 %v1323, %v1322
        %v1327 = vpack.c.b16 %v1325, %v1324
        %v1329 = vsel %vm1205, %v1252, 0
        %v1332 = vsel %vm1205, %v1326, 0
        %v1335 = vsel %vm1205, %v1327, 0
        %1337 = vmatpush.bf16.xpose.msra.mxu0 0
        %1338 = vmatpush.bf16.xpose.msra.mxu0 0
        %1339 = vmatpush.bf16.xpose.msra.mxu0 0
        %1340 = vmatpush.bf16.xpose.msra.mxu0 0
        %1341 = vmatpush.bf16.xpose.msra.mxu0 0
        %1342 = vmatpush.bf16.xpose.msra.mxu0 0
        %1343 = vmatpush.bf16.xpose.msra.mxu0 %v1335
        %1344 = vmatpush.bf16.xpose.msra.mxu0 %v1332
        %1345 = vmatmul.bf16.gmra.mxu0 %v1329
        %v1346 = vpop.f32.mrf.mxu0
        %v1347 = vadd.f32 0.0, %v1346
        %v1348 = vpop.f32.mrf.mxu0
        %1349 = vdwg.mxu0
        %v1354 = vunpack.c.l.b16 %v1124
        %v1355 = vunpack.c.l.b16 %v1125
        %v1356 = vunpack.c.l.b16 %v1126
        %v1357 = vunpack.c.l.b16 %v1127
        %v1358 = vpack.c.b16 %v1355, %v1354
        %v1359 = vpack.c.b16 %v1357, %v1356
        %v1361 = vsel %vm1205, %v1253, 0
        %v1364 = vsel %vm1205, %v1358, 0
        %v1367 = vsel %vm1205, %v1359, 0
        %1369 = vmatpush.bf16.xpose.msra.mxu0 0
        %1370 = vmatpush.bf16.xpose.msra.mxu0 0
        %1371 = vmatpush.bf16.xpose.msra.mxu0 0
        %1372 = vmatpush.bf16.xpose.msra.mxu0 0
        %1373 = vmatpush.bf16.xpose.msra.mxu0 0
        %1374 = vmatpush.bf16.xpose.msra.mxu0 0
        %1375 = vmatpush.bf16.xpose.msra.mxu0 %v1367
        %1376 = vmatpush.bf16.xpose.msra.mxu0 %v1364
        %1377 = vmatmul.bf16.gmra.mxu0 %v1361
        %v1378 = vpop.f32.mrf.mxu0
        %v1379 = vadd.f32 0.0, %v1378
        %v1380 = vpop.f32.mrf.mxu0
        %1381 = vdwg.mxu0
        %1382 = vxpose.xlu0.b32.start [1/16] %v1283, 128
        %1383 = vxpose.xlu0.b32.cont [2/16] 0.0, 128
        %1384 = vxpose.xlu0.b32.cont [3/16] 0.0, 128
        %1385 = vxpose.xlu0.b32.cont [4/16] 0.0, 128
        %1386 = vxpose.xlu0.b32.cont [5/16] 0.0, 128
        %1387 = vxpose.xlu0.b32.cont [6/16] 0.0, 128
        %1388 = vxpose.xlu0.b32.cont [7/16] 0.0, 128
        %1389 = vxpose.xlu0.b32.cont [8/16] 0.0, 128
        %1390 = vxpose.xlu0.b32.cont [9/16] 0.0, 128
        %1391 = vxpose.xlu0.b32.cont [10/16] 0.0, 128
        %1392 = vxpose.xlu0.b32.cont [11/16] 0.0, 128
        %1393 = vxpose.xlu0.b32.cont [12/16] 0.0, 128
        %1394 = vxpose.xlu0.b32.cont [13/16] 0.0, 128
        %1395 = vxpose.xlu0.b32.cont [14/16] 0.0, 128
        %1396 = vxpose.xlu0.b32.cont [15/16] 0.0, 128
        %1397 = vxpose.xlu0.b32.end [16/16] 0.0, 128
        %v1398 = vpop.trf.xlu0
        %v1399 = vpop.trf.xlu0
        %v1400 = vpop.trf.xlu0
        %v1401 = vpop.trf.xlu0
        %v1402 = vpop.trf.xlu0
        %v1403 = vpop.trf.xlu0
        %v1404 = vpop.trf.xlu0
        %v1405 = vpop.trf.xlu0
        %v1406 = vpop.trf.xlu0
        %v1407 = vpop.trf.xlu0
        %v1408 = vpop.trf.xlu0
        %v1409 = vpop.trf.xlu0
        %v1410 = vpop.trf.xlu0
        %v1411 = vpop.trf.xlu0
        %v1412 = vpop.trf.xlu0
        %v1413 = vpop.trf.xlu0
        %1414 = vxpose.xlu0.b32.start [1/16] %v1315, 128
        %1415 = vxpose.xlu0.b32.cont [2/16] 0.0, 128
        %1416 = vxpose.xlu0.b32.cont [3/16] 0.0, 128
        %1417 = vxpose.xlu0.b32.cont [4/16] 0.0, 128
        %1418 = vxpose.xlu0.b32.cont [5/16] 0.0, 128
        %1419 = vxpose.xlu0.b32.cont [6/16] 0.0, 128
        %1420 = vxpose.xlu0.b32.cont [7/16] 0.0, 128
        %1421 = vxpose.xlu0.b32.cont [8/16] 0.0, 128
        %1422 = vxpose.xlu0.b32.cont [9/16] 0.0, 128
        %1423 = vxpose.xlu0.b32.cont [10/16] 0.0, 128
        %1424 = vxpose.xlu0.b32.cont [11/16] 0.0, 128
        %1425 = vxpose.xlu0.b32.cont [12/16] 0.0, 128
        %1426 = vxpose.xlu0.b32.cont [13/16] 0.0, 128
        %1427 = vxpose.xlu0.b32.cont [14/16] 0.0, 128
        %1428 = vxpose.xlu0.b32.cont [15/16] 0.0, 128
        %1429 = vxpose.xlu0.b32.end [16/16] 0.0, 128
        %v1430 = vpop.trf.xlu0
        %v1431 = vpop.trf.xlu0
        %v1432 = vpop.trf.xlu0
        %v1433 = vpop.trf.xlu0
        %v1434 = vpop.trf.xlu0
        %v1435 = vpop.trf.xlu0
        %v1436 = vpop.trf.xlu0
        %v1437 = vpop.trf.xlu0
        %v1438 = vpop.trf.xlu0
        %v1439 = vpop.trf.xlu0
        %v1440 = vpop.trf.xlu0
        %v1441 = vpop.trf.xlu0
        %v1442 = vpop.trf.xlu0
        %v1443 = vpop.trf.xlu0
        %v1444 = vpop.trf.xlu0
        %v1445 = vpop.trf.xlu0
        %1446 = vxpose.xlu0.b32.start [1/16] %v1347, 128
        %1447 = vxpose.xlu0.b32.cont [2/16] 0.0, 128
        %1448 = vxpose.xlu0.b32.cont [3/16] 0.0, 128
        %1449 = vxpose.xlu0.b32.cont [4/16] 0.0, 128
        %1450 = vxpose.xlu0.b32.cont [5/16] 0.0, 128
        %1451 = vxpose.xlu0.b32.cont [6/16] 0.0, 128
        %1452 = vxpose.xlu0.b32.cont [7/16] 0.0, 128
        %1453 = vxpose.xlu0.b32.cont [8/16] 0.0, 128
        %1454 = vxpose.xlu0.b32.cont [9/16] 0.0, 128
        %1455 = vxpose.xlu0.b32.cont [10/16] 0.0, 128
        %1456 = vxpose.xlu0.b32.cont [11/16] 0.0, 128
        %1457 = vxpose.xlu0.b32.cont [12/16] 0.0, 128
        %1458 = vxpose.xlu0.b32.cont [13/16] 0.0, 128
        %1459 = vxpose.xlu0.b32.cont [14/16] 0.0, 128
        %1460 = vxpose.xlu0.b32.cont [15/16] 0.0, 128
        %1461 = vxpose.xlu0.b32.end [16/16] 0.0, 128
        %v1462 = vpop.trf.xlu0
        %v1463 = vpop.trf.xlu0
        %v1464 = vpop.trf.xlu0
        %v1465 = vpop.trf.xlu0
        %v1466 = vpop.trf.xlu0
        %v1467 = vpop.trf.xlu0
        %v1468 = vpop.trf.xlu0
        %v1469 = vpop.trf.xlu0
        %v1470 = vpop.trf.xlu0
        %v1471 = vpop.trf.xlu0
        %v1472 = vpop.trf.xlu0
        %v1473 = vpop.trf.xlu0
        %v1474 = vpop.trf.xlu0
        %v1475 = vpop.trf.xlu0
        %v1476 = vpop.trf.xlu0
        %v1477 = vpop.trf.xlu0
        %1478 = vxpose.xlu0.b32.start [1/16] %v1379, 128
        %1479 = vxpose.xlu0.b32.cont [2/16] 0.0, 128
        %1480 = vxpose.xlu0.b32.cont [3/16] 0.0, 128
        %1481 = vxpose.xlu0.b32.cont [4/16] 0.0, 128
        %1482 = vxpose.xlu0.b32.cont [5/16] 0.0, 128
        %1483 = vxpose.xlu0.b32.cont [6/16] 0.0, 128
        %1484 = vxpose.xlu0.b32.cont [7/16] 0.0, 128
        %1485 = vxpose.xlu0.b32.cont [8/16] 0.0, 128
        %1486 = vxpose.xlu0.b32.cont [9/16] 0.0, 128
        %1487 = vxpose.xlu0.b32.cont [10/16] 0.0, 128
        %1488 = vxpose.xlu0.b32.cont [11/16] 0.0, 128
        %1489 = vxpose.xlu0.b32.cont [12/16] 0.0, 128
        %1490 = vxpose.xlu0.b32.cont [13/16] 0.0, 128
        %1491 = vxpose.xlu0.b32.cont [14/16] 0.0, 128
        %1492 = vxpose.xlu0.b32.cont [15/16] 0.0, 128
        %1493 = vxpose.xlu0.b32.end [16/16] 0.0, 128
        %v1494 = vpop.trf.xlu0
        %v1495 = vpop.trf.xlu0
        %v1496 = vpop.trf.xlu0
        %v1497 = vpop.trf.xlu0
        %v1498 = vpop.trf.xlu0
        %v1499 = vpop.trf.xlu0
        %v1500 = vpop.trf.xlu0
        %v1501 = vpop.trf.xlu0
        %v1502 = vpop.trf.xlu0
        %v1503 = vpop.trf.xlu0
        %v1504 = vpop.trf.xlu0
        %v1505 = vpop.trf.xlu0
        %v1506 = vpop.trf.xlu0
        %v1507 = vpop.trf.xlu0
        %v1508 = vpop.trf.xlu0
        %v1509 = vpop.trf.xlu0
        %v1510 = vpack.c.bf16 %v1399, %v1398
        %v1511 = vpack.c.bf16 %v1401, %v1400
        %v1512 = vpack.c.bf16 %v1431, %v1430
        %v1513 = vpack.c.bf16 %v1433, %v1432
        %v1514 = vpack.c.bf16 %v1463, %v1462
        %v1515 = vpack.c.bf16 %v1465, %v1464
        %v1516 = vpack.c.bf16 %v1495, %v1494
        %v1517 = vpack.c.bf16 %v1497, %v1496
        %v1518 = vld [vmem:[%s3] sm:$0xf]
        %v1519 = vld [vmem:[%s3 + $0x4] sm:$0xf]
        %v1520 = vld [vmem:[%s3 + $0x8] sm:$0xf]
        %v1521 = vld [vmem:[%s3 + $0xc] sm:$0xf]
        %v1522 = vld [vmem:[%s3 + $0x10] sm:$0xf]
        %v1523 = vld [vmem:[%s3 + $0x14] sm:$0xf]
        %v1524 = vld [vmem:[%s3 + $0x18] sm:$0xf]
        %v1525 = vld [vmem:[%s3 + $0x1c] sm:$0xf]
        %v1526 = vld [vmem:[%s3 + $0x20] sm:$0xf]
        %v1527 = vld [vmem:[%s3 + $0x24] sm:$0xf]
        %v1528 = vld [vmem:[%s3 + $0x28] sm:$0xf]
        %v1529 = vld [vmem:[%s3 + $0x2c] sm:$0xf]
        %v1530 = vld [vmem:[%s3 + $0x30] sm:$0xf]
        %v1531 = vld [vmem:[%s3 + $0x34] sm:$0xf]
        %v1532 = vld [vmem:[%s3 + $0x38] sm:$0xf]
        %v1533 = vld [vmem:[%s3 + $0x3c] sm:$0xf]
        %v1534 = vld [vmem:[%s4] sm:$0x1]
        %v1536 = vperm.slane %v1534, 0
        %1538 = vxpose.xlu0.c.b16.start [1/8] %v1510, 128
        %1539 = vxpose.xlu0.c.b16.cont [2/8] %v1511, 128
        %1540 = vxpose.xlu0.c.b16.cont [3/8] %v1512, 128
        %1541 = vxpose.xlu0.c.b16.cont [4/8] %v1513, 128
        %1542 = vxpose.xlu0.c.b16.cont [5/8] %v1514, 128
        %1543 = vxpose.xlu0.c.b16.cont [6/8] %v1515, 128
        %1544 = vxpose.xlu0.c.b16.cont [7/8] %v1516, 128
        %1545 = vxpose.xlu0.c.b16.end [8/8] %v1517, 128
        %v1546 = vpop.trf.xlu0
        %v1547 = vpop.trf.xlu0
        %v1548 = vpop.trf.xlu0
        %v1549 = vpop.trf.xlu0
        %v1550 = vpop.trf.xlu0
        %v1551 = vpop.trf.xlu0
        %v1552 = vpop.trf.xlu0
        %v1553 = vpop.trf.xlu0
        %v1570 = vunpack.c.l.b16 %v1518
        %v1571 = vunpack.c.l.b16 %v1519
        %v1572 = vunpack.c.l.b16 %v1520
        %v1573 = vunpack.c.l.b16 %v1521
        %v1574 = vunpack.c.l.b16 %v1522
        %v1575 = vunpack.c.l.b16 %v1523
        %v1576 = vunpack.c.l.b16 %v1524
        %v1577 = vunpack.c.l.b16 %v1525
        %v1578 = vunpack.c.l.b16 %v1526
        %v1579 = vunpack.c.l.b16 %v1527
        %v1580 = vunpack.c.l.b16 %v1528
        %v1581 = vunpack.c.l.b16 %v1529
        %v1582 = vunpack.c.l.b16 %v1530
        %v1583 = vunpack.c.l.b16 %v1531
        %v1584 = vunpack.c.l.b16 %v1532
        %v1585 = vunpack.c.l.b16 %v1533
        %v1586 = vpack.c.b16 %v1571, %v1570
        %v1587 = vpack.c.b16 %v1573, %v1572
        %v1588 = vpack.c.b16 %v1575, %v1574
        %v1589 = vpack.c.b16 %v1577, %v1576
        %v1590 = vpack.c.b16 %v1579, %v1578
        %v1591 = vpack.c.b16 %v1581, %v1580
        %v1592 = vpack.c.b16 %v1583, %v1582
        %v1593 = vpack.c.b16 %v1585, %v1584
        %1602 = vmatpush.bf16.xpose.msra.mxu0 %v1593
        %1603 = vmatpush.bf16.xpose.msra.mxu0 %v1592
        %1604 = vmatpush.bf16.xpose.msra.mxu0 %v1591
        %1605 = vmatpush.bf16.xpose.msra.mxu0 %v1590
        %1606 = vmatpush.bf16.xpose.msra.mxu0 %v1589
        %1607 = vmatpush.bf16.xpose.msra.mxu0 %v1588
        %1608 = vmatpush.bf16.xpose.msra.mxu0 %v1587
        %1609 = vmatpush.bf16.xpose.msra.mxu0 %v1586
        %1610 = vmatmul.bf16.gmra.mxu0 %v1546
        %v1611 = vpop.f32.mrf.mxu0
        %v1612 = vadd.f32 %v1536, %v1611
        %v1613 = vpop.f32.mrf.mxu0
        %1614 = vdwg.mxu0
        %1615 = vst [vmem:[%s215] sm:$0xff] %v1612
        %s1616 = sand.u32 %s137, 1
        %s1617 = scalar_lea.sflag [#allocation3], %s1616
        %s1618 = sand.u32 %s137, 1
        %s1619 = smul.addr %s1618, 8
        %s1620 = scalar_lea.vmem [#allocation2], %s1619
        // Predicated region
        $region41: #{tpu_custom_call.1} parent=39 // pred_check
          %p1621 = pneg %p147
        $region42: #{tpu_custom_call.1} parent=39 // pred_check_branch
          %1623 = sbr.rel (%p1621) target = $region44
        $region43: #{tpu_custom_call.1} parent=39 // pred_region
          %1625 = vsyncadd %s1617, 0
          %s1626 = smul.addr %s19, 8
          %s1627 = scalar_lea.hbm %s5, %s1626
          %s1629 = sshll.u32 %s1620, 4
          %s1630 = int_to_ptr.vmem [resolvable:$true] %s1629
          %s1631 = sshll.u32 %s1627, 4
          %s1632 = int_to_ptr.hbm [resolvable:$true] %s1631
          %1634 = dma.vmem_to_hbm [thread:$0]  %s1630, 128, %s1632, %s1617
        $region44: #{tpu_custom_call.1} parent=39 // pred_fallthru
          _
      $region40: #{tpu_custom_call.1} parent=5 // pred_fallthru
        _
      %p1635 = scmp.le.s32.totalorder 2, %s14
      // Predicated region
      $region45: #{tpu_custom_call.1} parent=5 // pred_check
        %p1636 = pneg %p1635
      $region46: #{tpu_custom_call.1} parent=5 // pred_check_branch
        %1638 = sbr.rel (%p1636) target = $region48
      $region47: #{tpu_custom_call.1} parent=5 // pred_region
        %s1639 = ssub.s32 %s14, 2
        // Predicated region
        $region49: #{tpu_custom_call.1} parent=47 // pred_check
          %p1640 = pneg %p153
        $region50: #{tpu_custom_call.1} parent=47 // pred_check_branch
          %1642 = sbr.rel (%p1640) target = $region52
        $region51: #{tpu_custom_call.1} parent=47 // pred_region
          %s1643 = sand.u32 %s138, 1
          %s1644 = scalar_lea.sflag [#allocation3], %s1643
          %s1645 = sand.u32 %s138, 1
          %s1646 = smul.addr %s1645, 8
          %s1647 = scalar_lea.vmem [#allocation2], %s1646
          %1649 = dma.done %s1644, 128
        $region52: #{tpu_custom_call.1} parent=47 // pred_fallthru
          _
      $region48: #{tpu_custom_call.1} parent=5 // pred_fallthru
        _
    $region6: #{tpu_custom_call.1} parent=1 // loop_footer
      %s18 = sadd.s32 1, %s14
    $region7: #{tpu_custom_call.1} parent=1 // loop_footer_branch
      %13 = sbr.rel target = $region3
    $region8: #{tpu_custom_call.1} parent=1 // loop_exit
      _
    %1650 = vsyncpa [#allocation3], 1
    %s1651 = scalar_lea.sflag [#allocation3], 1
    %1652 = vsyncpa %s1651, 1

// kernel: tpu_custom_call.1
$region0: #{tpu_custom_call.1}
  #allocation0 [shape = 'u32[]', space=smem, size = 0x4, offset = 0x4, fixed_abs, tag = 'smem constant byte address 0x4 - core index']
  #allocation1 [shape = 'u32[72,128]{1,0:T(1,128)}', space=vmem, size = 0x9000, scoped, tag = 'internal scratch']
  %s0 = inlined_call_operand.hbm [shape: f32[2,8,128], index: 0, kind: input, shape index: {}]
  %s1 = inlined_call_operand.hbm [shape: bf16[128,384], index: 1, kind: input, shape index: {}]
  %s2 = inlined_call_operand.hbm [shape: f32[1,384], index: 2, kind: input, shape index: {}]
  %s3 = inlined_call_operand.hbm [shape: bf16[128,128], index: 3, kind: input, shape index: {}]
  %s4 = inlined_call_operand.vmem [shape: f32[1,128], index: 4, kind: input, shape index: {}]
  %s5 = inlined_call_operand.hbm [shape: f32[2,8,128], index: 5, kind: output, shape index: {}]
  %s6 = sld [smem:[#allocation0]]
  $region69: #{tpu_custom_call.1} parent=0
    _
  %s8 = ssub.s32 1, %s6
  %s9 = scalar_select 0, %s8, %s6
  $region1: #{tpu_custom_call.1} parent=0
    #allocation2 [shape = 'u8[8192]{0}', space=vmem, size = 0x2000, scoped, tag = 'input window, operand 0']
    #allocation3 [shape = 's32[2]{0}', space=sflag, size = 0x8, scoped, tag = 'scoped memory for tpu_custom_call.1']
    #allocation4 [shape = 's32[2]{0}', space=sflag, size = 0x8, scoped, tag = 'scoped memory for tpu_custom_call.1']
    #allocation5 [shape = 'u8[98304]{0}', space=vmem, size = 0x18000, scoped, tag = 'input window, operand 1, single buffered']
    #allocation6 [shape = 's32[1]{0}', space=sflag, size = 0x4, scoped, tag = 'scoped memory for tpu_custom_call.1']
    #allocation7 [shape = 'u8[1536]{0}', space=vmem, size = 0x800, scoped, tag = 'input window, operand 2, single buffered']
    #allocation8 [shape = 'u8[32768]{0}', space=vmem, size = 0x8000, scoped, tag = 'input window, operand 3, single buffered']
    #allocation9 [shape = 's32[1]{0}', space=sflag, size = 0x4, scoped, tag = 'scoped memory for tpu_custom_call.1']
    #allocation10 [shape = 'u8[8192]{0}', space=vmem, size = 0x2000, scoped, tag = 'output window, operand 0']
    %10 = vsyncpa [#allocation3], 0
    %s11 = scalar_lea.sflag [#allocation3], 1
    %12 = vsyncpa %s11, 0
    %13 = vsyncpa [#allocation6], 0
    %14 = vsyncpa [#allocation9], 0
    %15 = vsyncpa [#allocation4], 0
    %s16 = scalar_lea.sflag [#allocation4], 1
    %17 = vsyncpa %s16, 0
    loop: start=0, step=1, limit=4
    $region2: #{tpu_custom_call.1} parent=1 // loop_pre_header
      _
    $region3: #{tpu_custom_call.1} parent=1 // loop_header
      %s19 = sphi 0, %s23
      %p20 = scmp.ge.s32.totalorder %s19, 4
      %s29 = sphi 0, %s31
      %s32 = sphi 0, %s29
      %s33 = sphi 0, %s32
      %s49 = sphi 0, %s33
      %s53 = sphi 0, %s53
      %s55 = sphi 0, %s53
      %s56 = sphi 0, %s55
      %s70 = sphi 0, %s56
      %s74 = sphi 0, %s74
      %s76 = sphi 0, %s74
      %s77 = sphi 0, %s76
      %s91 = sphi 0, %s77
      %s95 = sphi 0, %s95
      %s97 = sphi 0, %s95
      %s98 = sphi 0, %s97
      %s112 = sphi 0, %s98
      %s116 = sphi 0, %s116
      %s118 = sphi 0, %s116
      %s119 = sphi 0, %s118
      %s133 = sphi 0, %s119
      %s139 = sphi 0, %s141
      %s142 = sphi 0, %s139
      %s143 = sphi 0, %s142
      %s159 = sphi 0, %s143
    $region4: #{tpu_custom_call.1} parent=1 // loop_header_branch
      %22 = sbr.rel (%p20) target = $region8
    $region5: #{tpu_custom_call.1} parent=1 // loop_body
      %s24 = ssub.s32 %s19, 1
      %s25 = ssub.s32 %s19, 2
      %s26 = sadd.s32 %s19, 1
      %s27 = ssub.s32 %s19, %s26
      %p28 = scmp.eq.s32.totalorder %s27, 0
      %s30 = sadd.s32 %s29, 1
      %s31 = scalar_select %p28, %s29, %s30
      %p34 = pneg %p28
      %p35 = scmp.eq.s32.totalorder %s19, 1
      %p36 = por %p34, %p35
      %p37 = scmp.ne.s32.totalorder %s29, %s32
      %p38 = scmp.eq.s32.totalorder %s19, 0
      %p39 = por %p37, %p38
      %p40 = scmp.ne.s32.totalorder %s29, %s32
      %p41 = scmp.eq.s32.totalorder %s24, 1
      %p42 = por %p40, %p41
      %p43 = scmp.ne.s32.totalorder %s32, %s33
      %p44 = scmp.eq.s32.totalorder %s24, 0
      %p45 = por %p43, %p44
      %p46 = scmp.ne.s32.totalorder %s32, %s33
      %p47 = scmp.eq.s32.totalorder %s25, 1
      %p48 = por %p46, %p47
      %p50 = scmp.ne.s32.totalorder %s33, %s49
      %p51 = scmp.eq.s32.totalorder %s25, 0
      %p52 = por %p50, %p51
      %s54 = sadd.s32 %s53, 1
      %p57 = scmp.eq.s32.totalorder %s19, 1
      %p58 = scmp.ne.s32.totalorder %s53, %s55
      %p59 = scmp.eq.s32.totalorder %s19, 0
      %p60 = por %p58, %p59
      %p61 = scmp.ne.s32.totalorder %s53, %s55
      %p62 = scmp.eq.s32.totalorder %s24, 1
      %p63 = por %p61, %p62
      %p64 = scmp.ne.s32.totalorder %s55, %s56
      %p65 = scmp.eq.s32.totalorder %s24, 0
      %p66 = por %p64, %p65
      %p67 = scmp.ne.s32.totalorder %s55, %s56
      %p68 = scmp.eq.s32.totalorder %s25, 1
      %p69 = por %p67, %p68
      %p71 = scmp.ne.s32.totalorder %s56, %s70
      %p72 = scmp.eq.s32.totalorder %s25, 0
      %p73 = por %p71, %p72
      %s75 = sadd.s32 %s74, 1
      %p78 = scmp.eq.s32.totalorder %s19, 1
      %p79 = scmp.ne.s32.totalorder %s74, %s76
      %p80 = scmp.eq.s32.totalorder %s19, 0
      %p81 = por %p79, %p80
      %p82 = scmp.ne.s32.totalorder %s74, %s76
      %p83 = scmp.eq.s32.totalorder %s24, 1
      %p84 = por %p82, %p83
      %p85 = scmp.ne.s32.totalorder %s76, %s77
      %p86 = scmp.eq.s32.totalorder %s24, 0
      %p87 = por %p85, %p86
      %p88 = scmp.ne.s32.totalorder %s76, %s77
      %p89 = scmp.eq.s32.totalorder %s25, 1
      %p90 = por %p88, %p89
      %p92 = scmp.ne.s32.totalorder %s77, %s91
      %p93 = scmp.eq.s32.totalorder %s25, 0
      %p94 = por %p92, %p93
      %s96 = sadd.s32 %s95, 1
      %p99 = scmp.eq.s32.totalorder %s19, 1
      %p100 = scmp.ne.s32.totalorder %s95, %s97
      %p101 = scmp.eq.s32.totalorder %s19, 0
      %p102 = por %p100, %p101
      %p103 = scmp.ne.s32.totalorder %s95, %s97
      %p104 = scmp.eq.s32.totalorder %s24, 1
      %p105 = por %p103, %p104
      %p106 = scmp.ne.s32.totalorder %s97, %s98
      %p107 = scmp.eq.s32.totalorder %s24, 0
      %p108 = por %p106, %p107
      %p109 = scmp.ne.s32.totalorder %s97, %s98
      %p110 = scmp.eq.s32.totalorder %s25, 1
      %p111 = por %p109, %p110
      %p113 = scmp.ne.s32.totalorder %s98, %s112
      %p114 = scmp.eq.s32.totalorder %s25, 0
      %p115 = por %p113, %p114
      %s117 = sadd.s32 %s116, 1
      %p120 = scmp.eq.s32.totalorder %s19, 1
      %p121 = scmp.ne.s32.totalorder %s116, %s118
      %p122 = scmp.eq.s32.totalorder %s19, 0
      %p123 = por %p121, %p122
      %p124 = scmp.ne.s32.totalorder %s116, %s118
      %p125 = scmp.eq.s32.totalorder %s24, 1
      %p126 = por %p124, %p125
      %p127 = scmp.ne.s32.totalorder %s118, %s119
      %p128 = scmp.eq.s32.totalorder %s24, 0
      %p129 = por %p127, %p128
      %p130 = scmp.ne.s32.totalorder %s118, %s119
      %p131 = scmp.eq.s32.totalorder %s25, 1
      %p132 = por %p130, %p131
      %p134 = scmp.ne.s32.totalorder %s119, %s133
      %p135 = scmp.eq.s32.totalorder %s25, 0
      %p136 = por %p134, %p135
      %s137 = ssub.s32 %s19, %s26
      %p138 = scmp.eq.s32.totalorder %s137, 0
      %s140 = sadd.s32 %s139, 1
      %s141 = scalar_select %p138, %s139, %s140
      %p144 = pneg %p138
      %p145 = scmp.eq.s32.totalorder %s19, 1
      %p146 = por %p144, %p145
      %p147 = scmp.ne.s32.totalorder %s139, %s142
      %p148 = scmp.eq.s32.totalorder %s19, 0
      %p149 = por %p147, %p148
      %p150 = scmp.ne.s32.totalorder %s139, %s142
      %p151 = scmp.eq.s32.totalorder %s24, 1
      %p152 = por %p150, %p151
      %p153 = scmp.ne.s32.totalorder %s142, %s143
      %p154 = scmp.eq.s32.totalorder %s24, 0
      %p155 = por %p153, %p154
      %p156 = scmp.ne.s32.totalorder %s142, %s143
      %p157 = scmp.eq.s32.totalorder %s25, 1
      %p158 = por %p156, %p157
      %p160 = scmp.ne.s32.totalorder %s143, %s159
      %p161 = scmp.eq.s32.totalorder %s25, 0
      %p162 = por %p160, %p161
      %p163 = scmp.le.s32.totalorder 1, %s19
      %p164 = scmp.lt.s32.totalorder %s19, 3
      %p165 = pnand %p163, %p164
      %p166 = pneg %p165
      // Predicated region
      $region9: #{tpu_custom_call.1} parent=5 // pred_check
        _
      $region10: #{tpu_custom_call.1} parent=5 // pred_check_branch
        %168 = sbr.rel (%p165) target = $region12
      $region11: #{tpu_custom_call.1} parent=5 // pred_region
        %s169 = ssub.s32 %s19, 1
        // Predicated region
        $region13: #{tpu_custom_call.1} parent=11 // pred_check
          %p170 = pneg %p66
        $region14: #{tpu_custom_call.1} parent=11 // pred_check_branch
          %172 = sbr.rel (%p170) target = $region16
        $region15: #{tpu_custom_call.1} parent=11 // pred_region
          %174 = vsyncadd [#allocation6], 0
          %s175 = sshll.u32 %s1, 4
          %s176 = int_to_ptr.hbm [resolvable:$true] %s175
          %s177 = sshll.u32 [#allocation5], 4
          %s178 = int_to_ptr.vmem [resolvable:$true] %s177
          %183 = dma.hbm_to_vmem [thread:$0]  %s176, 3072, %s178, [#allocation6], 192, 192, 12
        $region16: #{tpu_custom_call.1} parent=11 // pred_fallthru
          _
        // Predicated region
        $region17: #{tpu_custom_call.1} parent=11 // pred_check
          %p184 = pneg %p87
        $region18: #{tpu_custom_call.1} parent=11 // pred_check_branch
          %186 = sbr.rel (%p184) target = $region20
        $region19: #{tpu_custom_call.1} parent=11 // pred_region
          %188 = vsyncadd [#allocation6], 0
          %s190 = sshll.u32 %s2, 4
          %s191 = int_to_ptr.hbm [resolvable:$true] %s190
          %s192 = sshll.u32 [#allocation7], 4
          %s193 = int_to_ptr.vmem [resolvable:$true] %s192
          %195 = dma.hbm_to_vmem [thread:$0]  %s191, 48, %s193, [#allocation6]
        $region20: #{tpu_custom_call.1} parent=11 // pred_fallthru
          _
        // Predicated region
        $region21: #{tpu_custom_call.1} parent=11 // pred_check
          %p196 = pneg %p108
        $region22: #{tpu_custom_call.1} parent=11 // pred_check_branch
          %198 = sbr.rel (%p196) target = $region24
        $region23: #{tpu_custom_call.1} parent=11 // pred_region
          %200 = vsyncadd [#allocation9], 0
          %s201 = sshll.u32 %s3, 4
          %s202 = int_to_ptr.hbm [resolvable:$true] %s201
          %s203 = sshll.u32 [#allocation8], 4
          %s204 = int_to_ptr.vmem [resolvable:$true] %s203
          %209 = dma.hbm_to_vmem [thread:$0]  %s202, 1024, %s204, [#allocation9], 64, 64, 4
        $region24: #{tpu_custom_call.1} parent=11 // pred_fallthru
          _
        // Predicated region
        $region25: #{tpu_custom_call.1} parent=11 // pred_check
          %p210 = pneg %p129
        $region26: #{tpu_custom_call.1} parent=11 // pred_check_branch
          %212 = sbr.rel (%p210) target = $region28
        $region27: #{tpu_custom_call.1} parent=11 // pred_region
          _
        $region28: #{tpu_custom_call.1} parent=11 // pred_fallthru
          _
      $region12: #{tpu_custom_call.1} parent=5 // pred_fallthru
        _
      %p213 = scmp.lt.s32.totalorder %s19, 2
      // Predicated region
      $region29: #{tpu_custom_call.1} parent=5 // pred_check
        %p214 = pneg %p213
      $region30: #{tpu_custom_call.1} parent=5 // pred_check_branch
        %216 = sbr.rel (%p214) target = $region32
      $region31: #{tpu_custom_call.1} parent=5 // pred_region
        // Predicated region
        $region33: #{tpu_custom_call.1} parent=31 // pred_check
          %p217 = pneg %p39
        $region34: #{tpu_custom_call.1} parent=31 // pred_check_branch
          %219 = sbr.rel (%p217) target = $region36
        $region35: #{tpu_custom_call.1} parent=31 // pred_region
          %s220 = sand.u32 %s29, 1
          %s221 = scalar_lea.sflag [#allocation3], %s220
          %s222 = sand.u32 %s29, 1
          %s223 = smul.addr %s222, 8
          %s224 = scalar_lea.vmem [#allocation2], %s223
          %226 = vsyncadd %s221, 0
          %s227 = smul.addr %s19, 8
          %s228 = scalar_lea.hbm %s0, %s227
          %s230 = sshll.u32 %s228, 4
          %s231 = int_to_ptr.hbm [resolvable:$true] %s230
          %s232 = sshll.u32 %s224, 4
          %s233 = int_to_ptr.vmem [resolvable:$true] %s232
          %235 = dma.hbm_to_vmem [thread:$0]  %s231, 128, %s233, %s221
        $region36: #{tpu_custom_call.1} parent=31 // pred_fallthru
          _
      $region32: #{tpu_custom_call.1} parent=5 // pred_fallthru
        _
      %p236 = scmp.le.s32.totalorder 1, %s19
      %p237 = scmp.lt.s32.totalorder %s19, 3
      %p238 = pnand %p236, %p237
      %p239 = pneg %p238
      // Predicated region
      $region37: #{tpu_custom_call.1} parent=5 // pred_check
        _
      $region38: #{tpu_custom_call.1} parent=5 // pred_check_branch
        %241 = sbr.rel (%p238) target = $region40
      $region39: #{tpu_custom_call.1} parent=5 // pred_region
        %s242 = ssub.s32 %s19, 1
        %s243 = sand.u32 %s32, 1
        %s244 = scalar_lea.sflag [#allocation3], %s243
        %s245 = sand.u32 %s32, 1
        %s246 = smul.addr %s245, 8
        %s247 = scalar_lea.vmem [#allocation2], %s246
        // Predicated region
        $region41: #{tpu_custom_call.1} parent=39 // pred_check
          %p248 = pneg %p45
        $region42: #{tpu_custom_call.1} parent=39 // pred_check_branch
          %250 = sbr.rel (%p248) target = $region44
        $region43: #{tpu_custom_call.1} parent=39 // pred_region
          %252 = dma.done %s244, 128
        $region44: #{tpu_custom_call.1} parent=39 // pred_fallthru
          _
        // Predicated region
        $region45: #{tpu_custom_call.1} parent=39 // pred_check
          %p253 = pneg %p66
        $region46: #{tpu_custom_call.1} parent=39 // pred_check_branch
          %255 = sbr.rel (%p253) target = $region48
        $region47: #{tpu_custom_call.1} parent=39 // pred_region
          %257 = dma.done [#allocation6], 3072
        $region48: #{tpu_custom_call.1} parent=39 // pred_fallthru
          _
        // Predicated region
        $region49: #{tpu_custom_call.1} parent=39 // pred_check
          %p258 = pneg %p87
        $region50: #{tpu_custom_call.1} parent=39 // pred_check_branch
          %260 = sbr.rel (%p258) target = $region52
        $region51: #{tpu_custom_call.1} parent=39 // pred_region
          %262 = dma.done [#allocation6], 48
        $region52: #{tpu_custom_call.1} parent=39 // pred_fallthru
          _
        // Predicated region
        $region53: #{tpu_custom_call.1} parent=39 // pred_check
          %p263 = pneg %p108
        $region54: #{tpu_custom_call.1} parent=39 // pred_check_branch
          %265 = sbr.rel (%p263) target = $region56
        $region55: #{tpu_custom_call.1} parent=39 // pred_region
          %267 = dma.done [#allocation9], 1024
        $region56: #{tpu_custom_call.1} parent=39 // pred_fallthru
          _
        %s268 = sand.u32 %s32, 1
        %s269 = scalar_lea.sflag [#allocation3], %s268
        %s270 = sand.u32 %s32, 1
        %s271 = smul.addr %s270, 8
        %s272 = scalar_lea.vmem [#allocation2], %s271
        %p273 = pneg %p45
        %p274 = pneg %p42
        %p275 = pneg %p66
        %p276 = pneg %p63
        %p277 = pneg %p87
        %p278 = pneg %p84
        %p279 = pneg %p108
        %p280 = pneg %p105
        %p281 = pneg %p129
        %p282 = pneg %p126
        %p283 = pneg %p155
        %p284 = pneg %p152
        %s285 = sand.u32 %s142, 1
        %s286 = scalar_lea.sflag [#allocation4], %s285
        %s287 = sand.u32 %s142, 1
        %s288 = smul.addr %s287, 8
        %s289 = scalar_lea.vmem [#allocation10], %s288
        %v291 = vld [vmem:[%s247] sm:$0xff]
        %v292 = vpack.c.bf16 %v291, %v291
        %v293 = vld [vmem:[#allocation5] sm:$0xff]
        %v294 = vld [vmem:[#allocation5 + $0x8] sm:$0xf]
        %v295 = vld [vmem:[#allocation5 + $0xc] sm:$0xff]
        %v296 = vld [vmem:[#allocation5 + $0x14] sm:$0xf]
        %v297 = vld [vmem:[#allocation5 + $0x18] sm:$0xff]
        %v298 = vld [vmem:[#allocation5 + $0x20] sm:$0xf]
        %v299 = vld [vmem:[#allocation5 + $0x24] sm:$0xff]
        %v300 = vld [vmem:[#allocation5 + $0x2c] sm:$0xf]
        %v301 = vld [vmem:[#allocation5 + $0x30] sm:$0xff]
        %v302 = vld [vmem:[#allocation5 + $0x38] sm:$0xf]
        %v303 = vld [vmem:[#allocation5 + $0x3c] sm:$0xff]
        %v304 = vld [vmem:[#allocation5 + $0x44] sm:$0xf]
        %v305 = vld [vmem:[#allocation5 + $0x48] sm:$0xff]
        %v306 = vld [vmem:[#allocation5 + $0x50] sm:$0xf]
        %v307 = vld [vmem:[#allocation5 + $0x54] sm:$0xff]
        %v308 = vld [vmem:[#allocation5 + $0x5c] sm:$0xf]
        %v309 = vld [vmem:[#allocation5 + $0x60] sm:$0xff]
        %v310 = vld [vmem:[#allocation5 + $0x68] sm:$0xf]
        %v311 = vld [vmem:[#allocation5 + $0x6c] sm:$0xff]
        %v312 = vld [vmem:[#allocation5 + $0x74] sm:$0xf]
        %v313 = vld [vmem:[#allocation5 + $0x78] sm:$0xff]
        %v314 = vld [vmem:[#allocation5 + $0x80] sm:$0xf]
        %v315 = vld [vmem:[#allocation5 + $0x84] sm:$0xff]
        %v316 = vld [vmem:[#allocation5 + $0x8c] sm:$0xf]
        %v317 = vld [vmem:[#allocation5 + $0x90] sm:$0xff]
        %v318 = vld [vmem:[#allocation5 + $0x98] sm:$0xf]
        %v319 = vld [vmem:[#allocation5 + $0x9c] sm:$0xff]
        %v320 = vld [vmem:[#allocation5 + $0xa4] sm:$0xf]
        %v321 = vld [vmem:[#allocation5 + $0xa8] sm:$0xff]
        %v322 = vld [vmem:[#allocation5 + $0xb0] sm:$0xf]
        %v323 = vld [vmem:[#allocation5 + $0xb4] sm:$0xff]
        %v324 = vld [vmem:[#allocation5 + $0xbc] sm:$0xf]
        %v325 = vld [vmem:[#allocation7] sm:$0x7]
        %v327 = vperm.slane %v325, 0
        %v328 = vperm.slane %v325, 1
        %v329 = vperm.slane %v325, 2
        %v365 = vunpack.c.l.b16 %v293
        %v366 = vunpack.c.h.b16 %v293
        %v367 = vunpack.c.l.b16 %v294
        %v368 = vunpack.c.l.b16 %v295
        %v369 = vunpack.c.h.b16 %v295
        %v370 = vunpack.c.l.b16 %v296
        %v371 = vunpack.c.l.b16 %v297
        %v372 = vunpack.c.h.b16 %v297
        %v373 = vunpack.c.l.b16 %v298
        %v374 = vunpack.c.l.b16 %v299
        %v375 = vunpack.c.h.b16 %v299
        %v376 = vunpack.c.l.b16 %v300
        %v377 = vunpack.c.l.b16 %v301
        %v378 = vunpack.c.h.b16 %v301
        %v379 = vunpack.c.l.b16 %v302
        %v380 = vunpack.c.l.b16 %v303
        %v381 = vunpack.c.h.b16 %v303
        %v382 = vunpack.c.l.b16 %v304
        %v383 = vunpack.c.l.b16 %v305
        %v384 = vunpack.c.h.b16 %v305
        %v385 = vunpack.c.l.b16 %v306
        %v386 = vunpack.c.l.b16 %v307
        %v387 = vunpack.c.h.b16 %v307
        %v388 = vunpack.c.l.b16 %v308
        %v389 = vunpack.c.l.b16 %v309
        %v390 = vunpack.c.h.b16 %v309
        %v391 = vunpack.c.l.b16 %v310
        %v392 = vunpack.c.l.b16 %v311
        %v393 = vunpack.c.h.b16 %v311
        %v394 = vunpack.c.l.b16 %v312
        %v395 = vunpack.c.l.b16 %v313
        %v396 = vunpack.c.h.b16 %v313
        %v397 = vunpack.c.l.b16 %v314
        %v398 = vunpack.c.l.b16 %v315
        %v399 = vunpack.c.h.b16 %v315
        %v400 = vunpack.c.l.b16 %v316
        %v401 = vunpack.c.l.b16 %v317
        %v402 = vunpack.c.h.b16 %v317
        %v403 = vunpack.c.l.b16 %v318
        %v404 = vunpack.c.l.b16 %v319
        %v405 = vunpack.c.h.b16 %v319
        %v406 = vunpack.c.l.b16 %v320
        %v407 = vunpack.c.l.b16 %v321
        %v408 = vunpack.c.h.b16 %v321
        %v409 = vunpack.c.l.b16 %v322
        %v410 = vunpack.c.l.b16 %v323
        %v411 = vunpack.c.h.b16 %v323
        %v412 = vunpack.c.l.b16 %v324
        %v413 = vpack.c.b16 %v368, %v365
        %v414 = vpack.c.b16 %v369, %v366
        %v415 = vpack.c.b16 %v370, %v367
        %v416 = vpack.c.b16 %v374, %v371
        %v417 = vpack.c.b16 %v375, %v372
        %v418 = vpack.c.b16 %v376, %v373
        %v419 = vpack.c.b16 %v380, %v377
        %v420 = vpack.c.b16 %v381, %v378
        %v421 = vpack.c.b16 %v382, %v379
        %v422 = vpack.c.b16 %v386, %v383
        %v423 = vpack.c.b16 %v387, %v384
        %v424 = vpack.c.b16 %v388, %v385
        %v425 = vpack.c.b16 %v392, %v389
        %v426 = vpack.c.b16 %v393, %v390
        %v427 = vpack.c.b16 %v394, %v391
        %v428 = vpack.c.b16 %v398, %v395
        %v429 = vpack.c.b16 %v399, %v396
        %v430 = vpack.c.b16 %v400, %v397
        %v431 = vpack.c.b16 %v404, %v401
        %v432 = vpack.c.b16 %v405, %v402
        %v433 = vpack.c.b16 %v406, %v403
        %v434 = vpack.c.b16 %v410, %v407
        %v435 = vpack.c.b16 %v411, %v408
        %v436 = vpack.c.b16 %v412, %v409
        %461 = vmatpush.bf16.msra.mxu0 %v434
        %462 = vmatpush.bf16.msra.mxu0 %v431
        %463 = vmatpush.bf16.msra.mxu0 %v428
        %464 = vmatpush.bf16.msra.mxu0 %v425
        %465 = vmatpush.bf16.msra.mxu0 %v422
        %466 = vmatpush.bf16.msra.mxu0 %v419
        %467 = vmatpush.bf16.msra.mxu0 %v416
        %468 = vmatpush.bf16.msra.mxu0 %v413
        %469 = vmatmul.bf16.gmra.mxu0 %v292
        %v470 = vpop.f32.mrf.mxu0
        %v471 = vadd.f32 %v327, %v470
        %v472 = vpop.f32.mrf.mxu0
        %473 = vdwg.mxu0
        %474 = vmatpush.bf16.msra.mxu0 %v435
        %475 = vmatpush.bf16.msra.mxu0 %v432
        %476 = vmatpush.bf16.msra.mxu0 %v429
        %477 = vmatpush.bf16.msra.mxu0 %v426
        %478 = vmatpush.bf16.msra.mxu0 %v423
        %479 = vmatpush.bf16.msra.mxu0 %v420
        %480 = vmatpush.bf16.msra.mxu0 %v417
        %481 = vmatpush.bf16.msra.mxu0 %v414
        %482 = vmatmul.bf16.gmra.mxu0 %v292
        %v483 = vpop.f32.mrf.mxu0
        %v484 = vadd.f32 %v328, %v483
        %v485 = vpop.f32.mrf.mxu0
        %486 = vdwg.mxu0
        %487 = vmatpush.bf16.msra.mxu0 %v436
        %488 = vmatpush.bf16.msra.mxu0 %v433
        %489 = vmatpush.bf16.msra.mxu0 %v430
        %490 = vmatpush.bf16.msra.mxu0 %v427
        %491 = vmatpush.bf16.msra.mxu0 %v424
        %492 = vmatpush.bf16.msra.mxu0 %v421
        %493 = vmatpush.bf16.msra.mxu0 %v418
        %494 = vmatpush.bf16.msra.mxu0 %v415
        %495 = vmatmul.bf16.gmra.mxu0 %v292
        %v496 = vpop.f32.mrf.mxu0
        %v497 = vadd.f32 %v329, %v496
        %v498 = vpop.f32.mrf.mxu0
        %499 = vdwg.mxu0
        %v500 = vmul.f32 %v471, 0.17677669
        %v501 = vpack.c.bf16 %v500, %v500
        %v502 = vpack.c.bf16 %v484, %v484
        %v503 = vpack.c.bf16 %v497, %v497
        %vm504 = vcmask 261120
        %v506 = vsel %vm504, %v501, 0
        %v509 = vsel %vm504, %v502, 0
        %511 = vmatpush.bf16.xpose.msra.mxu0 0
        %512 = vmatpush.bf16.xpose.msra.mxu0 0
        %513 = vmatpush.bf16.xpose.msra.mxu0 0
        %514 = vmatpush.bf16.xpose.msra.mxu0 0
        %515 = vmatpush.bf16.xpose.msra.mxu0 0
        %516 = vmatpush.bf16.xpose.msra.mxu0 0
        %517 = vmatpush.bf16.xpose.msra.mxu0 0
        %518 = vmatpush.bf16.xpose.msra.mxu0 %v509
        %519 = vmatmul.bf16.gmra.mxu0 %v506
        %v520 = vpop.f32.mrf.mxu0
        %v521 = vadd.f32 0.0, %v520
        %v522 = vpop.f32.mrf.mxu0
        %523 = vdwg.mxu0
        %vm524 = vcmask 64512
        %v525 = vsel %vm524, %v521, -inf
        %526 = vmax.xlane.f32.xlu0 %v525
        %v527 = vpop.xlane.xlu0 %526
        %v528 = vsub.f32 %v521, %v527
        %v529 = vmul.f32 %v528, 1.442695
        %v530 = vpow.pop %v529
        %v531 = vsel %vm524, %v530, 0.0
        %532 = vadd.xlane.f32.xlu0 %v531
        %v533 = vpop.xlane.xlu0 %532
        %v534 = vrcp.pop %v533
        %v535 = vmul.f32 %v530, %v534
        %v536 = vpack.c.bf16 %v535, %v535
        %v538 = vsel %vm524, %v536, 0
        %vm540 = vcmask 1043456
        %v542 = vsel %vm540, %v503, 0
        %544 = vmatpush.bf16.msra.mxu0 0
        %545 = vmatpush.bf16.msra.mxu0 0
        %546 = vmatpush.bf16.msra.mxu0 0
        %547 = vmatpush.bf16.msra.mxu0 0
        %548 = vmatpush.bf16.msra.mxu0 0
        %549 = vmatpush.bf16.msra.mxu0 0
        %550 = vmatpush.bf16.msra.mxu0 0
        %551 = vmatpush.bf16.msra.mxu0 %v542
        %552 = vmatmul.bf16.gmra.mxu0 %v538
        %v553 = vpop.f32.mrf.mxu0
        %v554 = vadd.f32 0.0, %v553
        %v555 = vpop.f32.mrf.mxu0
        %556 = vdwg.mxu0
        %558 = vrot.lane.b32.xlu0 %v501, 96
        %v559 = vpop.permute.xlu0 %558
        %561 = vrot.lane.b32.xlu0 %v502, 96
        %v562 = vpop.permute.xlu0 %561
        %v564 = vsel %vm504, %v559, 0
        %v567 = vsel %vm504, %v562, 0
        %569 = vmatpush.bf16.xpose.msra.mxu0 0
        %570 = vmatpush.bf16.xpose.msra.mxu0 0
        %571 = vmatpush.bf16.xpose.msra.mxu0 0
        %572 = vmatpush.bf16.xpose.msra.mxu0 0
        %573 = vmatpush.bf16.xpose.msra.mxu0 0
        %574 = vmatpush.bf16.xpose.msra.mxu0 0
        %575 = vmatpush.bf16.xpose.msra.mxu0 0
        %576 = vmatpush.bf16.xpose.msra.mxu0 %v567
        %577 = vmatmul.bf16.gmra.mxu0 %v564
        %v578 = vpop.f32.mrf.mxu0
        %v579 = vadd.f32 0.0, %v578
        %v580 = vpop.f32.mrf.mxu0
        %581 = vdwg.mxu0
        %v582 = vsel %vm524, %v579, -inf
        %583 = vmax.xlane.f32.xlu0 %v582
        %v584 = vpop.xlane.xlu0 %583
        %v585 = vsub.f32 %v579, %v584
        %v586 = vmul.f32 %v585, 1.442695
        %v587 = vpow.pop %v586
        %v588 = vsel %vm524, %v587, 0.0
        %589 = vadd.xlane.f32.xlu0 %v588
        %v590 = vpop.xlane.xlu0 %589
        %v591 = vrcp.pop %v590
        %v592 = vmul.f32 %v587, %v591
        %v593 = vpack.c.bf16 %v592, %v592
        %595 = vrot.lane.b32.xlu0 %v503, 96
        %v596 = vpop.permute.xlu0 %595
        %v598 = vsel %vm524, %v593, 0
        %v601 = vsel %vm540, %v596, 0
        %603 = vmatpush.bf16.msra.mxu0 0
        %604 = vmatpush.bf16.msra.mxu0 0
        %605 = vmatpush.bf16.msra.mxu0 0
        %606 = vmatpush.bf16.msra.mxu0 0
        %607 = vmatpush.bf16.msra.mxu0 0
        %608 = vmatpush.bf16.msra.mxu0 0
        %609 = vmatpush.bf16.msra.mxu0 0
        %610 = vmatpush.bf16.msra.mxu0 %v601
        %611 = vmatmul.bf16.gmra.mxu0 %v598
        %v612 = vpop.f32.mrf.mxu0
        %v613 = vadd.f32 0.0, %v612
        %v614 = vpop.f32.mrf.mxu0
        %615 = vdwg.mxu0
        %616 = vrot.lane.b32.xlu0 %v501, 64
        %v617 = vpop.permute.xlu0 %616
        %618 = vrot.lane.b32.xlu0 %v502, 64
        %v619 = vpop.permute.xlu0 %618
        %v621 = vsel %vm504, %v617, 0
        %v624 = vsel %vm504, %v619, 0
        %626 = vmatpush.bf16.xpose.msra.mxu0 0
        %627 = vmatpush.bf16.xpose.msra.mxu0 0
        %628 = vmatpush.bf16.xpose.msra.mxu0 0
        %629 = vmatpush.bf16.xpose.msra.mxu0 0
        %630 = vmatpush.bf16.xpose.msra.mxu0 0
        %631 = vmatpush.bf16.xpose.msra.mxu0 0
        %632 = vmatpush.bf16.xpose.msra.mxu0 0
        %633 = vmatpush.bf16.xpose.msra.mxu0 %v624
        %634 = vmatmul.bf16.gmra.mxu0 %v621
        %v635 = vpop.f32.mrf.mxu0
        %v636 = vadd.f32 0.0, %v635
        %v637 = vpop.f32.mrf.mxu0
        %638 = vdwg.mxu0
        %v639 = vsel %vm524, %v636, -inf
        %640 = vmax.xlane.f32.xlu0 %v639
        %v641 = vpop.xlane.xlu0 %640
        %v642 = vsub.f32 %v636, %v641
        %v643 = vmul.f32 %v642, 1.442695
        %v644 = vpow.pop %v643
        %v645 = vsel %vm524, %v644, 0.0
        %646 = vadd.xlane.f32.xlu0 %v645
        %v647 = vpop.xlane.xlu0 %646
        %v648 = vrcp.pop %v647
        %v649 = vmul.f32 %v644, %v648
        %v650 = vpack.c.bf16 %v649, %v649
        %651 = vrot.lane.b32.xlu0 %v503, 64
        %v652 = vpop.permute.xlu0 %651
        %v654 = vsel %vm524, %v650, 0
        %v657 = vsel %vm540, %v652, 0
        %659 = vmatpush.bf16.msra.mxu0 0
        %660 = vmatpush.bf16.msra.mxu0 0
        %661 = vmatpush.bf16.msra.mxu0 0
        %662 = vmatpush.bf16.msra.mxu0 0
        %663 = vmatpush.bf16.msra.mxu0 0
        %664 = vmatpush.bf16.msra.mxu0 0
        %665 = vmatpush.bf16.msra.mxu0 0
        %666 = vmatpush.bf16.msra.mxu0 %v657
        %667 = vmatmul.bf16.gmra.mxu0 %v654
        %v668 = vpop.f32.mrf.mxu0
        %v669 = vadd.f32 0.0, %v668
        %v670 = vpop.f32.mrf.mxu0
        %671 = vdwg.mxu0
        %672 = vrot.lane.b32.xlu0 %v501, 32
        %v673 = vpop.permute.xlu0 %672
        %674 = vrot.lane.b32.xlu0 %v502, 32
        %v675 = vpop.permute.xlu0 %674
        %v677 = vsel %vm504, %v673, 0
        %v680 = vsel %vm504, %v675, 0
        %682 = vmatpush.bf16.xpose.msra.mxu0 0
        %683 = vmatpush.bf16.xpose.msra.mxu0 0
        %684 = vmatpush.bf16.xpose.msra.mxu0 0
        %685 = vmatpush.bf16.xpose.msra.mxu0 0
        %686 = vmatpush.bf16.xpose.msra.mxu0 0
        %687 = vmatpush.bf16.xpose.msra.mxu0 0
        %688 = vmatpush.bf16.xpose.msra.mxu0 0
        %689 = vmatpush.bf16.xpose.msra.mxu0 %v680
        %690 = vmatmul.bf16.gmra.mxu0 %v677
        %v691 = vpop.f32.mrf.mxu0
        %v692 = vadd.f32 0.0, %v691
        %v693 = vpop.f32.mrf.mxu0
        %694 = vdwg.mxu0
        %v695 = vsel %vm524, %v692, -inf
        %696 = vmax.xlane.f32.xlu0 %v695
        %v697 = vpop.xlane.xlu0 %696
        %v698 = vsub.f32 %v692, %v697
        %v699 = vmul.f32 %v698, 1.442695
        %v700 = vpow.pop %v699
        %v701 = vsel %vm524, %v700, 0.0
        %702 = vadd.xlane.f32.xlu0 %v701
        %v703 = vpop.xlane.xlu0 %702
        %v704 = vrcp.pop %v703
        %v705 = vmul.f32 %v700, %v704
        %v706 = vpack.c.bf16 %v705, %v705
        %707 = vrot.lane.b32.xlu0 %v503, 32
        %v708 = vpop.permute.xlu0 %707
        %v710 = vsel %vm524, %v706, 0
        %v713 = vsel %vm540, %v708, 0
        %715 = vmatpush.bf16.msra.mxu0 0
        %716 = vmatpush.bf16.msra.mxu0 0
        %717 = vmatpush.bf16.msra.mxu0 0
        %718 = vmatpush.bf16.msra.mxu0 0
        %719 = vmatpush.bf16.msra.mxu0 0
        %720 = vmatpush.bf16.msra.mxu0 0
        %721 = vmatpush.bf16.msra.mxu0 0
        %722 = vmatpush.bf16.msra.mxu0 %v713
        %723 = vmatmul.bf16.gmra.mxu0 %v710
        %v724 = vpop.f32.mrf.mxu0
        %v725 = vadd.f32 0.0, %v724
        %v726 = vpop.f32.mrf.mxu0
        %727 = vdwg.mxu0
        %729 = vrot.lane.b32.xlu0 %v613, 32
        %v730 = vpop.permute.xlu0 %729
        %733 = vrot.lane.b32.xlu0 %v669, 64
        %v734 = vpop.permute.xlu0 %733
        %737 = vrot.lane.b32.xlu0 %v725, 96
        %v738 = vpop.permute.xlu0 %737
        %v740 = vsel %vm504, %v554, %v730
        %vm741 = vcmask 523264
        %v742 = vsel %vm741, %v740, %v734
        %vm743 = vcmask 785408
        %v744 = vsel %vm743, %v742, %v738
        %v745 = vpack.c.bf16 %v744, %v744
        %v746 = vld [vmem:[#allocation8] sm:$0xf]
        %v747 = vld [vmem:[#allocation8 + $0x4] sm:$0xf]
        %v748 = vld [vmem:[#allocation8 + $0x8] sm:$0xf]
        %v749 = vld [vmem:[#allocation8 + $0xc] sm:$0xf]
        %v750 = vld [vmem:[#allocation8 + $0x10] sm:$0xf]
        %v751 = vld [vmem:[#allocation8 + $0x14] sm:$0xf]
        %v752 = vld [vmem:[#allocation8 + $0x18] sm:$0xf]
        %v753 = vld [vmem:[#allocation8 + $0x1c] sm:$0xf]
        %v754 = vld [vmem:[#allocation8 + $0x20] sm:$0xf]
        %v755 = vld [vmem:[#allocation8 + $0x24] sm:$0xf]
        %v756 = vld [vmem:[#allocation8 + $0x28] sm:$0xf]
        %v757 = vld [vmem:[#allocation8 + $0x2c] sm:$0xf]
        %v758 = vld [vmem:[#allocation8 + $0x30] sm:$0xf]
        %v759 = vld [vmem:[#allocation8 + $0x34] sm:$0xf]
        %v760 = vld [vmem:[#allocation8 + $0x38] sm:$0xf]
        %v761 = vld [vmem:[#allocation8 + $0x3c] sm:$0xf]
        %v762 = vld [vmem:[%s4] sm:$0x1]
        %v764 = vperm.slane %v762, 0
        %v782 = vunpack.c.l.b16 %v746
        %v783 = vunpack.c.l.b16 %v747
        %v784 = vunpack.c.l.b16 %v748
        %v785 = vunpack.c.l.b16 %v749
        %v786 = vunpack.c.l.b16 %v750
        %v787 = vunpack.c.l.b16 %v751
        %v788 = vunpack.c.l.b16 %v752
        %v789 = vunpack.c.l.b16 %v753
        %v790 = vunpack.c.l.b16 %v754
        %v791 = vunpack.c.l.b16 %v755
        %v792 = vunpack.c.l.b16 %v756
        %v793 = vunpack.c.l.b16 %v757
        %v794 = vunpack.c.l.b16 %v758
        %v795 = vunpack.c.l.b16 %v759
        %v796 = vunpack.c.l.b16 %v760
        %v797 = vunpack.c.l.b16 %v761
        %v798 = vpack.c.b16 %v783, %v782
        %v799 = vpack.c.b16 %v785, %v784
        %v800 = vpack.c.b16 %v787, %v786
        %v801 = vpack.c.b16 %v789, %v788
        %v802 = vpack.c.b16 %v791, %v790
        %v803 = vpack.c.b16 %v793, %v792
        %v804 = vpack.c.b16 %v795, %v794
        %v805 = vpack.c.b16 %v797, %v796
        %814 = vmatpush.bf16.msra.mxu0 %v805
        %815 = vmatpush.bf16.msra.mxu0 %v804
        %816 = vmatpush.bf16.msra.mxu0 %v803
        %817 = vmatpush.bf16.msra.mxu0 %v802
        %818 = vmatpush.bf16.msra.mxu0 %v801
        %819 = vmatpush.bf16.msra.mxu0 %v800
        %820 = vmatpush.bf16.msra.mxu0 %v799
        %821 = vmatpush.bf16.msra.mxu0 %v798
        %822 = vmatmul.bf16.gmra.mxu0 %v745
        %v823 = vpop.f32.mrf.mxu0
        %v824 = vadd.f32 %v764, %v823
        %v825 = vpop.f32.mrf.mxu0
        %826 = vdwg.mxu0
        %827 = vst [vmem:[%s289] sm:$0xff] %v824
        %s828 = sand.u32 %s142, 1
        %s829 = scalar_lea.sflag [#allocation4], %s828
        %s830 = sand.u32 %s142, 1
        %s831 = smul.addr %s830, 8
        %s832 = scalar_lea.vmem [#allocation10], %s831
        // Predicated region
        $region57: #{tpu_custom_call.1} parent=39 // pred_check
          %p833 = pneg %p152
        $region58: #{tpu_custom_call.1} parent=39 // pred_check_branch
          %835 = sbr.rel (%p833) target = $region60
        $region59: #{tpu_custom_call.1} parent=39 // pred_region
          %837 = vsyncadd %s829, 0
          %s838 = smul.addr %s24, 8
          %s839 = scalar_lea.hbm %s5, %s838
          %s841 = sshll.u32 %s832, 4
          %s842 = int_to_ptr.vmem [resolvable:$true] %s841
          %s843 = sshll.u32 %s839, 4
          %s844 = int_to_ptr.hbm [resolvable:$true] %s843
          %846 = dma.vmem_to_hbm [thread:$0]  %s842, 128, %s844, %s829
        $region60: #{tpu_custom_call.1} parent=39 // pred_fallthru
          _
      $region40: #{tpu_custom_call.1} parent=5 // pred_fallthru
        _
      %p847 = scmp.le.s32.totalorder 2, %s19
      // Predicated region
      $region61: #{tpu_custom_call.1} parent=5 // pred_check
        %p848 = pneg %p847
      $region62: #{tpu_custom_call.1} parent=5 // pred_check_branch
        %850 = sbr.rel (%p848) target = $region64
      $region63: #{tpu_custom_call.1} parent=5 // pred_region
        %s851 = ssub.s32 %s19, 2
        // Predicated region
        $region65: #{tpu_custom_call.1} parent=63 // pred_check
          %p852 = pneg %p158
        $region66: #{tpu_custom_call.1} parent=63 // pred_check_branch
          %854 = sbr.rel (%p852) target = $region68
        $region67: #{tpu_custom_call.1} parent=63 // pred_region
          %s855 = sand.u32 %s143, 1
          %s856 = scalar_lea.sflag [#allocation4], %s855
          %s857 = sand.u32 %s143, 1
          %s858 = smul.addr %s857, 8
          %s859 = scalar_lea.vmem [#allocation10], %s858
          %861 = dma.done %s856, 128
        $region68: #{tpu_custom_call.1} parent=63 // pred_fallthru
          _
      $region64: #{tpu_custom_call.1} parent=5 // pred_fallthru
        _
    $region6: #{tpu_custom_call.1} parent=1 // loop_footer
      %s23 = sadd.s32 1, %s19
    $region7: #{tpu_custom_call.1} parent=1 // loop_footer_branch
      %18 = sbr.rel target = $region3
    $region8: #{tpu_custom_call.1} parent=1 // loop_exit
      _
    %862 = vsyncpa [#allocation3], 1
    %s863 = scalar_lea.sflag [#allocation3], 1
    %864 = vsyncpa %s863, 1
    %865 = vsyncpa [#allocation6], 1
    %866 = vsyncpa [#allocation9], 1
    %867 = vsyncpa [#allocation4], 1
    %s868 = scalar_lea.sflag [#allocation4], 1
    %869 = vsyncpa %s868, 1

</llo_original>
